<compile_context>
chip_gen: v7x
topology: tpu7x:2x2x1
jax: 0.10.0
libtpu: 0.0.40
codegen_flags: <defaults>
</compile_context>

<pallas_src>
import functools

import jax
import jax.numpy as jnp
from jax.experimental import pallas as pl
from jax.experimental.pallas import tpu as pltpu

# ----------------------------------------------------------------------------
# Reduced model hyper-parameters (small, TPU-friendly synthetic sizes)
# ----------------------------------------------------------------------------
D_MSA = 32        # d_msa          (256 in the real model)
D_FULL = 16       # d_msa_full     (64)
D_PAIR = 32       # d_pair         (128)
D_STATE = 16      # d_state
D_HID = 32        # d_hidden for pair outer-product (raised per review)
N_ITERS = 4       # number of simulator blocks producing (R, T, alpha)
N_RBF = 36        # recycling distance RBF bins
N_TORSION = 10    # torsion angles (alpha has shape [..., 10, 2])

CPAD = 128        # lane-padded channel width carried end-to-end
TM_MAX = 1024     # max matmul row tile (review: raise from 256)


def _round_up(x, m):
    return ((x + m - 1) // m) * m


def _choose_tm(M):
    """Row tile for flat linears: big tiles, but >=2 grid steps when possible."""
    TM = min(TM_MAX, _round_up(M, 8))
    if _round_up(M, TM) // TM < 2 and M >= 64:
        TM = _round_up((M + 1) // 2, 8)          # split so v7x can use both TCs
    return TM, _round_up(M, TM)


def _pick_row_tile(L, max_rows=8192):
    """Row tile for (TL, L) pair blocks, bounded so VMEM never blows up."""
    for cand in (128, 64, 32, 16, 8):
        if L % cand == 0 and cand * L <= max_rows:
            return cand
    if L % 8 == 0:
        return 8
    # TODO(synk): pad L to a multiple of 8 for non-aligned sequence lengths.
    return L


# ----------------------------------------------------------------------------
# Pallas kernels
# ----------------------------------------------------------------------------
def _linear_kernel(a_ref, w_ref, b_ref, o_ref, *, act, residual):
    # a: (TM, K) any dtype (cast to bf16 in-kernel)   w: (K, N) bf16   b: (1, N) f32
    a = a_ref[...]
    y = jnp.dot(a.astype(jnp.bfloat16), w_ref[...],
                preferred_element_type=jnp.float32) + b_ref[...]
    if act is not None:
        y = act(y)
    if residual:
        y = a.astype(jnp.float32) + y
    o_ref[...] = y.astype(o_ref.dtype)


def pallas_linear(x, wp, bp, *, act=None, residual=False, out_dtype=jnp.bfloat16):
    """y = [x +] act(x @ wp + bp). wp pre-padded bf16 [K, N], bp f32 [1, N]."""
    *lead, K = x.shape
    N = wp.shape[1]
    x2 = x.reshape(-1, K)
    M = x2.shape[0]
    TM, Mp = _choose_tm(M)
    if Mp != M:
        x2 = jnp.pad(x2, ((0, Mp - M), (0, 0)))

    out = pl.pallas_call(
        functools.partial(_linear_kernel, act=act, residual=residual),
        out_shape=jax.ShapeDtypeStruct((Mp, N), out_dtype),
        grid=(Mp // TM,),
        in_specs=[
            pl.BlockSpec((TM, K), lambda i: (i, 0)),
            pl.BlockSpec((K, N), lambda i: (0, 0)),
            pl.BlockSpec((1, N), lambda i: (0, 0)),
        ],
        out_specs=pl.BlockSpec((TM, N), lambda i: (i, 0)),
        compiler_params=pltpu.CompilerParams(dimension_semantics=("parallel",)),
    )(x2, wp, bp)

    if Mp != M:
        out = out[:M]
    return out.reshape(*lead, N)


def lin(p, x, **kw):
    return pallas_linear(x, p["w"], p["b"], **kw)


def _dual_residual_kernel(s_ref, m_ref, ws_ref, wm_ref, b_ref, o_ref, *, act):
    # state update: o = s + tanh(s @ Ws + m @ Wm + b), stored bf16
    s = s_ref[...]
    y = (jnp.dot(s.astype(jnp.bfloat16), ws_ref[...],
                 preferred_element_type=jnp.float32)
         + jnp.dot(m_ref[...].astype(jnp.bfloat16), wm_ref[...],
                   preferred_element_type=jnp.float32)
         + b_ref[...])
    if act is not None:
        y = act(y)
    o_ref[...] = (s.astype(jnp.float32) + y).astype(o_ref.dtype)


def pallas_state_update(state, msa0, ws, wm, b):
    B, L, C = state.shape
    s2 = state.reshape(-1, C)
    m2 = msa0.reshape(-1, C)
    M = s2.shape[0]
    TM, Mp = _choose_tm(M)
    if Mp != M:
        s2 = jnp.pad(s2, ((0, Mp - M), (0, 0)))
        m2 = jnp.pad(m2, ((0, Mp - M), (0, 0)))
    N = ws.shape[1]

    out = pl.pallas_call(
        functools.partial(_dual_residual_kernel, act=jnp.tanh),
        out_shape=jax.ShapeDtypeStruct((Mp, N), state.dtype),
        grid=(Mp // TM,),
        in_specs=[
            pl.BlockSpec((TM, C), lambda i: (i, 0)),
            pl.BlockSpec((TM, C), lambda i: (i, 0)),
            pl.BlockSpec((C, N), lambda i: (0, 0)),
            pl.BlockSpec((C, N), lambda i: (0, 0)),
            pl.BlockSpec((1, N), lambda i: (0, 0)),
        ],
        out_specs=pl.BlockSpec((TM, N), lambda i: (i, 0)),
        compiler_params=pltpu.CompilerParams(dimension_semantics=("parallel",)),
    )(s2, m2, ws, wm, b)

    if Mp != M:
        out = out[:M]
    return out.reshape(B, L, N)


def _pair_update_kernel(pr_ref, l_ref, r_ref, wp_ref, bp_ref, o_ref):
    # pr: (TL*L, Cp) bf16 residual  l: (TL, H)  r: (L, H)  wp: (H, Cp) bf16
    l = l_ref[...].astype(jnp.float32)
    r = r_ref[...].astype(jnp.float32)
    tl, h = l.shape
    ll = r.shape[0]
    prod = (l[:, None, :] * r[None, :, :]).reshape(tl * ll, h).astype(jnp.bfloat16)
    upd = jnp.dot(prod, wp_ref[...], preferred_element_type=jnp.float32) + bp_ref[...]
    o_ref[...] = (pr_ref[...].astype(jnp.float32) + upd).astype(o_ref.dtype)


def pallas_pair_update(pair, proj, wp, bp):
    """pair[b,i,j,:] += (l_i * r_j) Wp + bp, residual fused, bf16 in/out."""
    B, L, _, Cp = pair.shape
    H = proj.shape[-1] // 2
    l_all = proj[..., :H]          # tiny [B, L, H] slices, done in XLA
    r_all = proj[..., H:]
    TL = _pick_row_tile(L)
    pr = pair.reshape(B, L * L, Cp)

    out = pl.pallas_call(
        _pair_update_kernel,
        out_shape=jax.ShapeDtypeStruct((B, L * L, Cp), pair.dtype),
        grid=(B, L // TL),
        in_specs=[
            pl.BlockSpec((None, TL * L, Cp), lambda b, i: (b, i, 0)),
            pl.BlockSpec((None, TL, H), lambda b, i: (b, i, 0)),
            pl.BlockSpec((None, L, H), lambda b, i: (b, 0, 0)),
            pl.BlockSpec((wp.shape[0], Cp), lambda b, i: (0, 0)),
            pl.BlockSpec((1, Cp), lambda b, i: (0, 0)),
        ],
        out_specs=pl.BlockSpec((None, TL * L, Cp), lambda b, i: (b, i, 0)),
        compiler_params=pltpu.CompilerParams(
            dimension_semantics=("parallel", "parallel")),
    )(pr, l_all, r_all, wp, bp)
    return out.reshape(B, L, L, Cp)


def _templ2d_kernel(pr_ref, x_ref, m_ref, w_ref, b_ref, o_ref, acc_ref, cnt_ref):
    # pr: (TL*L, Cp) f32 residual  x: (TL*L, 44) f32 (cast in-kernel)  m: (TL*L, 1)
    t = pl.program_id(2)

    @pl.when(t == 0)
    def _():
        acc_ref[...] = jnp.zeros_like(acc_ref)
        cnt_ref[...] = jnp.zeros_like(cnt_ref)

    feat = jnp.dot(x_ref[...].astype(jnp.bfloat16), w_ref[...],
                   preferred_element_type=jnp.float32) + b_ref[...]
    m = m_ref[...]
    acc_ref[...] += feat * m
    cnt_ref[...] += m

    @pl.when(t == pl.num_programs(2) - 1)
    def _():
        o_ref[...] = (pr_ref[...].astype(jnp.float32)
                      + acc_ref[...] / (cnt_ref[...] + 1e-4)).astype(o_ref.dtype)


def pallas_templ2d_add(pair_pre, t2d, mask_t, wp, bp, out_dtype=jnp.bfloat16):
    """pair = pair_pre + sum_t (t2d_t @ W + b) * mask_t / (sum_t mask_t + 1e-4)."""
    B, T, L, _, Cin = t2d.shape
    Cp = wp.shape[1]
    TL = _pick_row_tile(L)
    x = t2d.reshape(B, T, L * L, Cin)                # f32, cast inside kernel
    m = mask_t.reshape(B, T, L * L, 1).astype(jnp.float32)
    pr = pair_pre.reshape(B, L * L, Cp)

    out = pl.pallas_call(
        _templ2d_kernel,
        out_shape=jax.ShapeDtypeStruct((B, L * L, Cp), out_dtype),
        grid=(B, L // TL, T),
        in_specs=[
            pl.BlockSpec((None, TL * L, Cp), lambda b, i, t: (b, i, 0)),
            pl.BlockSpec((None, None, TL * L, Cin), lambda b, i, t: (b, t, i, 0)),
            pl.BlockSpec((None, None, TL * L, 1), lambda b, i, t: (b, t, i, 0)),
            pl.BlockSpec((Cin, Cp), lambda b, i, t: (0, 0)),
            pl.BlockSpec((1, Cp), lambda b, i, t: (0, 0)),
        ],
        out_specs=pl.BlockSpec((None, TL * L, Cp), lambda b, i, t: (b, i, 0)),
        scratch_shapes=[pltpu.VMEM((TL * L, Cp), jnp.float32),
                        pltpu.VMEM((TL * L, 1), jnp.float32)],
        compiler_params=pltpu.CompilerParams(
            dimension_semantics=("parallel", "parallel", "arbitrary")),
    )(pr, x, m, wp, bp)
    return out.reshape(B, L, L, Cp)


# ----------------------------------------------------------------------------
# Deterministic, pre-padded / pre-fused parameter initialization
# ----------------------------------------------------------------------------
def _rand_wb(key, din, dout, scale=0.05):
    k1, k2 = jax.random.split(key)
    return (scale * jax.random.normal(k1, (din, dout), jnp.float32),
            0.01 * jax.random.normal(k2, (dout,), jnp.float32))


def _pack(parts, k_pad, n_pad):
    """Pack (w, b, k_off, n_off) parts into one padded bf16 weight + f32 bias."""
    wp = jnp.zeros((k_pad, n_pad), jnp.float32)
    bp = jnp.zeros((1, n_pad), jnp.float32)
    for w, b, ko, no in parts:
        K, Nn = w.shape
        wp = wp.at[ko:ko + K, no:no + Nn].set(w)
        bp = bp.at[0, no:no + Nn].set(b)
    return {"w": wp.astype(jnp.bfloat16), "b": bp}


def _dense(key, din, dout, k_pad=None, n_pad=None):
    w, b = _rand_wb(key, din, dout)
    return _pack([(w, b, 0, 0)], k_pad or din, n_pad or dout)


def init_params(key):
    keys = iter(jax.random.split(key, 72))
    nk = lambda: next(keys)
    p = {}
    # latent_emb (MSA_emb)
    p["msa_emb"] = _dense(nk(), 48, D_MSA, n_pad=CPAD)
    p["seq_to_msa"] = _dense(nk(), 21, D_MSA, n_pad=CPAD)
    wl, bl = _rand_wb(nk(), 21, D_PAIR)
    wr, br = _rand_wb(nk(), 21, D_PAIR)
    p["pair_lr"] = _pack([(wl, bl, 0, 0), (wr, br, 0, CPAD)], 21, 2 * CPAD)
    wpos, bpos = _rand_wb(nk(), 65, D_PAIR)              # pos emb -> gather table
    p["pos_table"] = jnp.zeros((65, CPAD), jnp.float32).at[:, :D_PAIR].set(
        wpos + bpos[None, :])
    p["state_emb"] = _dense(nk(), 22, D_STATE, n_pad=CPAD)
    # full_emb (Extra_emb)
    p["full_emb"] = _dense(nk(), 25, D_FULL, n_pad=CPAD)
    p["seq_to_full"] = _dense(nk(), 21, D_FULL, n_pad=CPAD)
    # Recycling: first pass has structurally-zero prev tensors -> only biases used
    p["rec_msa_b"] = jnp.zeros((CPAD,), jnp.float32).at[:D_MSA].set(
        0.01 * jax.random.normal(nk(), (D_MSA,), jnp.float32))
    p["rec_pair_b"] = jnp.zeros((CPAD,), jnp.float32).at[:D_PAIR].set(
        0.01 * jax.random.normal(nk(), (D_PAIR,), jnp.float32))
    p["rec_state_b"] = jnp.zeros((CPAD,), jnp.float32).at[:D_STATE].set(
        0.01 * jax.random.normal(nk(), (D_STATE,), jnp.float32))
    p["rec_rbf"] = _dense(nk(), N_RBF, D_PAIR, n_pad=CPAD)
    # Templ_emb
    p["templ_2d"] = _dense(nk(), 44, D_PAIR, n_pad=CPAD)
    p["templ_1d"] = _dense(nk(), 22 + 30, D_STATE, n_pad=CPAD)
    # IterativeSimulator (per-block params)
    p["sim"] = []
    for _ in range(N_ITERS):
        blk = {
            "msa_upd": _dense(nk(), D_MSA, D_MSA, k_pad=CPAD, n_pad=CPAD),
            "full_to_msa": _dense(nk(), D_FULL, D_MSA, k_pad=CPAD, n_pad=CPAD),
            "pair_proj": _dense(nk(), D_HID, D_PAIR, n_pad=CPAD),
        }
        # fused l/r projection (hoisted out of the pair-update kernel)
        wpl, bpl = _rand_wb(nk(), D_MSA, D_HID)
        wpr, bpr = _rand_wb(nk(), D_MSA, D_HID)
        blk["pair_lr"] = _pack([(wpl, bpl, 0, 0), (wpr, bpr, 0, D_HID)],
                               CPAD, 2 * D_HID)
        # state update: concat([state, msa0]) folded into two padded weights
        wsu, bsu = _rand_wb(nk(), D_STATE + D_MSA, D_STATE)
        ws = jnp.zeros((CPAD, CPAD), jnp.float32).at[:D_STATE, :D_STATE].set(
            wsu[:D_STATE])
        wm = jnp.zeros((CPAD, CPAD), jnp.float32).at[:D_MSA, :D_STATE].set(
            wsu[D_STATE:])
        blk["state_ws"] = ws.astype(jnp.bfloat16)
        blk["state_wm"] = wm.astype(jnp.bfloat16)
        blk["state_b"] = jnp.zeros((1, CPAD), jnp.float32).at[0, :D_STATE].set(bsu)
        # SE(3) head: rot(9) + trans(3) + alpha(20), fused
        w9, b9 = _rand_wb(nk(), D_STATE, 9)
        w3, b3 = _rand_wb(nk(), D_STATE, 3)
        wa, ba = _rand_wb(nk(), D_STATE, 2 * N_TORSION)
        blk["se3"] = _pack([(w9, b9, 0, 0), (w3, b3, 0, 9), (wa, ba, 0, 12)],
                           CPAD, 9 + 3 + 2 * N_TORSION)
        p["sim"].append(blk)
    # Prediction heads
    p["aa"] = _dense(nk(), D_MSA, 21, k_pad=CPAD)
    # fused c6d + pae head: [dist 37 | omega 37 | theta 37 | phi 19 | pae 64] -> 194 pad 256
    wd, bd = _rand_wb(nk(), D_PAIR, 37)
    wo, bo = _rand_wb(nk(), D_PAIR, 37)
    wt, bt = _rand_wb(nk(), D_PAIR, 37)
    wph, bph = _rand_wb(nk(), D_PAIR, 19)
    wpa, bpa = _rand_wb(nk(), D_PAIR, 64)
    p["c6d_pae"] = _pack([(wd, bd, 0, 0), (wo, bo, 0, 37), (wt, bt, 0, 74),
                          (wph, bph, 0, 111), (wpa, bpa, 0, 130)], CPAD, 256)
    p["lddt"] = _dense(nk(), D_STATE, 50, k_pad=CPAD)
    # tiny heads stay in XLA (N == 1 or M == 1)
    p["exp_w"], p["exp_b"] = _rand_wb(nk(), D_MSA + D_STATE, 1)
    p["epi_w"], p["epi_b"] = _rand_wb(nk(), D_MSA + D_STATE, 1)
    p["bind_w"], p["bind_b"] = _rand_wb(nk(), 1, 1)
    return p


# ----------------------------------------------------------------------------
# Forward pass (mirrors RoseTTAFoldModule.forward, return_raw=False)
# ----------------------------------------------------------------------------
def rosettafold_forward(params, msa_latent, msa_full, seq, xyz, idx, t1d, t2d,
                        xyz_t, alpha_t, mask_t, chain_idx, same_chain,
                        mask_recycle, epitope_info):
    B, N, L, _ = msa_latent.shape
    f32 = jnp.float32
    bf16 = jnp.bfloat16

    seq1h = jax.nn.one_hot(seq, 21, dtype=f32)                       # [B,L,21]

    # ---------------- latent_emb (MSA_emb) ----------------
    msa = lin(params["msa_emb"], msa_latent.astype(f32))             # bf16 [B,N,L,CPAD]
    msa = msa + lin(params["seq_to_msa"], seq1h)[:, None, :, :]
    # recycle (prev tensors structurally zero -> bias only)
    msa = msa.at[:, 0].add(
        jnp.broadcast_to(params["rec_msa_b"].astype(bf16), (B, L, CPAD)))

    lr = lin(params["pair_lr"], seq1h, out_dtype=f32)                # [B,L,2*CPAD]
    left, right = lr[..., :CPAD], lr[..., CPAD:]
    rel_idx = jnp.clip(idx[:, :, None] - idx[:, None, :], -32, 32) + 32
    pos_feat = jnp.take(params["pos_table"], rel_idx, axis=0)        # gather, no one-hot

    ca = xyz[:, :, 1, :].astype(f32)                                 # [B,L,3]
    d = jnp.sqrt(jnp.sum((ca[:, :, None, :] - ca[:, None, :, :]) ** 2, -1) + 1e-8)
    centers = jnp.linspace(2.0, 20.0, N_RBF)
    rbf = jnp.exp(-((d[..., None] - centers) ** 2) / 2.0)            # [B,L,L,36]
    rbf_feat = (lin(params["rec_rbf"], rbf, out_dtype=f32)
                * mask_recycle[..., None].astype(f32))

    pair_pre = (left[:, :, None, :] + right[:, None, :, :] + pos_feat
                + params["rec_pair_b"] + rbf_feat)                   # f32 [B,L,L,CPAD]

    state_in = jnp.concatenate([seq1h, epitope_info[..., None].astype(f32)], -1)
    state = lin(params["state_emb"], state_in, out_dtype=f32)        # f32 [B,L,CPAD]

    # ---------------- full_emb (Extra_emb) ----------------
    msa_full_e = lin(params["full_emb"], msa_full.astype(f32))
    msa_full_e = msa_full_e + lin(params["seq_to_full"], seq1h)[:, None, :, :]

    # ---------------- templ_emb ----------------
    # TODO(synk): real Templ_emb uses point-wise attention over templates; here
    #   template 2D features are mask-pooled and residual-added in ONE kernel.
    pair = pallas_templ2d_add(pair_pre, t2d.astype(f32), mask_t.astype(f32),
                              params["templ_2d"]["w"], params["templ_2d"]["b"])
    t1d_feat = lin(params["templ_1d"],
                   jnp.concatenate([t1d.astype(f32), alpha_t.astype(f32)], -1),
                   out_dtype=f32)
    state = (state + params["rec_state_b"] + jnp.mean(t1d_feat, axis=1)).astype(bf16)

    # ---------------- IterativeSimulator (simplified) ----------------
    full_summary = jnp.mean(msa_full_e, axis=1)                      # bf16 [B,L,CPAD]
    Rs, Ts, alphas = [], [], []
    eye3 = jnp.eye(3, dtype=f32)[None, None]
    for it in range(N_ITERS):
        blk = params["sim"][it]
        msa = lin(blk["msa_upd"], msa, act=jax.nn.gelu, residual=True)
        msa = msa.at[:, 0].add(lin(blk["full_to_msa"], full_summary))
        msa_mean = jnp.mean(msa, axis=1)                             # [B,L,CPAD]
        proj = lin(blk["pair_lr"], msa_mean)                         # [B,L,2*D_HID]
        pair = pallas_pair_update(pair, proj,
                                  blk["pair_proj"]["w"], blk["pair_proj"]["b"])
        state = pallas_state_update(state, msa[:, 0],
                                    blk["state_ws"], blk["state_wm"], blk["state_b"])
        se3 = lin(blk["se3"], state, out_dtype=f32)                  # [B,L,32]
        R_i = eye3 + 0.1 * se3[..., :9].reshape(B, L, 3, 3)
        T_i = se3[..., 9:12]
        a_i = se3[..., 12:].reshape(B, L, N_TORSION, 2)
        Rs.append(R_i); Ts.append(T_i); alphas.append(a_i)
    R = jnp.stack(Rs, 0)           # [R,B,L,3,3]
    T = jnp.stack(Ts, 0)           # [R,B,L,3]
    alpha = jnp.stack(alphas, 0)   # [R,B,L,10,2]

    # ---------------- prediction heads ----------------
    logits_aa = lin(params["aa"], msa, out_dtype=f32)                # [B,N,L,21]
    logits_aa = jnp.transpose(logits_aa, (0, 3, 1, 2)).reshape(B, 21, N * L)

    # fused c6d + pae head; symmetrize dist/omega on the OUTPUT (exact by linearity)
    y = lin(params["c6d_pae"], pair, out_dtype=f32)                  # [B,L,L,256]
    sym = 0.5 * (y[..., :74] + jnp.transpose(y[..., :74], (0, 2, 1, 3)))
    _t = lambda v: jnp.transpose(v, (0, 3, 1, 2))                    # -> [B,C,L,L]
    logits = (_t(sym[..., :37]), _t(sym[..., 37:74]),
              _t(y[..., 74:111]), _t(y[..., 111:130]))
    logits_pae = _t(y[..., 130:194])                                 # [B,64,L,L]

    lddt = jnp.transpose(lin(params["lddt"], state, out_dtype=f32), (0, 2, 1))

    ms0_state = jnp.concatenate(
        [msa[:, 0, :, :D_MSA], state[..., :D_STATE]], -1).astype(f32)  # [B,L,48]
    logits_exp = (ms0_state @ params["exp_w"] + params["exp_b"])[..., 0]
    logits_epitope = (ms0_state @ params["epi_w"] + params["epi_b"])[..., 0]

    # BinderNetwork: expected PAE over inter-chain pairs -> sigmoid(linear)
    pae_prob = jax.nn.softmax(logits_pae, axis=1)
    bin_centers = 0.25 + 0.5 * jnp.arange(64, dtype=f32)
    exp_pae = jnp.sum(pae_prob * bin_centers[None, :, None, None], axis=1)
    inter = 1.0 - same_chain.astype(f32)
    mean_pae = (jnp.sum(exp_pae * inter, axis=(1, 2)) /
                (jnp.sum(inter, axis=(1, 2)) + 1e-6))                # [B]
    p_bind = jax.nn.sigmoid(mean_pae[:, None] @ params["bind_w"] + params["bind_b"])

    # xyz = einsum('rblij,blaj->rblai', R, xyz - xyz[:,:,1][...,None,:]) + T
    xyz_centered = xyz.astype(f32) - xyz[:, :, 1:2, :].astype(f32)
    xyz_out = (jnp.einsum("rblij,blaj->rblai", R, xyz_centered)
               + T[:, :, :, None, :])                                # [R,B,L,27,3]

    return (logits, logits_aa, logits_exp, logits_epitope, logits_pae,
            p_bind, xyz_out, alpha, lddt)


# ----------------------------------------------------------------------------
# Driver
# ----------------------------------------------------------------------------
if __name__ == "__main__":
    key = jax.random.PRNGKey(0)
    kp, *ks = jax.random.split(key, 16)
    params = init_params(kp)

    B, N, Ne, L, Tt = 1, 4, 4, 8, 2
    msa_latent = jax.random.normal(ks[0], (B, N, L, 48), jnp.float32)
    msa_full = jax.random.normal(ks[1], (B, Ne, L, 25), jnp.float32)
    seq = jax.random.randint(ks[2], (B, L), 0, 21)
    xyz = jax.random.normal(ks[3], (B, L, 27, 3), jnp.float32)
    idx = jnp.arange(L, dtype=jnp.int32)[None, :]
    t1d = jax.random.normal(ks[4], (B, Tt, L, 22), jnp.float32)
    t2d = jax.random.normal(ks[5], (B, Tt, L, L, 44), jnp.float32)
    xyz_t = jax.random.normal(ks[6], (B, Tt, L, 3), jnp.float32)
    alpha_t = jax.random.normal(ks[7], (B, Tt, L, 30), jnp.float32)
    mask_t = jnp.ones((B, Tt, L, L), jnp.float32)
    chain_idx = jnp.concatenate(
        [jnp.zeros((B, L // 2), jnp.int32), jnp.ones((B, L - L // 2), jnp.int32)], -1)
    same_chain = (chain_idx[:, :, None] == chain_idx[:, None, :]).astype(jnp.float32)
    mask_recycle = jnp.ones((B, L, L), jnp.float32)
    epitope_info = jax.random.bernoulli(ks[8], 0.3, (B, L)).astype(jnp.float32)

    fwd = jax.jit(rosettafold_forward)
    out = fwd(params, msa_latent, msa_full, seq, xyz, idx, t1d, t2d,
              xyz_t, alpha_t, mask_t, chain_idx, same_chain,
              mask_recycle, epitope_info)
    out = jax.block_until_ready(out)

    # light sanity checks on output shapes
    logits, logits_aa, logits_exp, logits_epi, logits_pae, p_bind, xyz_o, alpha, lddt = out
    assert logits[0].shape == (B, 37, L, L)
    assert logits[1].shape == (B, 37, L, L)
    assert logits[2].shape == (B, 37, L, L)
    assert logits[3].shape == (B, 19, L, L)
    assert logits_aa.shape == (B, 21, N * L)
    assert logits_pae.shape == (B, 64, L, L)
    assert p_bind.shape == (B, 1)
    assert xyz_o.shape == (N_ITERS, B, L, 27, 3)
    assert alpha.shape == (N_ITERS, B, L, N_TORSION, 2)
    assert lddt.shape == (B, 50, L)
    assert bool(jnp.all(jnp.isfinite(logits_pae)))
    assert bool(jnp.all(jnp.isfinite(logits[0])))

    print("KERNEL_OK")
</pallas_src>

<mosaic_0001>
module attributes {stable_mosaic.version = 11 : i64} {
  func.func @_linear_kernel(%arg0: i32, %arg1: memref<8x21xf32, #tpu.memory_space<vmem>>, %arg2: memref<21x256xbf16, #tpu.memory_space<vmem>>, %arg3: memref<1x256xf32, #tpu.memory_space<vmem>>, %arg4: memref<8x256xf32, #tpu.memory_space<vmem>>) attributes {dimension_semantics = [#tpu.dimension_semantics<parallel>], iteration_bounds = array<i64: 1>, scalar_prefetch = 0 : i64, scratch_operands = 0 : i64, tpu.core_type = #tpu.core_type<tc>, window_params = [{transform_indices = @transform_0, window_bounds = array<i64: 8, 21>}, {pipeline_mode = #tpu.pipeline_mode<synchronous>, transform_indices = @transform_1, window_bounds = array<i64: 21, 256>}, {pipeline_mode = #tpu.pipeline_mode<synchronous>, transform_indices = @transform_2, window_bounds = array<i64: 1, 256>}, {transform_indices = @transform_3, window_bounds = array<i64: 8, 256>}]} {
    %c0 = arith.constant 0 : index
    %c0_0 = arith.constant 0 : index
    %0 = vector.load %arg1[%c0, %c0_0] : memref<8x21xf32, #tpu.memory_space<vmem>>, vector<8x21xf32>
    %1 = arith.truncf %0 : vector<8x21xf32> to vector<8x21xbf16>
    %c0_1 = arith.constant 0 : index
    %c0_2 = arith.constant 0 : index
    %2 = vector.load %arg2[%c0_1, %c0_2] : memref<21x256xbf16, #tpu.memory_space<vmem>>, vector<21x256xbf16>
    %cst = arith.constant dense<0.000000e+00> : vector<8x256xf32>
    %3 = tpu.matmul %1, %2, %cst {dimension_numbers = #tpu.dot_dimension_numbers<[1], [0], [0], [1], [0, 0, 1, 1], [], []>} : vector<8x21xbf16>, vector<21x256xbf16>, vector<8x256xf32> -> vector<8x256xf32>
    %c0_3 = arith.constant 0 : index
    %c0_4 = arith.constant 0 : index
    %4 = vector.load %arg3[%c0_3, %c0_4] : memref<1x256xf32, #tpu.memory_space<vmem>>, vector<1x256xf32>
    %5 = vector.broadcast %4 : vector<1x256xf32> to vector<8x256xf32>
    %6 = arith.addf %3, %5 : vector<8x256xf32>
    %c0_5 = arith.constant 0 : index
    %c0_6 = arith.constant 0 : index
    %7 = vector.load %arg4[%c0_5, %c0_6] : memref<8x256xf32, #tpu.memory_space<vmem>>, vector<8x256xf32>
    tpu.vector_store %arg4[%c0_5, %c0_6], %6 {strides = array<i32>} : memref<8x256xf32, #tpu.memory_space<vmem>>, vector<8x256xf32>,
    return
  }
  func.func @transform_0(%arg0: i32) -> (i32, i32) {
    %c0_i32 = arith.constant 0 : i32
    %c0_i32_0 = arith.constant 0 : i32
    return %arg0, %c0_i32 : i32, i32
  }
  func.func @transform_1(%arg0: i32) -> (i32, i32) {
    %c0_i32 = arith.constant 0 : i32
    %c0_i32_0 = arith.constant 0 : i32
    %c0_i32_1 = arith.constant 0 : i32
    return %c0_i32, %c0_i32_0 : i32, i32
  }
  func.func @transform_2(%arg0: i32) -> (i32, i32) {
    %c0_i32 = arith.constant 0 : i32
    %c0_i32_0 = arith.constant 0 : i32
    %c0_i32_1 = arith.constant 0 : i32
    return %c0_i32, %c0_i32_0 : i32, i32
  }
  func.func @transform_3(%arg0: i32) -> (i32, i32) {
    %c0_i32 = arith.constant 0 : i32
    %c0_i32_0 = arith.constant 0 : i32
    return %arg0, %c0_i32 : i32, i32
  }
}

module attributes {stable_mosaic.version = 11 : i64} {
  func.func @_linear_kernel(%arg0: i32, %arg1: memref<8x21xf32, #tpu.memory_space<vmem>>, %arg2: memref<21x128xbf16, #tpu.memory_space<vmem>>, %arg3: memref<1x128xf32, #tpu.memory_space<vmem>>, %arg4: memref<8x128xbf16, #tpu.memory_space<vmem>>) attributes {dimension_semantics = [#tpu.dimension_semantics<parallel>], iteration_bounds = array<i64: 1>, scalar_prefetch = 0 : i64, scratch_operands = 0 : i64, tpu.core_type = #tpu.core_type<tc>, window_params = [{transform_indices = @transform_0, window_bounds = array<i64: 8, 21>}, {pipeline_mode = #tpu.pipeline_mode<synchronous>, transform_indices = @transform_1, window_bounds = array<i64: 21, 128>}, {pipeline_mode = #tpu.pipeline_mode<synchronous>, transform_indices = @transform_2, window_bounds = array<i64: 1, 128>}, {transform_indices = @transform_3, window_bounds = array<i64: 8, 128>}]} {
    %c0 = arith.constant 0 : index
    %c0_0 = arith.constant 0 : index
    %0 = vector.load %arg1[%c0, %c0_0] : memref<8x21xf32, #tpu.memory_space<vmem>>, vector<8x21xf32>
    %1 = arith.truncf %0 : vector<8x21xf32> to vector<8x21xbf16>
    %c0_1 = arith.constant 0 : index
    %c0_2 = arith.constant 0 : index
    %2 = vector.load %arg2[%c0_1, %c0_2] : memref<21x128xbf16, #tpu.memory_space<vmem>>, vector<21x128xbf16>
    %cst = arith.constant dense<0.000000e+00> : vector<8x128xf32>
    %3 = tpu.matmul %1, %2, %cst {dimension_numbers = #tpu.dot_dimension_numbers<[1], [0], [0], [1], [0, 0, 1, 1], [], []>} : vector<8x21xbf16>, vector<21x128xbf16>, vector<8x128xf32> -> vector<8x128xf32>
    %c0_3 = arith.constant 0 : index
    %c0_4 = arith.constant 0 : index
    %4 = vector.load %arg3[%c0_3, %c0_4] : memref<1x128xf32, #tpu.memory_space<vmem>>, vector<1x128xf32>
    %5 = vector.broadcast %4 : vector<1x128xf32> to vector<8x128xf32>
    %6 = arith.addf %3, %5 : vector<8x128xf32>
    %7 = arith.truncf %6 : vector<8x128xf32> to vector<8x128xbf16>
    %c0_5 = arith.constant 0 : index
    %c0_6 = arith.constant 0 : index
    %8 = vector.load %arg4[%c0_5, %c0_6] : memref<8x128xbf16, #tpu.memory_space<vmem>>, vector<8x128xbf16>
    tpu.vector_store %arg4[%c0_5, %c0_6], %7 {strides = array<i32>} : memref<8x128xbf16, #tpu.memory_space<vmem>>, vector<8x128xbf16>,
    return
  }
  func.func @transform_0(%arg0: i32) -> (i32, i32) {
    %c0_i32 = arith.constant 0 : i32
    %c0_i32_0 = arith.constant 0 : i32
    return %arg0, %c0_i32 : i32, i32
  }
  func.func @transform_1(%arg0: i32) -> (i32, i32) {
    %c0_i32 = arith.constant 0 : i32
    %c0_i32_0 = arith.constant 0 : i32
    %c0_i32_1 = arith.constant 0 : i32
    return %c0_i32, %c0_i32_0 : i32, i32
  }
  func.func @transform_2(%arg0: i32) -> (i32, i32) {
    %c0_i32 = arith.constant 0 : i32
    %c0_i32_0 = arith.constant 0 : i32
    %c0_i32_1 = arith.constant 0 : i32
    return %c0_i32, %c0_i32_0 : i32, i32
  }
  func.func @transform_3(%arg0: i32) -> (i32, i32) {
    %c0_i32 = arith.constant 0 : i32
    %c0_i32_0 = arith.constant 0 : i32
    return %arg0, %c0_i32 : i32, i32
  }
}

module attributes {stable_mosaic.version = 11 : i64} {
  func.func @_linear_kernel(%arg0: i32, %arg1: memref<32x48xf32, #tpu.memory_space<vmem>>, %arg2: memref<48x128xbf16, #tpu.memory_space<vmem>>, %arg3: memref<1x128xf32, #tpu.memory_space<vmem>>, %arg4: memref<32x128xbf16, #tpu.memory_space<vmem>>) attributes {dimension_semantics = [#tpu.dimension_semantics<parallel>], iteration_bounds = array<i64: 1>, scalar_prefetch = 0 : i64, scratch_operands = 0 : i64, tpu.core_type = #tpu.core_type<tc>, window_params = [{transform_indices = @transform_0, window_bounds = array<i64: 32, 48>}, {pipeline_mode = #tpu.pipeline_mode<synchronous>, transform_indices = @transform_1, window_bounds = array<i64: 48, 128>}, {pipeline_mode = #tpu.pipeline_mode<synchronous>, transform_indices = @transform_2, window_bounds = array<i64: 1, 128>}, {transform_indices = @transform_3, window_bounds = array<i64: 32, 128>}]} {
    %c0 = arith.constant 0 : index
    %c0_0 = arith.constant 0 : index
    %0 = vector.load %arg1[%c0, %c0_0] : memref<32x48xf32, #tpu.memory_space<vmem>>, vector<32x48xf32>
    %1 = arith.truncf %0 : vector<32x48xf32> to vector<32x48xbf16>
    %c0_1 = arith.constant 0 : index
    %c0_2 = arith.constant 0 : index
    %2 = vector.load %arg2[%c0_1, %c0_2] : memref<48x128xbf16, #tpu.memory_space<vmem>>, vector<48x128xbf16>
    %cst = arith.constant dense<0.000000e+00> : vector<32x128xf32>
    %3 = tpu.matmul %1, %2, %cst {dimension_numbers = #tpu.dot_dimension_numbers<[1], [0], [0], [1], [0, 0, 1, 1], [], []>} : vector<32x48xbf16>, vector<48x128xbf16>, vector<32x128xf32> -> vector<32x128xf32>
    %c0_3 = arith.constant 0 : index
    %c0_4 = arith.constant 0 : index
    %4 = vector.load %arg3[%c0_3, %c0_4] : memref<1x128xf32, #tpu.memory_space<vmem>>, vector<1x128xf32>
    %5 = vector.broadcast %4 : vector<1x128xf32> to vector<32x128xf32>
    %6 = arith.addf %3, %5 : vector<32x128xf32>
    %7 = arith.truncf %6 : vector<32x128xf32> to vector<32x128xbf16>
    %c0_5 = arith.constant 0 : index
    %c0_6 = arith.constant 0 : index
    %8 = vector.load %arg4[%c0_5, %c0_6] : memref<32x128xbf16, #tpu.memory_space<vmem>>, vector<32x128xbf16>
    tpu.vector_store %arg4[%c0_5, %c0_6], %7 {strides = array<i32>} : memref<32x128xbf16, #tpu.memory_space<vmem>>, vector<32x128xbf16>,
    return
  }
  func.func @transform_0(%arg0: i32) -> (i32, i32) {
    %c0_i32 = arith.constant 0 : i32
    %c0_i32_0 = arith.constant 0 : i32
    return %arg0, %c0_i32 : i32, i32
  }
  func.func @transform_1(%arg0: i32) -> (i32, i32) {
    %c0_i32 = arith.constant 0 : i32
    %c0_i32_0 = arith.constant 0 : i32
    %c0_i32_1 = arith.constant 0 : i32
    return %c0_i32, %c0_i32_0 : i32, i32
  }
  func.func @transform_2(%arg0: i32) -> (i32, i32) {
    %c0_i32 = arith.constant 0 : i32
    %c0_i32_0 = arith.constant 0 : i32
    %c0_i32_1 = arith.constant 0 : i32
    return %c0_i32, %c0_i32_0 : i32, i32
  }
  func.func @transform_3(%arg0: i32) -> (i32, i32) {
    %c0_i32 = arith.constant 0 : i32
    %c0_i32_0 = arith.constant 0 : i32
    return %arg0, %c0_i32 : i32, i32
  }
}

module attributes {stable_mosaic.version = 11 : i64} {
  func.func @_linear_kernel(%arg0: i32, %arg1: memref<8x22xf32, #tpu.memory_space<vmem>>, %arg2: memref<22x128xbf16, #tpu.memory_space<vmem>>, %arg3: memref<1x128xf32, #tpu.memory_space<vmem>>, %arg4: memref<8x128xf32, #tpu.memory_space<vmem>>) attributes {dimension_semantics = [#tpu.dimension_semantics<parallel>], iteration_bounds = array<i64: 1>, scalar_prefetch = 0 : i64, scratch_operands = 0 : i64, tpu.core_type = #tpu.core_type<tc>, window_params = [{transform_indices = @transform_0, window_bounds = array<i64: 8, 22>}, {pipeline_mode = #tpu.pipeline_mode<synchronous>, transform_indices = @transform_1, window_bounds = array<i64: 22, 128>}, {pipeline_mode = #tpu.pipeline_mode<synchronous>, transform_indices = @transform_2, window_bounds = array<i64: 1, 128>}, {transform_indices = @transform_3, window_bounds = array<i64: 8, 128>}]} {
    %c0 = arith.constant 0 : index
    %c0_0 = arith.constant 0 : index
    %0 = vector.load %arg1[%c0, %c0_0] : memref<8x22xf32, #tpu.memory_space<vmem>>, vector<8x22xf32>
    %1 = arith.truncf %0 : vector<8x22xf32> to vector<8x22xbf16>
    %c0_1 = arith.constant 0 : index
    %c0_2 = arith.constant 0 : index
    %2 = vector.load %arg2[%c0_1, %c0_2] : memref<22x128xbf16, #tpu.memory_space<vmem>>, vector<22x128xbf16>
    %cst = arith.constant dense<0.000000e+00> : vector<8x128xf32>
    %3 = tpu.matmul %1, %2, %cst {dimension_numbers = #tpu.dot_dimension_numbers<[1], [0], [0], [1], [0, 0, 1, 1], [], []>} : vector<8x22xbf16>, vector<22x128xbf16>, vector<8x128xf32> -> vector<8x128xf32>
    %c0_3 = arith.constant 0 : index
    %c0_4 = arith.constant 0 : index
    %4 = vector.load %arg3[%c0_3, %c0_4] : memref<1x128xf32, #tpu.memory_space<vmem>>, vector<1x128xf32>
    %5 = vector.broadcast %4 : vector<1x128xf32> to vector<8x128xf32>
    %6 = arith.addf %3, %5 : vector<8x128xf32>
    %c0_5 = arith.constant 0 : index
    %c0_6 = arith.constant 0 : index
    %7 = vector.load %arg4[%c0_5, %c0_6] : memref<8x128xf32, #tpu.memory_space<vmem>>, vector<8x128xf32>
    tpu.vector_store %arg4[%c0_5, %c0_6], %6 {strides = array<i32>} : memref<8x128xf32, #tpu.memory_space<vmem>>, vector<8x128xf32>,
    return
  }
  func.func @transform_0(%arg0: i32) -> (i32, i32) {
    %c0_i32 = arith.constant 0 : i32
    %c0_i32_0 = arith.constant 0 : i32
    return %arg0, %c0_i32 : i32, i32
  }
  func.func @transform_1(%arg0: i32) -> (i32, i32) {
    %c0_i32 = arith.constant 0 : i32
    %c0_i32_0 = arith.constant 0 : i32
    %c0_i32_1 = arith.constant 0 : i32
    return %c0_i32, %c0_i32_0 : i32, i32
  }
  func.func @transform_2(%arg0: i32) -> (i32, i32) {
    %c0_i32 = arith.constant 0 : i32
    %c0_i32_0 = arith.constant 0 : i32
    %c0_i32_1 = arith.constant 0 : i32
    return %c0_i32, %c0_i32_0 : i32, i32
  }
  func.func @transform_3(%arg0: i32) -> (i32, i32) {
    %c0_i32 = arith.constant 0 : i32
    %c0_i32_0 = arith.constant 0 : i32
    return %arg0, %c0_i32 : i32, i32
  }
}

module attributes {stable_mosaic.version = 11 : i64} {
  func.func @_linear_kernel(%arg0: i32, %arg1: memref<32x25xf32, #tpu.memory_space<vmem>>, %arg2: memref<25x128xbf16, #tpu.memory_space<vmem>>, %arg3: memref<1x128xf32, #tpu.memory_space<vmem>>, %arg4: memref<32x128xbf16, #tpu.memory_space<vmem>>) attributes {dimension_semantics = [#tpu.dimension_semantics<parallel>], iteration_bounds = array<i64: 1>, scalar_prefetch = 0 : i64, scratch_operands = 0 : i64, tpu.core_type = #tpu.core_type<tc>, window_params = [{transform_indices = @transform_0, window_bounds = array<i64: 32, 25>}, {pipeline_mode = #tpu.pipeline_mode<synchronous>, transform_indices = @transform_1, window_bounds = array<i64: 25, 128>}, {pipeline_mode = #tpu.pipeline_mode<synchronous>, transform_indices = @transform_2, window_bounds = array<i64: 1, 128>}, {transform_indices = @transform_3, window_bounds = array<i64: 32, 128>}]} {
    %c0 = arith.constant 0 : index
    %c0_0 = arith.constant 0 : index
    %0 = vector.load %arg1[%c0, %c0_0] : memref<32x25xf32, #tpu.memory_space<vmem>>, vector<32x25xf32>
    %1 = arith.truncf %0 : vector<32x25xf32> to vector<32x25xbf16>
    %c0_1 = arith.constant 0 : index
    %c0_2 = arith.constant 0 : index
    %2 = vector.load %arg2[%c0_1, %c0_2] : memref<25x128xbf16, #tpu.memory_space<vmem>>, vector<25x128xbf16>
    %cst = arith.constant dense<0.000000e+00> : vector<32x128xf32>
    %3 = tpu.matmul %1, %2, %cst {dimension_numbers = #tpu.dot_dimension_numbers<[1], [0], [0], [1], [0, 0, 1, 1], [], []>} : vector<32x25xbf16>, vector<25x128xbf16>, vector<32x128xf32> -> vector<32x128xf32>
    %c0_3 = arith.constant 0 : index
    %c0_4 = arith.constant 0 : index
    %4 = vector.load %arg3[%c0_3, %c0_4] : memref<1x128xf32, #tpu.memory_space<vmem>>, vector<1x128xf32>
    %5 = vector.broadcast %4 : vector<1x128xf32> to vector<32x128xf32>
    %6 = arith.addf %3, %5 : vector<32x128xf32>
    %7 = arith.truncf %6 : vector<32x128xf32> to vector<32x128xbf16>
    %c0_5 = arith.constant 0 : index
    %c0_6 = arith.constant 0 : index
    %8 = vector.load %arg4[%c0_5, %c0_6] : memref<32x128xbf16, #tpu.memory_space<vmem>>, vector<32x128xbf16>
    tpu.vector_store %arg4[%c0_5, %c0_6], %7 {strides = array<i32>} : memref<32x128xbf16, #tpu.memory_space<vmem>>, vector<32x128xbf16>,
    return
  }
  func.func @transform_0(%arg0: i32) -> (i32, i32) {
    %c0_i32 = arith.constant 0 : i32
    %c0_i32_0 = arith.constant 0 : i32
    return %arg0, %c0_i32 : i32, i32
  }
  func.func @transform_1(%arg0: i32) -> (i32, i32) {
    %c0_i32 = arith.constant 0 : i32
    %c0_i32_0 = arith.constant 0 : i32
    %c0_i32_1 = arith.constant 0 : i32
    return %c0_i32, %c0_i32_0 : i32, i32
  }
  func.func @transform_2(%arg0: i32) -> (i32, i32) {
    %c0_i32 = arith.constant 0 : i32
    %c0_i32_0 = arith.constant 0 : i32
    %c0_i32_1 = arith.constant 0 : i32
    return %c0_i32, %c0_i32_0 : i32, i32
  }
  func.func @transform_3(%arg0: i32) -> (i32, i32) {
    %c0_i32 = arith.constant 0 : i32
    %c0_i32_0 = arith.constant 0 : i32
    return %arg0, %c0_i32 : i32, i32
  }
}

module attributes {stable_mosaic.version = 11 : i64} {
  func.func @_linear_kernel(%arg0: i32, %arg1: memref<8x128xbf16, #tpu.memory_space<vmem>>, %arg2: memref<128x128xbf16, #tpu.memory_space<vmem>>, %arg3: memref<1x128xf32, #tpu.memory_space<vmem>>, %arg4: memref<8x128xbf16, #tpu.memory_space<vmem>>) attributes {dimension_semantics = [#tpu.dimension_semantics<parallel>], iteration_bounds = array<i64: 1>, scalar_prefetch = 0 : i64, scratch_operands = 0 : i64, tpu.core_type = #tpu.core_type<tc>, window_params = [{transform_indices = @transform_0, window_bounds = array<i64: 8, 128>}, {pipeline_mode = #tpu.pipeline_mode<synchronous>, transform_indices = @transform_1, window_bounds = array<i64: 128, 128>}, {pipeline_mode = #tpu.pipeline_mode<synchronous>, transform_indices = @transform_2, window_bounds = array<i64: 1, 128>}, {transform_indices = @transform_3, window_bounds = array<i64: 8, 128>}]} {
    %c0 = arith.constant 0 : index
    %c0_0 = arith.constant 0 : index
    %0 = vector.load %arg1[%c0, %c0_0] : memref<8x128xbf16, #tpu.memory_space<vmem>>, vector<8x128xbf16>
    %c0_1 = arith.constant 0 : index
    %c0_2 = arith.constant 0 : index
    %1 = vector.load %arg2[%c0_1, %c0_2] : memref<128x128xbf16, #tpu.memory_space<vmem>>, vector<128x128xbf16>
    %cst = arith.constant dense<0.000000e+00> : vector<8x128xf32>
    %2 = tpu.matmul %0, %1, %cst {dimension_numbers = #tpu.dot_dimension_numbers<[1], [0], [0], [1], [0, 0, 1, 1], [], []>} : vector<8x128xbf16>, vector<128x128xbf16>, vector<8x128xf32> -> vector<8x128xf32>
    %c0_3 = arith.constant 0 : index
    %c0_4 = arith.constant 0 : index
    %3 = vector.load %arg3[%c0_3, %c0_4] : memref<1x128xf32, #tpu.memory_space<vmem>>, vector<1x128xf32>
    %4 = vector.broadcast %3 : vector<1x128xf32> to vector<8x128xf32>
    %5 = arith.addf %2, %4 : vector<8x128xf32>
    %6 = arith.truncf %5 : vector<8x128xf32> to vector<8x128xbf16>
    %c0_5 = arith.constant 0 : index
    %c0_6 = arith.constant 0 : index
    %7 = vector.load %arg4[%c0_5, %c0_6] : memref<8x128xbf16, #tpu.memory_space<vmem>>, vector<8x128xbf16>
    tpu.vector_store %arg4[%c0_5, %c0_6], %6 {strides = array<i32>} : memref<8x128xbf16, #tpu.memory_space<vmem>>, vector<8x128xbf16>,
    return
  }
  func.func @transform_0(%arg0: i32) -> (i32, i32) {
    %c0_i32 = arith.constant 0 : i32
    %c0_i32_0 = arith.constant 0 : i32
    return %arg0, %c0_i32 : i32, i32
  }
  func.func @transform_1(%arg0: i32) -> (i32, i32) {
    %c0_i32 = arith.constant 0 : i32
    %c0_i32_0 = arith.constant 0 : i32
    %c0_i32_1 = arith.constant 0 : i32
    return %c0_i32, %c0_i32_0 : i32, i32
  }
  func.func @transform_2(%arg0: i32) -> (i32, i32) {
    %c0_i32 = arith.constant 0 : i32
    %c0_i32_0 = arith.constant 0 : i32
    %c0_i32_1 = arith.constant 0 : i32
    return %c0_i32, %c0_i32_0 : i32, i32
  }
  func.func @transform_3(%arg0: i32) -> (i32, i32) {
    %c0_i32 = arith.constant 0 : i32
    %c0_i32_0 = arith.constant 0 : i32
    return %arg0, %c0_i32 : i32, i32
  }
}

module attributes {stable_mosaic.version = 11 : i64} {
  func.func @_linear_kernel(%arg0: i32, %arg1: memref<32x128xbf16, #tpu.memory_space<vmem>>, %arg2: memref<128x128xbf16, #tpu.memory_space<vmem>>, %arg3: memref<1x128xf32, #tpu.memory_space<vmem>>, %arg4: memref<32x128xbf16, #tpu.memory_space<vmem>>) attributes {dimension_semantics = [#tpu.dimension_semantics<parallel>], iteration_bounds = array<i64: 1>, scalar_prefetch = 0 : i64, scratch_operands = 0 : i64, tpu.core_type = #tpu.core_type<tc>, window_params = [{transform_indices = @transform_0, window_bounds = array<i64: 32, 128>}, {pipeline_mode = #tpu.pipeline_mode<synchronous>, transform_indices = @transform_1, window_bounds = array<i64: 128, 128>}, {pipeline_mode = #tpu.pipeline_mode<synchronous>, transform_indices = @transform_2, window_bounds = array<i64: 1, 128>}, {transform_indices = @transform_3, window_bounds = array<i64: 32, 128>}]} {
    %c0 = arith.constant 0 : index
    %c0_0 = arith.constant 0 : index
    %0 = vector.load %arg1[%c0, %c0_0] : memref<32x128xbf16, #tpu.memory_space<vmem>>, vector<32x128xbf16>
    %c0_1 = arith.constant 0 : index
    %c0_2 = arith.constant 0 : index
    %1 = vector.load %arg2[%c0_1, %c0_2] : memref<128x128xbf16, #tpu.memory_space<vmem>>, vector<128x128xbf16>
    %cst = arith.constant dense<0.000000e+00> : vector<32x128xf32>
    %2 = tpu.matmul %0, %1, %cst {dimension_numbers = #tpu.dot_dimension_numbers<[1], [0], [0], [1], [0, 0, 1, 1], [], []>} : vector<32x128xbf16>, vector<128x128xbf16>, vector<32x128xf32> -> vector<32x128xf32>
    %c0_3 = arith.constant 0 : index
    %c0_4 = arith.constant 0 : index
    %3 = vector.load %arg3[%c0_3, %c0_4] : memref<1x128xf32, #tpu.memory_space<vmem>>, vector<1x128xf32>
    %4 = vector.broadcast %3 : vector<1x128xf32> to vector<32x128xf32>
    %5 = arith.addf %2, %4 : vector<32x128xf32>
    %6 = arith.mulf %5, %5 : vector<32x128xf32>
    %7 = arith.mulf %5, %6 : vector<32x128xf32>
    %cst_5 = arith.constant 4.471500e-02 : f32
    %8 = vector.broadcast %cst_5 : f32 to vector<32x128xf32>
    %9 = arith.mulf %8, %7 : vector<32x128xf32>
    %10 = arith.addf %5, %9 : vector<32x128xf32>
    %cst_6 = arith.constant 0.797884583 : f32
    %11 = vector.broadcast %cst_6 : f32 to vector<32x128xf32>
    %12 = arith.mulf %11, %10 : vector<32x128xf32>
    %13 = math.tanh %12 : vector<32x128xf32>
    %cst_7 = arith.constant 1.000000e+00 : f32
    %14 = vector.broadcast %cst_7 : f32 to vector<32x128xf32>
    %15 = arith.addf %14, %13 : vector<32x128xf32>
    %cst_8 = arith.constant 5.000000e-01 : f32
    %16 = vector.broadcast %cst_8 : f32 to vector<32x128xf32>
    %17 = arith.mulf %16, %15 : vector<32x128xf32>
    %18 = arith.mulf %5, %17 : vector<32x128xf32>
    %19 = arith.extf %0 : vector<32x128xbf16> to vector<32x128xf32>
    %20 = arith.addf %19, %18 : vector<32x128xf32>
    %21 = arith.truncf %20 : vector<32x128xf32> to vector<32x128xbf16>
    %c0_9 = arith.constant 0 : index
    %c0_10 = arith.constant 0 : index
    %22 = vector.load %arg4[%c0_9, %c0_10] : memref<32x128xbf16, #tpu.memory_space<vmem>>, vector<32x128xbf16>
    tpu.vector_store %arg4[%c0_9, %c0_10], %21 {strides = array<i32>} : memref<32x128xbf16, #tpu.memory_space<vmem>>, vector<32x128xbf16>,
    return
  }
  func.func @transform_0(%arg0: i32) -> (i32, i32) {
    %c0_i32 = arith.constant 0 : i32
    %c0_i32_0 = arith.constant 0 : i32
    return %arg0, %c0_i32 : i32, i32
  }
  func.func @transform_1(%arg0: i32) -> (i32, i32) {
    %c0_i32 = arith.constant 0 : i32
    %c0_i32_0 = arith.constant 0 : i32
    %c0_i32_1 = arith.constant 0 : i32
    return %c0_i32, %c0_i32_0 : i32, i32
  }
  func.func @transform_2(%arg0: i32) -> (i32, i32) {
    %c0_i32 = arith.constant 0 : i32
    %c0_i32_0 = arith.constant 0 : i32
    %c0_i32_1 = arith.constant 0 : i32
    return %c0_i32, %c0_i32_0 : i32, i32
  }
  func.func @transform_3(%arg0: i32) -> (i32, i32) {
    %c0_i32 = arith.constant 0 : i32
    %c0_i32_0 = arith.constant 0 : i32
    return %arg0, %c0_i32 : i32, i32
  }
}

module attributes {stable_mosaic.version = 11 : i64} {
  func.func @_linear_kernel(%arg0: i32, %arg1: memref<16x52xf32, #tpu.memory_space<vmem>>, %arg2: memref<52x128xbf16, #tpu.memory_space<vmem>>, %arg3: memref<1x128xf32, #tpu.memory_space<vmem>>, %arg4: memref<16x128xf32, #tpu.memory_space<vmem>>) attributes {dimension_semantics = [#tpu.dimension_semantics<parallel>], iteration_bounds = array<i64: 1>, scalar_prefetch = 0 : i64, scratch_operands = 0 : i64, tpu.core_type = #tpu.core_type<tc>, window_params = [{transform_indices = @transform_0, window_bounds = array<i64: 16, 52>}, {pipeline_mode = #tpu.pipeline_mode<synchronous>, transform_indices = @transform_1, window_bounds = array<i64: 52, 128>}, {pipeline_mode = #tpu.pipeline_mode<synchronous>, transform_indices = @transform_2, window_bounds = array<i64: 1, 128>}, {transform_indices = @transform_3, window_bounds = array<i64: 16, 128>}]} {
    %c0 = arith.constant 0 : index
    %c0_0 = arith.constant 0 : index
    %0 = vector.load %arg1[%c0, %c0_0] : memref<16x52xf32, #tpu.memory_space<vmem>>, vector<16x52xf32>
    %1 = arith.truncf %0 : vector<16x52xf32> to vector<16x52xbf16>
    %c0_1 = arith.constant 0 : index
    %c0_2 = arith.constant 0 : index
    %2 = vector.load %arg2[%c0_1, %c0_2] : memref<52x128xbf16, #tpu.memory_space<vmem>>, vector<52x128xbf16>
    %cst = arith.constant dense<0.000000e+00> : vector<16x128xf32>
    %3 = tpu.matmul %1, %2, %cst {dimension_numbers = #tpu.dot_dimension_numbers<[1], [0], [0], [1], [0, 0, 1, 1], [], []>} : vector<16x52xbf16>, vector<52x128xbf16>, vector<16x128xf32> -> vector<16x128xf32>
    %c0_3 = arith.constant 0 : index
    %c0_4 = arith.constant 0 : index
    %4 = vector.load %arg3[%c0_3, %c0_4] : memref<1x128xf32, #tpu.memory_space<vmem>>, vector<1x128xf32>
    %5 = vector.broadcast %4 : vector<1x128xf32> to vector<16x128xf32>
    %6 = arith.addf %3, %5 : vector<16x128xf32>
    %c0_5 = arith.constant 0 : index
    %c0_6 = arith.constant 0 : index
    %7 = vector.load %arg4[%c0_5, %c0_6] : memref<16x128xf32, #tpu.memory_space<vmem>>, vector<16x128xf32>
    tpu.vector_store %arg4[%c0_5, %c0_6], %6 {strides = array<i32>} : memref<16x128xf32, #tpu.memory_space<vmem>>, vector<16x128xf32>,
    return
  }
  func.func @transform_0(%arg0: i32) -> (i32, i32) {
    %c0_i32 = arith.constant 0 : i32
    %c0_i32_0 = arith.constant 0 : i32
    return %arg0, %c0_i32 : i32, i32
  }
  func.func @transform_1(%arg0: i32) -> (i32, i32) {
    %c0_i32 = arith.constant 0 : i32
    %c0_i32_0 = arith.constant 0 : i32
    %c0_i32_1 = arith.constant 0 : i32
    return %c0_i32, %c0_i32_0 : i32, i32
  }
  func.func @transform_2(%arg0: i32) -> (i32, i32) {
    %c0_i32 = arith.constant 0 : i32
    %c0_i32_0 = arith.constant 0 : i32
    %c0_i32_1 = arith.constant 0 : i32
    return %c0_i32, %c0_i32_0 : i32, i32
  }
  func.func @transform_3(%arg0: i32) -> (i32, i32) {
    %c0_i32 = arith.constant 0 : i32
    %c0_i32_0 = arith.constant 0 : i32
    return %arg0, %c0_i32 : i32, i32
  }
}

module attributes {stable_mosaic.version = 11 : i64} {
  func.func @_dual_residual_kernel(%arg0: i32, %arg1: memref<8x128xbf16, #tpu.memory_space<vmem>>, %arg2: memref<8x128xbf16, #tpu.memory_space<vmem>>, %arg3: memref<128x128xbf16, #tpu.memory_space<vmem>>, %arg4: memref<128x128xbf16, #tpu.memory_space<vmem>>, %arg5: memref<1x128xf32, #tpu.memory_space<vmem>>, %arg6: memref<8x128xbf16, #tpu.memory_space<vmem>>) attributes {dimension_semantics = [#tpu.dimension_semantics<parallel>], iteration_bounds = array<i64: 1>, scalar_prefetch = 0 : i64, scratch_operands = 0 : i64, tpu.core_type = #tpu.core_type<tc>, window_params = [{transform_indices = @transform_0, window_bounds = array<i64: 8, 128>}, {transform_indices = @transform_1, window_bounds = array<i64: 8, 128>}, {pipeline_mode = #tpu.pipeline_mode<synchronous>, transform_indices = @transform_2, window_bounds = array<i64: 128, 128>}, {pipeline_mode = #tpu.pipeline_mode<synchronous>, transform_indices = @transform_3, window_bounds = array<i64: 128, 128>}, {pipeline_mode = #tpu.pipeline_mode<synchronous>, transform_indices = @transform_4, window_bounds = array<i64: 1, 128>}, {transform_indices = @transform_5, window_bounds = array<i64: 8, 128>}]} {
    %c0 = arith.constant 0 : index
    %c0_0 = arith.constant 0 : index
    %0 = vector.load %arg1[%c0, %c0_0] : memref<8x128xbf16, #tpu.memory_space<vmem>>, vector<8x128xbf16>
    %c0_1 = arith.constant 0 : index
    %c0_2 = arith.constant 0 : index
    %1 = vector.load %arg3[%c0_1, %c0_2] : memref<128x128xbf16, #tpu.memory_space<vmem>>, vector<128x128xbf16>
    %cst = arith.constant dense<0.000000e+00> : vector<8x128xf32>
    %2 = tpu.matmul %0, %1, %cst {dimension_numbers = #tpu.dot_dimension_numbers<[1], [0], [0], [1], [0, 0, 1, 1], [], []>} : vector<8x128xbf16>, vector<128x128xbf16>, vector<8x128xf32> -> vector<8x128xf32>
    %c0_3 = arith.constant 0 : index
    %c0_4 = arith.constant 0 : index
    %3 = vector.load %arg2[%c0_3, %c0_4] : memref<8x128xbf16, #tpu.memory_space<vmem>>, vector<8x128xbf16>
    %c0_5 = arith.constant 0 : index
    %c0_6 = arith.constant 0 : index
    %4 = vector.load %arg4[%c0_5, %c0_6] : memref<128x128xbf16, #tpu.memory_space<vmem>>, vector<128x128xbf16>
    %cst_7 = arith.constant dense<0.000000e+00> : vector<8x128xf32>
    %5 = tpu.matmul %3, %4, %cst_7 {dimension_numbers = #tpu.dot_dimension_numbers<[1], [0], [0], [1], [0, 0, 1, 1], [], []>} : vector<8x128xbf16>, vector<128x128xbf16>, vector<8x128xf32> -> vector<8x128xf32>
    %6 = arith.addf %2, %5 : vector<8x128xf32>
    %c0_8 = arith.constant 0 : index
    %c0_9 = arith.constant 0 : index
    %7 = vector.load %arg5[%c0_8, %c0_9] : memref<1x128xf32, #tpu.memory_space<vmem>>, vector<1x128xf32>
    %8 = vector.broadcast %7 : vector<1x128xf32> to vector<8x128xf32>
    %9 = arith.addf %6, %8 : vector<8x128xf32>
    %10 = math.tanh %9 : vector<8x128xf32>
    %11 = arith.extf %0 : vector<8x128xbf16> to vector<8x128xf32>
    %12 = arith.addf %11, %10 : vector<8x128xf32>
    %13 = arith.truncf %12 : vector<8x128xf32> to vector<8x128xbf16>
    %c0_10 = arith.constant 0 : index
    %c0_11 = arith.constant 0 : index
    %14 = vector.load %arg6[%c0_10, %c0_11] : memref<8x128xbf16, #tpu.memory_space<vmem>>, vector<8x128xbf16>
    tpu.vector_store %arg6[%c0_10, %c0_11], %13 {strides = array<i32>} : memref<8x128xbf16, #tpu.memory_space<vmem>>, vector<8x128xbf16>,
    return
  }
  func.func @transform_0(%arg0: i32) -> (i32, i32) {
    %c0_i32 = arith.constant 0 : i32
    %c0_i32_0 = arith.constant 0 : i32
    return %arg0, %c0_i32 : i32, i32
  }
  func.func @transform_1(%arg0: i32) -> (i32, i32) {
    %c0_i32 = arith.constant 0 : i32
    %c0_i32_0 = arith.constant 0 : i32
    return %arg0, %c0_i32 : i32, i32
  }
  func.func @transform_2(%arg0: i32) -> (i32, i32) {
    %c0_i32 = arith.constant 0 : i32
    %c0_i32_0 = arith.constant 0 : i32
    %c0_i32_1 = arith.constant 0 : i32
    return %c0_i32, %c0_i32_0 : i32, i32
  }
  func.func @transform_3(%arg0: i32) -> (i32, i32) {
    %c0_i32 = arith.constant 0 : i32
    %c0_i32_0 = arith.constant 0 : i32
    %c0_i32_1 = arith.constant 0 : i32
    return %c0_i32, %c0_i32_0 : i32, i32
  }
  func.func @transform_4(%arg0: i32) -> (i32, i32) {
    %c0_i32 = arith.constant 0 : i32
    %c0_i32_0 = arith.constant 0 : i32
    %c0_i32_1 = arith.constant 0 : i32
    return %c0_i32, %c0_i32_0 : i32, i32
  }
  func.func @transform_5(%arg0: i32) -> (i32, i32) {
    %c0_i32 = arith.constant 0 : i32
    %c0_i32_0 = arith.constant 0 : i32
    return %arg0, %c0_i32 : i32, i32
  }
}

module attributes {stable_mosaic.version = 11 : i64} {
  func.func @_linear_kernel(%arg0: i32, %arg1: memref<32x36xf32, #tpu.memory_space<vmem>>, %arg2: memref<36x128xbf16, #tpu.memory_space<vmem>>, %arg3: memref<1x128xf32, #tpu.memory_space<vmem>>, %arg4: memref<32x128xf32, #tpu.memory_space<vmem>>) attributes {dimension_semantics = [#tpu.dimension_semantics<parallel>], iteration_bounds = array<i64: 2>, scalar_prefetch = 0 : i64, scratch_operands = 0 : i64, tpu.core_type = #tpu.core_type<tc>, window_params = [{transform_indices = @transform_0, window_bounds = array<i64: 32, 36>}, {pipeline_mode = #tpu.pipeline_mode<synchronous>, transform_indices = @transform_1, window_bounds = array<i64: 36, 128>}, {pipeline_mode = #tpu.pipeline_mode<synchronous>, transform_indices = @transform_2, window_bounds = array<i64: 1, 128>}, {transform_indices = @transform_3, window_bounds = array<i64: 32, 128>}]} {
    %c0 = arith.constant 0 : index
    %c0_0 = arith.constant 0 : index
    %0 = vector.load %arg1[%c0, %c0_0] : memref<32x36xf32, #tpu.memory_space<vmem>>, vector<32x36xf32>
    %1 = arith.truncf %0 : vector<32x36xf32> to vector<32x36xbf16>
    %c0_1 = arith.constant 0 : index
    %c0_2 = arith.constant 0 : index
    %2 = vector.load %arg2[%c0_1, %c0_2] : memref<36x128xbf16, #tpu.memory_space<vmem>>, vector<36x128xbf16>
    %cst = arith.constant dense<0.000000e+00> : vector<32x128xf32>
    %3 = tpu.matmul %1, %2, %cst {dimension_numbers = #tpu.dot_dimension_numbers<[1], [0], [0], [1], [0, 0, 1, 1], [], []>} : vector<32x36xbf16>, vector<36x128xbf16>, vector<32x128xf32> -> vector<32x128xf32>
    %c0_3 = arith.constant 0 : index
    %c0_4 = arith.constant 0 : index
    %4 = vector.load %arg3[%c0_3, %c0_4] : memref<1x128xf32, #tpu.memory_space<vmem>>, vector<1x128xf32>
    %5 = vector.broadcast %4 : vector<1x128xf32> to vector<32x128xf32>
    %6 = arith.addf %3, %5 : vector<32x128xf32>
    %c0_5 = arith.constant 0 : index
    %c0_6 = arith.constant 0 : index
    %7 = vector.load %arg4[%c0_5, %c0_6] : memref<32x128xf32, #tpu.memory_space<vmem>>, vector<32x128xf32>
    tpu.vector_store %arg4[%c0_5, %c0_6], %6 {strides = array<i32>} : memref<32x128xf32, #tpu.memory_space<vmem>>, vector<32x128xf32>,
    return
  }
  func.func @transform_0(%arg0: i32) -> (i32, i32) {
    %c0_i32 = arith.constant 0 : i32
    %c0_i32_0 = arith.constant 0 : i32
    return %arg0, %c0_i32 : i32, i32
  }
  func.func @transform_1(%arg0: i32) -> (i32, i32) {
    %c0_i32 = arith.constant 0 : i32
    %c0_i32_0 = arith.constant 0 : i32
    %c0_i32_1 = arith.constant 0 : i32
    return %c0_i32, %c0_i32_0 : i32, i32
  }
  func.func @transform_2(%arg0: i32) -> (i32, i32) {
    %c0_i32 = arith.constant 0 : i32
    %c0_i32_0 = arith.constant 0 : i32
    %c0_i32_1 = arith.constant 0 : i32
    return %c0_i32, %c0_i32_0 : i32, i32
  }
  func.func @transform_3(%arg0: i32) -> (i32, i32) {
    %c0_i32 = arith.constant 0 : i32
    %c0_i32_0 = arith.constant 0 : i32
    return %arg0, %c0_i32 : i32, i32
  }
}

module attributes {stable_mosaic.version = 11 : i64} {
  func.func @_linear_kernel(%arg0: i32, %arg1: memref<32x128xbf16, #tpu.memory_space<vmem>>, %arg2: memref<128x21xbf16, #tpu.memory_space<vmem>>, %arg3: memref<1x21xf32, #tpu.memory_space<vmem>>, %arg4: memref<32x21xf32, #tpu.memory_space<vmem>>) attributes {dimension_semantics = [#tpu.dimension_semantics<parallel>], iteration_bounds = array<i64: 1>, scalar_prefetch = 0 : i64, scratch_operands = 0 : i64, tpu.core_type = #tpu.core_type<tc>, window_params = [{transform_indices = @transform_0, window_bounds = array<i64: 32, 128>}, {pipeline_mode = #tpu.pipeline_mode<synchronous>, transform_indices = @transform_1, window_bounds = array<i64: 128, 21>}, {pipeline_mode = #tpu.pipeline_mode<synchronous>, transform_indices = @transform_2, window_bounds = array<i64: 1, 21>}, {transform_indices = @transform_3, window_bounds = array<i64: 32, 21>}]} {
    %c0 = arith.constant 0 : index
    %c0_0 = arith.constant 0 : index
    %0 = vector.load %arg1[%c0, %c0_0] : memref<32x128xbf16, #tpu.memory_space<vmem>>, vector<32x128xbf16>
    %c0_1 = arith.constant 0 : index
    %c0_2 = arith.constant 0 : index
    %1 = vector.load %arg2[%c0_1, %c0_2] : memref<128x21xbf16, #tpu.memory_space<vmem>>, vector<128x21xbf16>
    %cst = arith.constant dense<0.000000e+00> : vector<32x21xf32>
    %2 = tpu.matmul %0, %1, %cst {dimension_numbers = #tpu.dot_dimension_numbers<[1], [0], [0], [1], [0, 0, 1, 1], [], []>} : vector<32x128xbf16>, vector<128x21xbf16>, vector<32x21xf32> -> vector<32x21xf32>
    %c0_3 = arith.constant 0 : index
    %c0_4 = arith.constant 0 : index
    %3 = vector.load %arg3[%c0_3, %c0_4] : memref<1x21xf32, #tpu.memory_space<vmem>>, vector<1x21xf32>
    %4 = vector.broadcast %3 : vector<1x21xf32> to vector<32x21xf32>
    %5 = arith.addf %2, %4 : vector<32x21xf32>
    %c0_5 = arith.constant 0 : index
    %c0_6 = arith.constant 0 : index
    %6 = vector.load %arg4[%c0_5, %c0_6] : memref<32x21xf32, #tpu.memory_space<vmem>>, vector<32x21xf32>
    tpu.vector_store %arg4[%c0_5, %c0_6], %5 {strides = array<i32>} : memref<32x21xf32, #tpu.memory_space<vmem>>, vector<32x21xf32>,
    return
  }
  func.func @transform_0(%arg0: i32) -> (i32, i32) {
    %c0_i32 = arith.constant 0 : i32
    %c0_i32_0 = arith.constant 0 : i32
    return %arg0, %c0_i32 : i32, i32
  }
  func.func @transform_1(%arg0: i32) -> (i32, i32) {
    %c0_i32 = arith.constant 0 : i32
    %c0_i32_0 = arith.constant 0 : i32
    %c0_i32_1 = arith.constant 0 : i32
    return %c0_i32, %c0_i32_0 : i32, i32
  }
  func.func @transform_2(%arg0: i32) -> (i32, i32) {
    %c0_i32 = arith.constant 0 : i32
    %c0_i32_0 = arith.constant 0 : i32
    %c0_i32_1 = arith.constant 0 : i32
    return %c0_i32, %c0_i32_0 : i32, i32
  }
  func.func @transform_3(%arg0: i32) -> (i32, i32) {
    %c0_i32 = arith.constant 0 : i32
    %c0_i32_0 = arith.constant 0 : i32
    return %arg0, %c0_i32 : i32, i32
  }
}

module attributes {stable_mosaic.version = 11 : i64} {
  func.func @_linear_kernel(%arg0: i32, %arg1: memref<8x128xbf16, #tpu.memory_space<vmem>>, %arg2: memref<128x50xbf16, #tpu.memory_space<vmem>>, %arg3: memref<1x50xf32, #tpu.memory_space<vmem>>, %arg4: memref<8x50xf32, #tpu.memory_space<vmem>>) attributes {dimension_semantics = [#tpu.dimension_semantics<parallel>], iteration_bounds = array<i64: 1>, scalar_prefetch = 0 : i64, scratch_operands = 0 : i64, tpu.core_type = #tpu.core_type<tc>, window_params = [{transform_indices = @transform_0, window_bounds = array<i64: 8, 128>}, {pipeline_mode = #tpu.pipeline_mode<synchronous>, transform_indices = @transform_1, window_bounds = array<i64: 128, 50>}, {pipeline_mode = #tpu.pipeline_mode<synchronous>, transform_indices = @transform_2, window_bounds = array<i64: 1, 50>}, {transform_indices = @transform_3, window_bounds = array<i64: 8, 50>}]} {
    %c0 = arith.constant 0 : index
    %c0_0 = arith.constant 0 : index
    %0 = vector.load %arg1[%c0, %c0_0] : memref<8x128xbf16, #tpu.memory_space<vmem>>, vector<8x128xbf16>
    %c0_1 = arith.constant 0 : index
    %c0_2 = arith.constant 0 : index
    %1 = vector.load %arg2[%c0_1, %c0_2] : memref<128x50xbf16, #tpu.memory_space<vmem>>, vector<128x50xbf16>
    %cst = arith.constant dense<0.000000e+00> : vector<8x50xf32>
    %2 = tpu.matmul %0, %1, %cst {dimension_numbers = #tpu.dot_dimension_numbers<[1], [0], [0], [1], [0, 0, 1, 1], [], []>} : vector<8x128xbf16>, vector<128x50xbf16>, vector<8x50xf32> -> vector<8x50xf32>
    %c0_3 = arith.constant 0 : index
    %c0_4 = arith.constant 0 : index
    %3 = vector.load %arg3[%c0_3, %c0_4] : memref<1x50xf32, #tpu.memory_space<vmem>>, vector<1x50xf32>
    %4 = vector.broadcast %3 : vector<1x50xf32> to vector<8x50xf32>
    %5 = arith.addf %2, %4 : vector<8x50xf32>
    %c0_5 = arith.constant 0 : index
    %c0_6 = arith.constant 0 : index
    %6 = vector.load %arg4[%c0_5, %c0_6] : memref<8x50xf32, #tpu.memory_space<vmem>>, vector<8x50xf32>
    tpu.vector_store %arg4[%c0_5, %c0_6], %5 {strides = array<i32>} : memref<8x50xf32, #tpu.memory_space<vmem>>, vector<8x50xf32>,
    return
  }
  func.func @transform_0(%arg0: i32) -> (i32, i32) {
    %c0_i32 = arith.constant 0 : i32
    %c0_i32_0 = arith.constant 0 : i32
    return %arg0, %c0_i32 : i32, i32
  }
  func.func @transform_1(%arg0: i32) -> (i32, i32) {
    %c0_i32 = arith.constant 0 : i32
    %c0_i32_0 = arith.constant 0 : i32
    %c0_i32_1 = arith.constant 0 : i32
    return %c0_i32, %c0_i32_0 : i32, i32
  }
  func.func @transform_2(%arg0: i32) -> (i32, i32) {
    %c0_i32 = arith.constant 0 : i32
    %c0_i32_0 = arith.constant 0 : i32
    %c0_i32_1 = arith.constant 0 : i32
    return %c0_i32, %c0_i32_0 : i32, i32
  }
  func.func @transform_3(%arg0: i32) -> (i32, i32) {
    %c0_i32 = arith.constant 0 : i32
    %c0_i32_0 = arith.constant 0 : i32
    return %arg0, %c0_i32 : i32, i32
  }
}

module attributes {stable_mosaic.version = 11 : i64} {
  func.func @_linear_kernel(%arg0: i32, %arg1: memref<8x128xbf16, #tpu.memory_space<vmem>>, %arg2: memref<128x64xbf16, #tpu.memory_space<vmem>>, %arg3: memref<1x64xf32, #tpu.memory_space<vmem>>, %arg4: memref<8x64xbf16, #tpu.memory_space<vmem>>) attributes {dimension_semantics = [#tpu.dimension_semantics<parallel>], iteration_bounds = array<i64: 1>, scalar_prefetch = 0 : i64, scratch_operands = 0 : i64, tpu.core_type = #tpu.core_type<tc>, window_params = [{transform_indices = @transform_0, window_bounds = array<i64: 8, 128>}, {pipeline_mode = #tpu.pipeline_mode<synchronous>, transform_indices = @transform_1, window_bounds = array<i64: 128, 64>}, {pipeline_mode = #tpu.pipeline_mode<synchronous>, transform_indices = @transform_2, window_bounds = array<i64: 1, 64>}, {transform_indices = @transform_3, window_bounds = array<i64: 8, 64>}]} {
    %c0 = arith.constant 0 : index
    %c0_0 = arith.constant 0 : index
    %0 = vector.load %arg1[%c0, %c0_0] : memref<8x128xbf16, #tpu.memory_space<vmem>>, vector<8x128xbf16>
    %c0_1 = arith.constant 0 : index
    %c0_2 = arith.constant 0 : index
    %1 = vector.load %arg2[%c0_1, %c0_2] : memref<128x64xbf16, #tpu.memory_space<vmem>>, vector<128x64xbf16>
    %cst = arith.constant dense<0.000000e+00> : vector<8x64xf32>
    %2 = tpu.matmul %0, %1, %cst {dimension_numbers = #tpu.dot_dimension_numbers<[1], [0], [0], [1], [0, 0, 1, 1], [], []>} : vector<8x128xbf16>, vector<128x64xbf16>, vector<8x64xf32> -> vector<8x64xf32>
    %c0_3 = arith.constant 0 : index
    %c0_4 = arith.constant 0 : index
    %3 = vector.load %arg3[%c0_3, %c0_4] : memref<1x64xf32, #tpu.memory_space<vmem>>, vector<1x64xf32>
    %4 = vector.broadcast %3 : vector<1x64xf32> to vector<8x64xf32>
    %5 = arith.addf %2, %4 : vector<8x64xf32>
    %6 = arith.truncf %5 : vector<8x64xf32> to vector<8x64xbf16>
    %c0_5 = arith.constant 0 : index
    %c0_6 = arith.constant 0 : index
    %7 = vector.load %arg4[%c0_5, %c0_6] : memref<8x64xbf16, #tpu.memory_space<vmem>>, vector<8x64xbf16>
    tpu.vector_store %arg4[%c0_5, %c0_6], %6 {strides = array<i32>} : memref<8x64xbf16, #tpu.memory_space<vmem>>, vector<8x64xbf16>,
    return
  }
  func.func @transform_0(%arg0: i32) -> (i32, i32) {
    %c0_i32 = arith.constant 0 : i32
    %c0_i32_0 = arith.constant 0 : i32
    return %arg0, %c0_i32 : i32, i32
  }
  func.func @transform_1(%arg0: i32) -> (i32, i32) {
    %c0_i32 = arith.constant 0 : i32
    %c0_i32_0 = arith.constant 0 : i32
    %c0_i32_1 = arith.constant 0 : i32
    return %c0_i32, %c0_i32_0 : i32, i32
  }
  func.func @transform_2(%arg0: i32) -> (i32, i32) {
    %c0_i32 = arith.constant 0 : i32
    %c0_i32_0 = arith.constant 0 : i32
    %c0_i32_1 = arith.constant 0 : i32
    return %c0_i32, %c0_i32_0 : i32, i32
  }
  func.func @transform_3(%arg0: i32) -> (i32, i32) {
    %c0_i32 = arith.constant 0 : i32
    %c0_i32_0 = arith.constant 0 : i32
    return %arg0, %c0_i32 : i32, i32
  }
}

module attributes {stable_mosaic.version = 11 : i64} {
  func.func @_linear_kernel(%arg0: i32, %arg1: memref<8x128xbf16, #tpu.memory_space<vmem>>, %arg2: memref<128x32xbf16, #tpu.memory_space<vmem>>, %arg3: memref<1x32xf32, #tpu.memory_space<vmem>>, %arg4: memref<8x32xf32, #tpu.memory_space<vmem>>) attributes {dimension_semantics = [#tpu.dimension_semantics<parallel>], iteration_bounds = array<i64: 1>, scalar_prefetch = 0 : i64, scratch_operands = 0 : i64, tpu.core_type = #tpu.core_type<tc>, window_params = [{transform_indices = @transform_0, window_bounds = array<i64: 8, 128>}, {pipeline_mode = #tpu.pipeline_mode<synchronous>, transform_indices = @transform_1, window_bounds = array<i64: 128, 32>}, {pipeline_mode = #tpu.pipeline_mode<synchronous>, transform_indices = @transform_2, window_bounds = array<i64: 1, 32>}, {transform_indices = @transform_3, window_bounds = array<i64: 8, 32>}]} {
    %c0 = arith.constant 0 : index
    %c0_0 = arith.constant 0 : index
    %0 = vector.load %arg1[%c0, %c0_0] : memref<8x128xbf16, #tpu.memory_space<vmem>>, vector<8x128xbf16>
    %c0_1 = arith.constant 0 : index
    %c0_2 = arith.constant 0 : index
    %1 = vector.load %arg2[%c0_1, %c0_2] : memref<128x32xbf16, #tpu.memory_space<vmem>>, vector<128x32xbf16>
    %cst = arith.constant dense<0.000000e+00> : vector<8x32xf32>
    %2 = tpu.matmul %0, %1, %cst {dimension_numbers = #tpu.dot_dimension_numbers<[1], [0], [0], [1], [0, 0, 1, 1], [], []>} : vector<8x128xbf16>, vector<128x32xbf16>, vector<8x32xf32> -> vector<8x32xf32>
    %c0_3 = arith.constant 0 : index
    %c0_4 = arith.constant 0 : index
    %3 = vector.load %arg3[%c0_3, %c0_4] : memref<1x32xf32, #tpu.memory_space<vmem>>, vector<1x32xf32>
    %4 = vector.broadcast %3 : vector<1x32xf32> to vector<8x32xf32>
    %5 = arith.addf %2, %4 : vector<8x32xf32>
    %c0_5 = arith.constant 0 : index
    %c0_6 = arith.constant 0 : index
    %6 = vector.load %arg4[%c0_5, %c0_6] : memref<8x32xf32, #tpu.memory_space<vmem>>, vector<8x32xf32>
    tpu.vector_store %arg4[%c0_5, %c0_6], %5 {strides = array<i32>} : memref<8x32xf32, #tpu.memory_space<vmem>>, vector<8x32xf32>,
    return
  }
  func.func @transform_0(%arg0: i32) -> (i32, i32) {
    %c0_i32 = arith.constant 0 : i32
    %c0_i32_0 = arith.constant 0 : i32
    return %arg0, %c0_i32 : i32, i32
  }
  func.func @transform_1(%arg0: i32) -> (i32, i32) {
    %c0_i32 = arith.constant 0 : i32
    %c0_i32_0 = arith.constant 0 : i32
    %c0_i32_1 = arith.constant 0 : i32
    return %c0_i32, %c0_i32_0 : i32, i32
  }
  func.func @transform_2(%arg0: i32) -> (i32, i32) {
    %c0_i32 = arith.constant 0 : i32
    %c0_i32_0 = arith.constant 0 : i32
    %c0_i32_1 = arith.constant 0 : i32
    return %c0_i32, %c0_i32_0 : i32, i32
  }
  func.func @transform_3(%arg0: i32) -> (i32, i32) {
    %c0_i32 = arith.constant 0 : i32
    %c0_i32_0 = arith.constant 0 : i32
    return %arg0, %c0_i32 : i32, i32
  }
}

module attributes {stable_mosaic.version = 11 : i64} {
  func.func @_linear_kernel(%arg0: i32, %arg1: memref<32x128xbf16, #tpu.memory_space<vmem>>, %arg2: memref<128x256xbf16, #tpu.memory_space<vmem>>, %arg3: memref<1x256xf32, #tpu.memory_space<vmem>>, %arg4: memref<32x256xf32, #tpu.memory_space<vmem>>) attributes {dimension_semantics = [#tpu.dimension_semantics<parallel>], iteration_bounds = array<i64: 2>, scalar_prefetch = 0 : i64, scratch_operands = 0 : i64, tpu.core_type = #tpu.core_type<tc>, window_params = [{transform_indices = @transform_0, window_bounds = array<i64: 32, 128>}, {pipeline_mode = #tpu.pipeline_mode<synchronous>, transform_indices = @transform_1, window_bounds = array<i64: 128, 256>}, {pipeline_mode = #tpu.pipeline_mode<synchronous>, transform_indices = @transform_2, window_bounds = array<i64: 1, 256>}, {transform_indices = @transform_3, window_bounds = array<i64: 32, 256>}]} {
    %c0 = arith.constant 0 : index
    %c0_0 = arith.constant 0 : index
    %0 = vector.load %arg1[%c0, %c0_0] : memref<32x128xbf16, #tpu.memory_space<vmem>>, vector<32x128xbf16>
    %c0_1 = arith.constant 0 : index
    %c0_2 = arith.constant 0 : index
    %1 = vector.load %arg2[%c0_1, %c0_2] : memref<128x256xbf16, #tpu.memory_space<vmem>>, vector<128x256xbf16>
    %cst = arith.constant dense<0.000000e+00> : vector<32x256xf32>
    %2 = tpu.matmul %0, %1, %cst {dimension_numbers = #tpu.dot_dimension_numbers<[1], [0], [0], [1], [0, 0, 1, 1], [], []>} : vector<32x128xbf16>, vector<128x256xbf16>, vector<32x256xf32> -> vector<32x256xf32>
    %c0_3 = arith.constant 0 : index
    %c0_4 = arith.constant 0 : index
    %3 = vector.load %arg3[%c0_3, %c0_4] : memref<1x256xf32, #tpu.memory_space<vmem>>, vector<1x256xf32>
    %4 = vector.broadcast %3 : vector<1x256xf32> to vector<32x256xf32>
    %5 = arith.addf %2, %4 : vector<32x256xf32>
    %c0_5 = arith.constant 0 : index
    %c0_6 = arith.constant 0 : index
    %6 = vector.load %arg4[%c0_5, %c0_6] : memref<32x256xf32, #tpu.memory_space<vmem>>, vector<32x256xf32>
    tpu.vector_store %arg4[%c0_5, %c0_6], %5 {strides = array<i32>} : memref<32x256xf32, #tpu.memory_space<vmem>>, vector<32x256xf32>,
    return
  }
  func.func @transform_0(%arg0: i32) -> (i32, i32) {
    %c0_i32 = arith.constant 0 : i32
    %c0_i32_0 = arith.constant 0 : i32
    return %arg0, %c0_i32 : i32, i32
  }
  func.func @transform_1(%arg0: i32) -> (i32, i32) {
    %c0_i32 = arith.constant 0 : i32
    %c0_i32_0 = arith.constant 0 : i32
    %c0_i32_1 = arith.constant 0 : i32
    return %c0_i32, %c0_i32_0 : i32, i32
  }
  func.func @transform_2(%arg0: i32) -> (i32, i32) {
    %c0_i32 = arith.constant 0 : i32
    %c0_i32_0 = arith.constant 0 : i32
    %c0_i32_1 = arith.constant 0 : i32
    return %c0_i32, %c0_i32_0 : i32, i32
  }
  func.func @transform_3(%arg0: i32) -> (i32, i32) {
    %c0_i32 = arith.constant 0 : i32
    %c0_i32_0 = arith.constant 0 : i32
    return %arg0, %c0_i32 : i32, i32
  }
}

module attributes {stable_mosaic.version = 11 : i64} {
  func.func @_pair_update_kernel(%arg0: i32, %arg1: i32, %arg2: memref<1x64x128xbf16, #tpu.memory_space<vmem>>, %arg3: memref<1x8x32xbf16, #tpu.memory_space<vmem>>, %arg4: memref<1x8x32xbf16, #tpu.memory_space<vmem>>, %arg5: memref<32x128xbf16, #tpu.memory_space<vmem>>, %arg6: memref<1x128xf32, #tpu.memory_space<vmem>>, %arg7: memref<1x64x128xbf16, #tpu.memory_space<vmem>>) attributes {dimension_semantics = [#tpu.dimension_semantics<parallel>, #tpu.dimension_semantics<parallel>], iteration_bounds = array<i64: 1, 1>, scalar_prefetch = 0 : i64, scratch_operands = 0 : i64, tpu.core_type = #tpu.core_type<tc>, window_params = [{transform_indices = @transform_0, window_bounds = array<i64: 1, 64, 128>}, {transform_indices = @transform_1, window_bounds = array<i64: 1, 8, 32>}, {transform_indices = @transform_2, window_bounds = array<i64: 1, 8, 32>}, {pipeline_mode = #tpu.pipeline_mode<synchronous>, transform_indices = @transform_3, window_bounds = array<i64: 32, 128>}, {pipeline_mode = #tpu.pipeline_mode<synchronous>, transform_indices = @transform_4, window_bounds = array<i64: 1, 128>}, {transform_indices = @transform_5, window_bounds = array<i64: 1, 64, 128>}]} {
    %c0 = arith.constant 0 : index
    %c0_0 = arith.constant 0 : index
    %c0_1 = arith.constant 0 : index
    %0 = vector.load %arg3[%c0, %c0_0, %c0_1] : memref<1x8x32xbf16, #tpu.memory_space<vmem>>, vector<1x8x32xbf16>
    %1 = vector.shape_cast %0 : vector<1x8x32xbf16> to vector<8x32xbf16>
    %2 = arith.extf %1 : vector<8x32xbf16> to vector<8x32xf32>
    %c0_2 = arith.constant 0 : index
    %c0_3 = arith.constant 0 : index
    %c0_4 = arith.constant 0 : index
    %3 = vector.load %arg4[%c0_2, %c0_3, %c0_4] : memref<1x8x32xbf16, #tpu.memory_space<vmem>>, vector<1x8x32xbf16>
    %4 = vector.shape_cast %3 : vector<1x8x32xbf16> to vector<8x32xbf16>
    %5 = arith.extf %4 : vector<8x32xbf16> to vector<8x32xf32>
    %6 = vector.shape_cast %2 : vector<8x32xf32> to vector<8x1x32xf32>
    %7 = vector.shape_cast %5 : vector<8x32xf32> to vector<1x8x32xf32>
    %8 = vector.broadcast %6 : vector<8x1x32xf32> to vector<8x8x32xf32>
    %9 = vector.broadcast %7 : vector<1x8x32xf32> to vector<8x8x32xf32>
    %10 = arith.mulf %8, %9 : vector<8x8x32xf32>
    %11 = vector.shape_cast %10 : vector<8x8x32xf32> to vector<64x32xf32>
    %12 = arith.truncf %11 : vector<64x32xf32> to vector<64x32xbf16>
    %c0_5 = arith.constant 0 : index
    %c0_6 = arith.constant 0 : index
    %13 = vector.load %arg5[%c0_5, %c0_6] : memref<32x128xbf16, #tpu.memory_space<vmem>>, vector<32x128xbf16>
    %cst = arith.constant dense<0.000000e+00> : vector<64x128xf32>
    %14 = tpu.matmul %12, %13, %cst {dimension_numbers = #tpu.dot_dimension_numbers<[1], [0], [0], [1], [0, 0, 1, 1], [], []>} : vector<64x32xbf16>, vector<32x128xbf16>, vector<64x128xf32> -> vector<64x128xf32>
    %c0_7 = arith.constant 0 : index
    %c0_8 = arith.constant 0 : index
    %15 = vector.load %arg6[%c0_7, %c0_8] : memref<1x128xf32, #tpu.memory_space<vmem>>, vector<1x128xf32>
    %16 = vector.broadcast %15 : vector<1x128xf32> to vector<64x128xf32>
    %17 = arith.addf %14, %16 : vector<64x128xf32>
    %c0_9 = arith.constant 0 : index
    %c0_10 = arith.constant 0 : index
    %c0_11 = arith.constant 0 : index
    %18 = vector.load %arg2[%c0_9, %c0_10, %c0_11] : memref<1x64x128xbf16, #tpu.memory_space<vmem>>, vector<1x64x128xbf16>
    %19 = vector.shape_cast %18 : vector<1x64x128xbf16> to vector<64x128xbf16>
    %20 = arith.extf %19 : vector<64x128xbf16> to vector<64x128xf32>
    %21 = arith.addf %20, %17 : vector<64x128xf32>
    %22 = arith.truncf %21 : vector<64x128xf32> to vector<64x128xbf16>
    %c0_12 = arith.constant 0 : index
    %c0_13 = arith.constant 0 : index
    %c0_14 = arith.constant 0 : index
    %23 = vector.load %arg7[%c0_12, %c0_13, %c0_14] : memref<1x64x128xbf16, #tpu.memory_space<vmem>>, vector<1x64x128xbf16>
    %24 = vector.shape_cast %23 : vector<1x64x128xbf16> to vector<64x128xbf16>
    %25 = vector.shape_cast %22 : vector<64x128xbf16> to vector<1x64x128xbf16>
    tpu.vector_store %arg7[%c0_12, %c0_13, %c0_14], %25 {strides = array<i32>} : memref<1x64x128xbf16, #tpu.memory_space<vmem>>, vector<1x64x128xbf16>,
    return
  }
  func.func @transform_0(%arg0: i32, %arg1: i32) -> (i32, i32, i32) {
    %c0_i32 = arith.constant 0 : i32
    %c0_i32_0 = arith.constant 0 : i32
    return %arg0, %arg1, %c0_i32 : i32, i32, i32
  }
  func.func @transform_1(%arg0: i32, %arg1: i32) -> (i32, i32, i32) {
    %c0_i32 = arith.constant 0 : i32
    %c0_i32_0 = arith.constant 0 : i32
    return %arg0, %arg1, %c0_i32 : i32, i32, i32
  }
  func.func @transform_2(%arg0: i32, %arg1: i32) -> (i32, i32, i32) {
    %c0_i32 = arith.constant 0 : i32
    %c0_i32_0 = arith.constant 0 : i32
    %c0_i32_1 = arith.constant 0 : i32
    return %arg0, %c0_i32, %c0_i32_0 : i32, i32, i32
  }
  func.func @transform_3(%arg0: i32, %arg1: i32) -> (i32, i32) {
    %c0_i32 = arith.constant 0 : i32
    %c0_i32_0 = arith.constant 0 : i32
    %c0_i32_1 = arith.constant 0 : i32
    return %c0_i32, %c0_i32_0 : i32, i32
  }
  func.func @transform_4(%arg0: i32, %arg1: i32) -> (i32, i32) {
    %c0_i32 = arith.constant 0 : i32
    %c0_i32_0 = arith.constant 0 : i32
    %c0_i32_1 = arith.constant 0 : i32
    return %c0_i32, %c0_i32_0 : i32, i32
  }
  func.func @transform_5(%arg0: i32, %arg1: i32) -> (i32, i32, i32) {
    %c0_i32 = arith.constant 0 : i32
    %c0_i32_0 = arith.constant 0 : i32
    return %arg0, %arg1, %c0_i32 : i32, i32, i32
  }
}

module attributes {stable_mosaic.version = 11 : i64} {
  func.func @_templ2d_kernel(%arg0: i32, %arg1: i32, %arg2: i32, %arg3: memref<1x64x128xf32, #tpu.memory_space<vmem>>, %arg4: memref<1x1x64x44xf32, #tpu.memory_space<vmem>>, %arg5: memref<1x1x64x1xf32, #tpu.memory_space<vmem>>, %arg6: memref<44x128xbf16, #tpu.memory_space<vmem>>, %arg7: memref<1x128xf32, #tpu.memory_space<vmem>>, %arg8: memref<1x64x128xbf16, #tpu.memory_space<vmem>>, %arg9: memref<64x128xf32, #tpu.memory_space<vmem>>, %arg10: memref<64x1xf32, #tpu.memory_space<vmem>>) attributes {dimension_semantics = [#tpu.dimension_semantics<parallel>, #tpu.dimension_semantics<parallel>, #tpu.dimension_semantics<arbitrary>], iteration_bounds = array<i64: 1, 1, 2>, scalar_prefetch = 0 : i64, scratch_operands = 2 : i64, tpu.core_type = #tpu.core_type<tc>, window_params = [{transform_indices = @transform_0, window_bounds = array<i64: 1, 64, 128>}, {transform_indices = @transform_1, window_bounds = array<i64: 1, 1, 64, 44>}, {transform_indices = @transform_2, window_bounds = array<i64: 1, 1, 64, 1>}, {pipeline_mode = #tpu.pipeline_mode<synchronous>, transform_indices = @transform_3, window_bounds = array<i64: 44, 128>}, {pipeline_mode = #tpu.pipeline_mode<synchronous>, transform_indices = @transform_4, window_bounds = array<i64: 1, 128>}, {transform_indices = @transform_5, window_bounds = array<i64: 1, 64, 128>}]} {
    %c0_i32 = arith.constant 0 : i32
    %0 = arith.cmpi eq, %arg2, %c0_i32 : i32
    %1 = arith.extui %0 : i1 to i32
    %c0_i32_0 = arith.constant 0 : i32
    %2 = arith.cmpi ne, %1, %c0_i32_0 : i32
    scf.if %2 {
      %cst_21 = arith.constant 0.000000e+00 : f32
      %24 = vector.broadcast %cst_21 : f32 to vector<64x128xf32>
      %c0_22 = arith.constant 0 : index
      %c0_23 = arith.constant 0 : index
      %25 = vector.load %arg9[%c0_22, %c0_23] : memref<64x128xf32, #tpu.memory_space<vmem>>, vector<64x128xf32>
      tpu.vector_store %arg9[%c0_22, %c0_23], %24 {strides = array<i32>} : memref<64x128xf32, #tpu.memory_space<vmem>>, vector<64x128xf32>,
      %cst_24 = arith.constant 0.000000e+00 : f32
      %26 = vector.broadcast %cst_24 : f32 to vector<64x1xf32>
      %c0_25 = arith.constant 0 : index
      %c0_26 = arith.constant 0 : index
      %27 = vector.load %arg10[%c0_25, %c0_26] : memref<64x1xf32, #tpu.memory_space<vmem>>, vector<64x1xf32>
      tpu.vector_store %arg10[%c0_25, %c0_26], %26 {strides = array<i32>} : memref<64x1xf32, #tpu.memory_space<vmem>>, vector<64x1xf32>,
    } else {
    }
    %c0 = arith.constant 0 : index
    %c0_1 = arith.constant 0 : index
    %c0_2 = arith.constant 0 : index
    %c0_3 = arith.constant 0 : index
    %3 = vector.load %arg4[%c0, %c0_1, %c0_2, %c0_3] : memref<1x1x64x44xf32, #tpu.memory_space<vmem>>, vector<1x1x64x44xf32>
    %4 = vector.shape_cast %3 : vector<1x1x64x44xf32> to vector<64x44xf32>
    %5 = arith.truncf %4 : vector<64x44xf32> to vector<64x44xbf16>
    %c0_4 = arith.constant 0 : index
    %c0_5 = arith.constant 0 : index
    %6 = vector.load %arg6[%c0_4, %c0_5] : memref<44x128xbf16, #tpu.memory_space<vmem>>, vector<44x128xbf16>
    %cst = arith.constant dense<0.000000e+00> : vector<64x128xf32>
    %7 = tpu.matmul %5, %6, %cst {dimension_numbers = #tpu.dot_dimension_numbers<[1], [0], [0], [1], [0, 0, 1, 1], [], []>} : vector<64x44xbf16>, vector<44x128xbf16>, vector<64x128xf32> -> vector<64x128xf32>
    %c0_6 = arith.constant 0 : index
    %c0_7 = arith.constant 0 : index
    %8 = vector.load %arg7[%c0_6, %c0_7] : memref<1x128xf32, #tpu.memory_space<vmem>>, vector<1x128xf32>
    %9 = vector.broadcast %8 : vector<1x128xf32> to vector<64x128xf32>
    %10 = arith.addf %7, %9 : vector<64x128xf32>
    %c0_8 = arith.constant 0 : index
    %c0_9 = arith.constant 0 : index
    %c0_10 = arith.constant 0 : index
    %c0_11 = arith.constant 0 : index
    %11 = vector.load %arg5[%c0_8, %c0_9, %c0_10, %c0_11] : memref<1x1x64x1xf32, #tpu.memory_space<vmem>>, vector<1x1x64x1xf32>
    %12 = vector.shape_cast %11 : vector<1x1x64x1xf32> to vector<64x1xf32>
    %c0_12 = arith.constant 0 : index
    %c0_13 = arith.constant 0 : index
    %13 = vector.load %arg9[%c0_12, %c0_13] : memref<64x128xf32, #tpu.memory_space<vmem>>, vector<64x128xf32>
    %14 = vector.broadcast %12 : vector<64x1xf32> to vector<64x128xf32>
    %15 = arith.mulf %10, %14 : vector<64x128xf32>
    %16 = arith.addf %13, %15 : vector<64x128xf32>
    %c0_14 = arith.constant 0 : index
    %c0_15 = arith.constant 0 : index
    %17 = vector.load %arg9[%c0_14, %c0_15] : memref<64x128xf32, #tpu.memory_space<vmem>>, vector<64x128xf32>
    tpu.vector_store %arg9[%c0_14, %c0_15], %16 {strides = array<i32>} : memref<64x128xf32, #tpu.memory_space<vmem>>, vector<64x128xf32>,
    %c0_16 = arith.constant 0 : index
    %c0_17 = arith.constant 0 : index
    %18 = vector.load %arg10[%c0_16, %c0_17] : memref<64x1xf32, #tpu.memory_space<vmem>>, vector<64x1xf32>
    %19 = arith.addf %18, %12 : vector<64x1xf32>
    %c0_18 = arith.constant 0 : index
    %c0_19 = arith.constant 0 : index
    %20 = vector.load %arg10[%c0_18, %c0_19] : memref<64x1xf32, #tpu.memory_space<vmem>>, vector<64x1xf32>
    tpu.vector_store %arg10[%c0_18, %c0_19], %19 {strides = array<i32>} : memref<64x1xf32, #tpu.memory_space<vmem>>, vector<64x1xf32>,
    %c1_i32 = arith.constant 1 : i32
    %21 = arith.cmpi eq, %arg2, %c1_i32 : i32
    %22 = arith.extui %21 : i1 to i32
    %c0_i32_20 = arith.constant 0 : i32
    %23 = arith.cmpi ne, %22, %c0_i32_20 : i32
    scf.if %23 {
      %c0_21 = arith.constant 0 : index
      %c0_22 = arith.constant 0 : index
      %c0_23 = arith.constant 0 : index
      %24 = vector.load %arg3[%c0_21, %c0_22, %c0_23] : memref<1x64x128xf32, #tpu.memory_space<vmem>>, vector<1x64x128xf32>
      %25 = vector.shape_cast %24 : vector<1x64x128xf32> to vector<64x128xf32>
      %c0_24 = arith.constant 0 : index
      %c0_25 = arith.constant 0 : index
      %26 = vector.load %arg9[%c0_24, %c0_25] : memref<64x128xf32, #tpu.memory_space<vmem>>, vector<64x128xf32>
      %c0_26 = arith.constant 0 : index
      %c0_27 = arith.constant 0 : index
      %27 = vector.load %arg10[%c0_26, %c0_27] : memref<64x1xf32, #tpu.memory_space<vmem>>, vector<64x1xf32>
      %cst_28 = arith.constant 9.99999974E-5 : f32
      %28 = vector.broadcast %cst_28 : f32 to vector<64x1xf32>
      %29 = arith.addf %27, %28 : vector<64x1xf32>
      %30 = vector.broadcast %29 : vector<64x1xf32> to vector<64x128xf32>
      %31 = arith.divf %26, %30 : vector<64x128xf32>
      %32 = arith.addf %25, %31 : vector<64x128xf32>
      %33 = arith.truncf %32 : vector<64x128xf32> to vector<64x128xbf16>
      %c0_29 = arith.constant 0 : index
      %c0_30 = arith.constant 0 : index
      %c0_31 = arith.constant 0 : index
      %34 = vector.load %arg8[%c0_29, %c0_30, %c0_31] : memref<1x64x128xbf16, #tpu.memory_space<vmem>>, vector<1x64x128xbf16>
      %35 = vector.shape_cast %34 : vector<1x64x128xbf16> to vector<64x128xbf16>
      %36 = vector.shape_cast %33 : vector<64x128xbf16> to vector<1x64x128xbf16>
      tpu.vector_store %arg8[%c0_29, %c0_30, %c0_31], %36 {strides = array<i32>} : memref<1x64x128xbf16, #tpu.memory_space<vmem>>, vector<1x64x128xbf16>,
    } else {
    }
    return
  }
  func.func @transform_0(%arg0: i32, %arg1: i32, %arg2: i32) -> (i32, i32, i32) {
    %c0_i32 = arith.constant 0 : i32
    %c0_i32_0 = arith.constant 0 : i32
    return %arg0, %arg1, %c0_i32 : i32, i32, i32
  }
  func.func @transform_1(%arg0: i32, %arg1: i32, %arg2: i32) -> (i32, i32, i32, i32) {
    %c0_i32 = arith.constant 0 : i32
    %c0_i32_0 = arith.constant 0 : i32
    return %arg0, %arg2, %arg1, %c0_i32 : i32, i32, i32, i32
  }
  func.func @transform_2(%arg0: i32, %arg1: i32, %arg2: i32) -> (i32, i32, i32, i32) {
    %c0_i32 = arith.constant 0 : i32
    %c0_i32_0 = arith.constant 0 : i32
    return %arg0, %arg2, %arg1, %c0_i32 : i32, i32, i32, i32
  }
  func.func @transform_3(%arg0: i32, %arg1: i32, %arg2: i32) -> (i32, i32) {
    %c0_i32 = arith.constant 0 : i32
    %c0_i32_0 = arith.constant 0 : i32
    %c0_i32_1 = arith.constant 0 : i32
    return %c0_i32, %c0_i32_0 : i32, i32
  }
  func.func @transform_4(%arg0: i32, %arg1: i32, %arg2: i32) -> (i32, i32) {
    %c0_i32 = arith.constant 0 : i32
    %c0_i32_0 = arith.constant 0 : i32
    %c0_i32_1 = arith.constant 0 : i32
    return %c0_i32, %c0_i32_0 : i32, i32
  }
  func.func @transform_5(%arg0: i32, %arg1: i32, %arg2: i32) -> (i32, i32, i32) {
    %c0_i32 = arith.constant 0 : i32
    %c0_i32_0 = arith.constant 0 : i32
    return %arg0, %arg1, %c0_i32 : i32, i32, i32
  }
}

</mosaic_0001>

<llo_original>
// kernel: rosettafold_forward.42
$region0: #{rosettafold_forward.42}
  #allocation0 [shape = 'u32[]', space=smem, size = 0x4, offset = 0x4, fixed_abs, tag = 'smem constant byte address 0x4 - core index']
  #allocation1 [shape = 'u32[144,128]{1,0:T(1,128)}', space=vmem, size = 0x12000, scoped, tag = 'internal scratch']
  %s0 = inlined_call_operand.vmem [shape: f32[8,21], index: 0, kind: input, shape index: {}]
  %s1 = inlined_call_operand.vmem [shape: bf16[21,128], index: 1, kind: input, shape index: {}]
  %s2 = inlined_call_operand.vmem [shape: f32[1,128], index: 2, kind: input, shape index: {}]
  %s3 = inlined_call_operand.vmem [shape: bf16[8,128], index: 3, kind: output, shape index: {}]
  %s4 = sld [smem:[#allocation0]]
  $region22: #{rosettafold_forward.42} parent=0
    _
  %s6 = ssub.s32 1, %s4
  %s7 = scalar_select 0, %s6, %s4
  // Predicated region
  $region2: #{rosettafold_forward.42} parent=0 // pred_check
    _
  $region3: #{rosettafold_forward.42} parent=0 // pred_check_branch
    %9 = sbr.rel (0) target = $region5
  $region4: #{rosettafold_forward.42} parent=0 // pred_region
    _
  $region5: #{rosettafold_forward.42} parent=0 // pred_fallthru
    _
  // Predicated region
  $region6: #{rosettafold_forward.42} parent=0 // pred_check
    _
  $region7: #{rosettafold_forward.42} parent=0 // pred_check_branch
    %11 = sbr.rel (0) target = $region9
  $region8: #{rosettafold_forward.42} parent=0 // pred_region
    _
  $region9: #{rosettafold_forward.42} parent=0 // pred_fallthru
    _
  // Predicated region
  $region10: #{rosettafold_forward.42} parent=0 // pred_check
    _
  $region11: #{rosettafold_forward.42} parent=0 // pred_check_branch
    %13 = sbr.rel (0) target = $region13
  $region12: #{rosettafold_forward.42} parent=0 // pred_region
    _
  $region13: #{rosettafold_forward.42} parent=0 // pred_fallthru
    _
  %v15 = vld [vmem:[%s0] sm:$0xff]
  %v16 = vpack.c.bf16 %v15, %v15
  %v17 = vld [vmem:[%s1] sm:$0xf]
  %v18 = vld [vmem:[%s1 + $0x4] sm:$0xf]
  %v19 = vld [vmem:[%s1 + $0x8] sm:$0x7]
  %v20 = vld [vmem:[%s2] sm:$0x1]
  %v22 = vlaneseq
  %v23 = vshrl.u32 %v22, 7
  %v24 = vsub.s32 0, %v23
  %v25 = vrot.slane %v20, %v24
  %v30 = vunpack.c.l.b16 %v17
  %v31 = vunpack.c.l.b16 %v18
  %v32 = vunpack.c.l.b16 %v19
  %v33 = vpack.c.b16 %v31, %v30
  %v34 = vpack.c.b16 %v32, %v32
  %vm36 = vcmask 171008
  %v38 = vsel %vm36, %v16, 0
  %vm40 = vcmask 1041408
  %vm41 = vcmask 1042432
  %v42 = vsel %vm40, 4294967295, 65535
  %v43 = vsel %vm41, %v42, 0
  %v45 = vand.u32 %v34, %v43
  %47 = vmatprep.subr.bf16.mxu0 0
  %48 = vmatpush1.bf16.msra.mxu0 %v33
  %49 = vmatprep.subr.bf16.mxu0 0
  %50 = vmatpush1.bf16.msra.mxu0 %v45
  %51 = vmatprep.subr.bf16.mxu0 0
  %52 = vmatpush1.bf16.msra.mxu0 0
  %53 = vmatprep.subr.bf16.mxu0 0
  %54 = vmatpush1.bf16.msra.mxu0 0
  %55 = vmatprep.subr.bf16.mxu0 0
  %56 = vmatpush1.bf16.msra.mxu0 0
  %57 = vmatprep.subr.bf16.mxu0 0
  %58 = vmatpush1.bf16.msra.mxu0 0
  %59 = vmatprep.subr.bf16.mxu0 0
  %60 = vmatpush1.bf16.msra.mxu0 0
  %61 = vmatprep.subr.bf16.mxu0 0
  %62 = vmatpush1.bf16.msra.mxu0 0
  %63 = vmatprep.subr.bf16.mxu0 0
  %64 = vmatpush1.bf16.msra.mxu0 0
  %65 = vmatprep.subr.bf16.mxu0 0
  %66 = vmatpush1.bf16.msra.mxu0 0
  %67 = vmatprep.subr.bf16.mxu0 0
  %68 = vmatpush1.bf16.msra.mxu0 0
  %69 = vmatprep.subr.bf16.mxu0 0
  %70 = vmatpush1.bf16.msra.mxu0 0
  %71 = vmatprep.subr.bf16.mxu0 0
  %72 = vmatpush1.bf16.msra.mxu0 0
  %73 = vmatprep.subr.bf16.mxu0 0
  %74 = vmatpush1.bf16.msra.mxu0 0
  %75 = vmatprep.subr.bf16.mxu0 0
  %76 = vmatpush1.bf16.msra.mxu0 0
  %77 = vmatprep.subr.bf16.mxu0 0
  %78 = vmatpush1.bf16.msra.mxu0 0
  %79 = vmatprep.mubr.bf16.mxu0 0
  %80 = vmatmul.mubr.bf16.gmra.mrb[0].mxu0 %v38
  %v81 = vpop.f32.mrb[0].mxu0
  %v82 = vadd.f32 %v25, %v81
  %v83 = vpop.f32.mrb[0].mxu0
  %v84 = vpop.f32.mrb[0].mxu0
  %v85 = vpop.f32.mrb[0].mxu0
  %86 = vdwg.mxu0
  %v87 = vpack.c.bf16 %v82, %v82
  %88 = vst [vmem:[%s3] sm:$0xf] %v87
  // Predicated region
  $region14: #{rosettafold_forward.42} parent=0 // pred_check
    _
  $region15: #{rosettafold_forward.42} parent=0 // pred_check_branch
    %90 = sbr.rel (0) target = $region17
  $region16: #{rosettafold_forward.42} parent=0 // pred_region
    _
  $region17: #{rosettafold_forward.42} parent=0 // pred_fallthru
    _
  // Predicated region
  $region18: #{rosettafold_forward.42} parent=0 // pred_check
    _
  $region19: #{rosettafold_forward.42} parent=0 // pred_check_branch
    %92 = sbr.rel (0) target = $region21
  $region20: #{rosettafold_forward.42} parent=0 // pred_region
    _
  $region21: #{rosettafold_forward.42} parent=0 // pred_fallthru
    _

// kernel: rosettafold_forward.38
$region0: #{rosettafold_forward.38}
  #allocation0 [shape = 'u32[]', space=smem, size = 0x4, offset = 0x4, fixed_abs, tag = 'smem constant byte address 0x4 - core index']
  #allocation1 [shape = 'u32[144,128]{1,0:T(1,128)}', space=vmem, size = 0x12000, scoped, tag = 'internal scratch']
  %s0 = inlined_call_operand.vmem [shape: f32[8,21], index: 0, kind: input, shape index: {}]
  %s1 = inlined_call_operand.vmem [shape: bf16[21,256], index: 1, kind: input, shape index: {}]
  %s2 = inlined_call_operand.vmem [shape: f32[1,256], index: 2, kind: input, shape index: {}]
  %s3 = inlined_call_operand.vmem [shape: f32[8,256], index: 3, kind: output, shape index: {}]
  %s4 = sld [smem:[#allocation0]]
  $region22: #{rosettafold_forward.38} parent=0
    _
  %s6 = ssub.s32 1, %s4
  %s7 = scalar_select 0, %s6, %s4
  // Predicated region
  $region2: #{rosettafold_forward.38} parent=0 // pred_check
    _
  $region3: #{rosettafold_forward.38} parent=0 // pred_check_branch
    %9 = sbr.rel (0) target = $region5
  $region4: #{rosettafold_forward.38} parent=0 // pred_region
    _
  $region5: #{rosettafold_forward.38} parent=0 // pred_fallthru
    _
  // Predicated region
  $region6: #{rosettafold_forward.38} parent=0 // pred_check
    _
  $region7: #{rosettafold_forward.38} parent=0 // pred_check_branch
    %11 = sbr.rel (0) target = $region9
  $region8: #{rosettafold_forward.38} parent=0 // pred_region
    _
  $region9: #{rosettafold_forward.38} parent=0 // pred_fallthru
    _
  // Predicated region
  $region10: #{rosettafold_forward.38} parent=0 // pred_check
    _
  $region11: #{rosettafold_forward.38} parent=0 // pred_check_branch
    %13 = sbr.rel (0) target = $region13
  $region12: #{rosettafold_forward.38} parent=0 // pred_region
    _
  $region13: #{rosettafold_forward.38} parent=0 // pred_fallthru
    _
  %v15 = vld [vmem:[%s0] sm:$0xff]
  %v16 = vpack.c.bf16 %v15, %v15
  %v17 = vld [vmem:[%s1] sm:$0xff]
  %v18 = vld [vmem:[%s1 + $0x8] sm:$0xff]
  %v19 = vld [vmem:[%s1 + $0x10] sm:$0x77]
  %v20 = vld [vmem:[%s2] sm:$0x3]
  %v22 = vlaneseq
  %v23 = vshrl.u32 %v22, 7
  %v24 = vsub.s32 0, %v23
  %v25 = vrot.slane %v20, %v24
  %v26 = vlaneseq
  %v27 = vshrl.u32 %v26, 7
  %v28 = vsub.s32 1, %v27
  %v29 = vrot.slane %v20, %v28
  %v35 = vunpack.c.l.b16 %v17
  %v36 = vunpack.c.h.b16 %v17
  %v37 = vunpack.c.l.b16 %v18
  %v38 = vunpack.c.h.b16 %v18
  %v39 = vunpack.c.l.b16 %v19
  %v40 = vunpack.c.h.b16 %v19
  %v41 = vpack.c.b16 %v37, %v35
  %v42 = vpack.c.b16 %v38, %v36
  %v43 = vpack.c.b16 %v39, %v39
  %v44 = vpack.c.b16 %v40, %v40
  %vm47 = vcmask 171008
  %v49 = vsel %vm47, %v16, 0
  %vm51 = vcmask 1041408
  %vm52 = vcmask 1042432
  %v53 = vsel %vm51, 4294967295, 65535
  %v54 = vsel %vm52, %v53, 0
  %v56 = vand.u32 %v43, %v54
  %v59 = vand.u32 %v44, %v54
  %61 = vmatprep.subr.bf16.mxu0 %v42
  %62 = vmatpush1.bf16.msra.mxu0 %v41
  %63 = vmatprep.subr.bf16.mxu0 %v59
  %64 = vmatpush1.bf16.msra.mxu0 %v56
  %65 = vmatprep.subr.bf16.mxu0 0
  %66 = vmatpush1.bf16.msra.mxu0 0
  %67 = vmatprep.subr.bf16.mxu0 0
  %68 = vmatpush1.bf16.msra.mxu0 0
  %69 = vmatprep.subr.bf16.mxu0 0
  %70 = vmatpush1.bf16.msra.mxu0 0
  %71 = vmatprep.subr.bf16.mxu0 0
  %72 = vmatpush1.bf16.msra.mxu0 0
  %73 = vmatprep.subr.bf16.mxu0 0
  %74 = vmatpush1.bf16.msra.mxu0 0
  %75 = vmatprep.subr.bf16.mxu0 0
  %76 = vmatpush1.bf16.msra.mxu0 0
  %77 = vmatprep.subr.bf16.mxu0 0
  %78 = vmatpush1.bf16.msra.mxu0 0
  %79 = vmatprep.subr.bf16.mxu0 0
  %80 = vmatpush1.bf16.msra.mxu0 0
  %81 = vmatprep.subr.bf16.mxu0 0
  %82 = vmatpush1.bf16.msra.mxu0 0
  %83 = vmatprep.subr.bf16.mxu0 0
  %84 = vmatpush1.bf16.msra.mxu0 0
  %85 = vmatprep.subr.bf16.mxu0 0
  %86 = vmatpush1.bf16.msra.mxu0 0
  %87 = vmatprep.subr.bf16.mxu0 0
  %88 = vmatpush1.bf16.msra.mxu0 0
  %89 = vmatprep.subr.bf16.mxu0 0
  %90 = vmatpush1.bf16.msra.mxu0 0
  %91 = vmatprep.subr.bf16.mxu0 0
  %92 = vmatpush1.bf16.msra.mxu0 0
  %93 = vmatprep.mubr.bf16.mxu0 0
  %94 = vmatmul.mubr.bf16.gmra.mrb[0].mxu0 %v49
  %v95 = vpop.f32.mrb[0].mxu0
  %v96 = vadd.f32 %v25, %v95
  %v97 = vpop.f32.mrb[0].mxu0
  %v98 = vadd.f32 %v29, %v97
  %v99 = vpop.f32.mrb[0].mxu0
  %v100 = vpop.f32.mrb[0].mxu0
  %101 = vdwg.mxu0
  %102 = vst [vmem:[%s3] sm:$0xff] %v96
  %103 = vst [vmem:[%s3 + $0x8] sm:$0xff] %v98
  // Predicated region
  $region14: #{rosettafold_forward.38} parent=0 // pred_check
    _
  $region15: #{rosettafold_forward.38} parent=0 // pred_check_branch
    %105 = sbr.rel (0) target = $region17
  $region16: #{rosettafold_forward.38} parent=0 // pred_region
    _
  $region17: #{rosettafold_forward.38} parent=0 // pred_fallthru
    _
  // Predicated region
  $region18: #{rosettafold_forward.38} parent=0 // pred_check
    _
  $region19: #{rosettafold_forward.38} parent=0 // pred_check_branch
    %107 = sbr.rel (0) target = $region21
  $region20: #{rosettafold_forward.38} parent=0 // pred_region
    _
  $region21: #{rosettafold_forward.38} parent=0 // pred_fallthru
    _

// kernel: rosettafold_forward.40
$region0: #{rosettafold_forward.40}
  #allocation0 [shape = 'u32[]', space=smem, size = 0x4, offset = 0x4, fixed_abs, tag = 'smem constant byte address 0x4 - core index']
  #allocation1 [shape = 'u32[144,128]{1,0:T(1,128)}', space=vmem, size = 0x12000, scoped, tag = 'internal scratch']
  %s0 = inlined_call_operand.vmem [shape: f32[8,22], index: 0, kind: input, shape index: {}]
  %s1 = inlined_call_operand.vmem [shape: bf16[22,128], index: 1, kind: input, shape index: {}]
  %s2 = inlined_call_operand.vmem [shape: f32[1,128], index: 2, kind: input, shape index: {}]
  %s3 = inlined_call_operand.vmem [shape: f32[8,128], index: 3, kind: output, shape index: {}]
  %s4 = sld [smem:[#allocation0]]
  $region22: #{rosettafold_forward.40} parent=0
    _
  %s6 = ssub.s32 1, %s4
  %s7 = scalar_select 0, %s6, %s4
  // Predicated region
  $region2: #{rosettafold_forward.40} parent=0 // pred_check
    _
  $region3: #{rosettafold_forward.40} parent=0 // pred_check_branch
    %9 = sbr.rel (0) target = $region5
  $region4: #{rosettafold_forward.40} parent=0 // pred_region
    _
  $region5: #{rosettafold_forward.40} parent=0 // pred_fallthru
    _
  // Predicated region
  $region6: #{rosettafold_forward.40} parent=0 // pred_check
    _
  $region7: #{rosettafold_forward.40} parent=0 // pred_check_branch
    %11 = sbr.rel (0) target = $region9
  $region8: #{rosettafold_forward.40} parent=0 // pred_region
    _
  $region9: #{rosettafold_forward.40} parent=0 // pred_fallthru
    _
  // Predicated region
  $region10: #{rosettafold_forward.40} parent=0 // pred_check
    _
  $region11: #{rosettafold_forward.40} parent=0 // pred_check_branch
    %13 = sbr.rel (0) target = $region13
  $region12: #{rosettafold_forward.40} parent=0 // pred_region
    _
  $region13: #{rosettafold_forward.40} parent=0 // pred_fallthru
    _
  %v15 = vld [vmem:[%s0] sm:$0xff]
  %v16 = vpack.c.bf16 %v15, %v15
  %v17 = vld [vmem:[%s1] sm:$0xf]
  %v18 = vld [vmem:[%s1 + $0x4] sm:$0xf]
  %v19 = vld [vmem:[%s1 + $0x8] sm:$0x7]
  %v20 = vld [vmem:[%s2] sm:$0x1]
  %v22 = vlaneseq
  %v23 = vshrl.u32 %v22, 7
  %v24 = vsub.s32 0, %v23
  %v25 = vrot.slane %v20, %v24
  %v30 = vunpack.c.l.b16 %v17
  %v31 = vunpack.c.l.b16 %v18
  %v32 = vunpack.c.l.b16 %v19
  %v33 = vpack.c.b16 %v31, %v30
  %v34 = vpack.c.b16 %v32, %v32
  %vm36 = vcmask 179200
  %v38 = vsel %vm36, %v16, 0
  %vm40 = vcmask 1042432
  %v42 = vsel %vm40, %v34, 0
  %44 = vmatprep.subr.bf16.mxu0 0
  %45 = vmatpush1.bf16.msra.mxu0 %v33
  %46 = vmatprep.subr.bf16.mxu0 0
  %47 = vmatpush1.bf16.msra.mxu0 %v42
  %48 = vmatprep.subr.bf16.mxu0 0
  %49 = vmatpush1.bf16.msra.mxu0 0
  %50 = vmatprep.subr.bf16.mxu0 0
  %51 = vmatpush1.bf16.msra.mxu0 0
  %52 = vmatprep.subr.bf16.mxu0 0
  %53 = vmatpush1.bf16.msra.mxu0 0
  %54 = vmatprep.subr.bf16.mxu0 0
  %55 = vmatpush1.bf16.msra.mxu0 0
  %56 = vmatprep.subr.bf16.mxu0 0
  %57 = vmatpush1.bf16.msra.mxu0 0
  %58 = vmatprep.subr.bf16.mxu0 0
  %59 = vmatpush1.bf16.msra.mxu0 0
  %60 = vmatprep.subr.bf16.mxu0 0
  %61 = vmatpush1.bf16.msra.mxu0 0
  %62 = vmatprep.subr.bf16.mxu0 0
  %63 = vmatpush1.bf16.msra.mxu0 0
  %64 = vmatprep.subr.bf16.mxu0 0
  %65 = vmatpush1.bf16.msra.mxu0 0
  %66 = vmatprep.subr.bf16.mxu0 0
  %67 = vmatpush1.bf16.msra.mxu0 0
  %68 = vmatprep.subr.bf16.mxu0 0
  %69 = vmatpush1.bf16.msra.mxu0 0
  %70 = vmatprep.subr.bf16.mxu0 0
  %71 = vmatpush1.bf16.msra.mxu0 0
  %72 = vmatprep.subr.bf16.mxu0 0
  %73 = vmatpush1.bf16.msra.mxu0 0
  %74 = vmatprep.subr.bf16.mxu0 0
  %75 = vmatpush1.bf16.msra.mxu0 0
  %76 = vmatprep.mubr.bf16.mxu0 0
  %77 = vmatmul.mubr.bf16.gmra.mrb[0].mxu0 %v38
  %v78 = vpop.f32.mrb[0].mxu0
  %v79 = vadd.f32 %v25, %v78
  %v80 = vpop.f32.mrb[0].mxu0
  %v81 = vpop.f32.mrb[0].mxu0
  %v82 = vpop.f32.mrb[0].mxu0
  %83 = vdwg.mxu0
  %84 = vst [vmem:[%s3] sm:$0xff] %v79
  // Predicated region
  $region14: #{rosettafold_forward.40} parent=0 // pred_check
    _
  $region15: #{rosettafold_forward.40} parent=0 // pred_check_branch
    %86 = sbr.rel (0) target = $region17
  $region16: #{rosettafold_forward.40} parent=0 // pred_region
    _
  $region17: #{rosettafold_forward.40} parent=0 // pred_fallthru
    _
  // Predicated region
  $region18: #{rosettafold_forward.40} parent=0 // pred_check
    _
  $region19: #{rosettafold_forward.40} parent=0 // pred_check_branch
    %88 = sbr.rel (0) target = $region21
  $region20: #{rosettafold_forward.40} parent=0 // pred_region
    _
  $region21: #{rosettafold_forward.40} parent=0 // pred_fallthru
    _

// kernel: rosettafold_forward.36
$region0: #{rosettafold_forward.36}
  #allocation0 [shape = 'u32[]', space=smem, size = 0x4, offset = 0x4, fixed_abs, tag = 'smem constant byte address 0x4 - core index']
  #allocation1 [shape = 'u32[144,128]{1,0:T(1,128)}', space=vmem, size = 0x12000, scoped, tag = 'internal scratch']
  %s0 = inlined_call_operand.vmem [shape: f32[32,48], index: 0, kind: input, shape index: {}]
  %s1 = inlined_call_operand.vmem [shape: bf16[48,128], index: 1, kind: input, shape index: {}]
  %s2 = inlined_call_operand.vmem [shape: f32[1,128], index: 2, kind: input, shape index: {}]
  %s3 = inlined_call_operand.vmem [shape: bf16[32,128], index: 3, kind: output, shape index: {}]
  %s4 = sld [smem:[#allocation0]]
  $region22: #{rosettafold_forward.36} parent=0
    _
  %s6 = ssub.s32 1, %s4
  %s7 = scalar_select 0, %s6, %s4
  // Predicated region
  $region2: #{rosettafold_forward.36} parent=0 // pred_check
    _
  $region3: #{rosettafold_forward.36} parent=0 // pred_check_branch
    %9 = sbr.rel (0) target = $region5
  $region4: #{rosettafold_forward.36} parent=0 // pred_region
    _
  $region5: #{rosettafold_forward.36} parent=0 // pred_fallthru
    _
  // Predicated region
  $region6: #{rosettafold_forward.36} parent=0 // pred_check
    _
  $region7: #{rosettafold_forward.36} parent=0 // pred_check_branch
    %11 = sbr.rel (0) target = $region9
  $region8: #{rosettafold_forward.36} parent=0 // pred_region
    _
  $region9: #{rosettafold_forward.36} parent=0 // pred_fallthru
    _
  // Predicated region
  $region10: #{rosettafold_forward.36} parent=0 // pred_check
    _
  $region11: #{rosettafold_forward.36} parent=0 // pred_check_branch
    %13 = sbr.rel (0) target = $region13
  $region12: #{rosettafold_forward.36} parent=0 // pred_region
    _
  $region13: #{rosettafold_forward.36} parent=0 // pred_fallthru
    _
  %v15 = vld [vmem:[%s0] sm:$0xff]
  %v16 = vld [vmem:[%s0 + $0x8] sm:$0xff]
  %v17 = vld [vmem:[%s0 + $0x10] sm:$0xff]
  %v18 = vld [vmem:[%s0 + $0x18] sm:$0xff]
  %v19 = vpack.c.bf16 %v16, %v15
  %v20 = vpack.c.bf16 %v18, %v17
  %v21 = vld [vmem:[%s1] sm:$0xf]
  %v22 = vld [vmem:[%s1 + $0x4] sm:$0xf]
  %v23 = vld [vmem:[%s1 + $0x8] sm:$0xf]
  %v24 = vld [vmem:[%s1 + $0xc] sm:$0xf]
  %v25 = vld [vmem:[%s1 + $0x10] sm:$0xf]
  %v26 = vld [vmem:[%s1 + $0x14] sm:$0xf]
  %v27 = vld [vmem:[%s2] sm:$0x1]
  %v29 = vlaneseq
  %v30 = vshrl.u32 %v29, 7
  %v31 = vsub.s32 0, %v30
  %v32 = vrot.slane %v27, %v31
  %v40 = vunpack.c.l.b16 %v21
  %v41 = vunpack.c.l.b16 %v22
  %v42 = vunpack.c.l.b16 %v23
  %v43 = vunpack.c.l.b16 %v24
  %v44 = vunpack.c.l.b16 %v25
  %v45 = vunpack.c.l.b16 %v26
  %v46 = vpack.c.b16 %v41, %v40
  %v47 = vpack.c.b16 %v43, %v42
  %v48 = vpack.c.b16 %v45, %v44
  %vm52 = vcmask 392192
  %v54 = vsel %vm52, %v19, 0
  %v57 = vsel %vm52, %v20, 0
  %59 = vmatprep.subr.bf16.mxu0 0
  %60 = vmatpush1.bf16.msra.mxu0 %v46
  %61 = vmatprep.subr.bf16.mxu0 0
  %62 = vmatpush1.bf16.msra.mxu0 %v47
  %63 = vmatprep.subr.bf16.mxu0 0
  %64 = vmatpush1.bf16.msra.mxu0 %v48
  %65 = vmatprep.subr.bf16.mxu0 0
  %66 = vmatpush1.bf16.msra.mxu0 0
  %67 = vmatprep.subr.bf16.mxu0 0
  %68 = vmatpush1.bf16.msra.mxu0 0
  %69 = vmatprep.subr.bf16.mxu0 0
  %70 = vmatpush1.bf16.msra.mxu0 0
  %71 = vmatprep.subr.bf16.mxu0 0
  %72 = vmatpush1.bf16.msra.mxu0 0
  %73 = vmatprep.subr.bf16.mxu0 0
  %74 = vmatpush1.bf16.msra.mxu0 0
  %75 = vmatprep.subr.bf16.mxu0 0
  %76 = vmatpush1.bf16.msra.mxu0 0
  %77 = vmatprep.subr.bf16.mxu0 0
  %78 = vmatpush1.bf16.msra.mxu0 0
  %79 = vmatprep.subr.bf16.mxu0 0
  %80 = vmatpush1.bf16.msra.mxu0 0
  %81 = vmatprep.subr.bf16.mxu0 0
  %82 = vmatpush1.bf16.msra.mxu0 0
  %83 = vmatprep.subr.bf16.mxu0 0
  %84 = vmatpush1.bf16.msra.mxu0 0
  %85 = vmatprep.subr.bf16.mxu0 0
  %86 = vmatpush1.bf16.msra.mxu0 0
  %87 = vmatprep.subr.bf16.mxu0 0
  %88 = vmatpush1.bf16.msra.mxu0 0
  %89 = vmatprep.subr.bf16.mxu0 0
  %90 = vmatpush1.bf16.msra.mxu0 0
  %91 = vmatprep.mubr.bf16.mxu0 0
  %92 = vmatmul.mubr.bf16.gmra.mrb[0].mxu0 %v54
  %v93 = vpop.f32.mrb[0].mxu0
  %v94 = vadd.f32 %v32, %v93
  %v95 = vpop.f32.mrb[0].mxu0
  %v96 = vpop.f32.mrb[0].mxu0
  %v97 = vadd.f32 %v32, %v96
  %v98 = vpop.f32.mrb[0].mxu0
  %99 = vmatprep.mubr.bf16.mxu0 0
  %100 = vmatmul.mubr.bf16.gmra.mrb[0].mxu0 %v57
  %v101 = vpop.f32.mrb[0].mxu0
  %v102 = vadd.f32 %v32, %v101
  %v103 = vpop.f32.mrb[0].mxu0
  %v104 = vpop.f32.mrb[0].mxu0
  %v105 = vadd.f32 %v32, %v104
  %v106 = vpop.f32.mrb[0].mxu0
  %107 = vdwg.mxu0
  %v108 = vpack.c.bf16 %v97, %v94
  %v109 = vpack.c.bf16 %v105, %v102
  %v112 = vunpack.c.l.b16 %v108
  %v113 = vunpack.c.h.b16 %v108
  %v114 = vunpack.c.l.b16 %v109
  %v115 = vunpack.c.h.b16 %v109
  %v116 = vpack.c.b16 %v112, %v112
  %v117 = vpack.c.b16 %v113, %v113
  %v118 = vpack.c.b16 %v114, %v114
  %v119 = vpack.c.b16 %v115, %v115
  %124 = vst [vmem:[%s3] sm:$0xf] %v116
  %125 = vst [vmem:[%s3 + $0x4] sm:$0xf] %v117
  %126 = vst [vmem:[%s3 + $0x8] sm:$0xf] %v118
  %127 = vst [vmem:[%s3 + $0xc] sm:$0xf] %v119
  // Predicated region
  $region14: #{rosettafold_forward.36} parent=0 // pred_check
    _
  $region15: #{rosettafold_forward.36} parent=0 // pred_check_branch
    %129 = sbr.rel (0) target = $region17
  $region16: #{rosettafold_forward.36} parent=0 // pred_region
    _
  $region17: #{rosettafold_forward.36} parent=0 // pred_fallthru
    _
  // Predicated region
  $region18: #{rosettafold_forward.36} parent=0 // pred_check
    _
  $region19: #{rosettafold_forward.36} parent=0 // pred_check_branch
    %131 = sbr.rel (0) target = $region21
  $region20: #{rosettafold_forward.36} parent=0 // pred_region
    _
  $region21: #{rosettafold_forward.36} parent=0 // pred_fallthru
    _

// kernel: rosettafold_forward.41
$region0: #{rosettafold_forward.41}
  #allocation0 [shape = 'u32[]', space=smem, size = 0x4, offset = 0x4, fixed_abs, tag = 'smem constant byte address 0x4 - core index']
  #allocation1 [shape = 'u32[144,128]{1,0:T(1,128)}', space=vmem, size = 0x12000, scoped, tag = 'internal scratch']
  %s0 = inlined_call_operand.vmem [shape: f32[32,25], index: 0, kind: input, shape index: {}]
  %s1 = inlined_call_operand.vmem [shape: bf16[25,128], index: 1, kind: input, shape index: {}]
  %s2 = inlined_call_operand.vmem [shape: f32[1,128], index: 2, kind: input, shape index: {}]
  %s3 = inlined_call_operand.vmem [shape: bf16[32,128], index: 3, kind: output, shape index: {}]
  %s4 = sld [smem:[#allocation0]]
  $region22: #{rosettafold_forward.41} parent=0
    _
  %s6 = ssub.s32 1, %s4
  %s7 = scalar_select 0, %s6, %s4
  // Predicated region
  $region2: #{rosettafold_forward.41} parent=0 // pred_check
    _
  $region3: #{rosettafold_forward.41} parent=0 // pred_check_branch
    %9 = sbr.rel (0) target = $region5
  $region4: #{rosettafold_forward.41} parent=0 // pred_region
    _
  $region5: #{rosettafold_forward.41} parent=0 // pred_fallthru
    _
  // Predicated region
  $region6: #{rosettafold_forward.41} parent=0 // pred_check
    _
  $region7: #{rosettafold_forward.41} parent=0 // pred_check_branch
    %11 = sbr.rel (0) target = $region9
  $region8: #{rosettafold_forward.41} parent=0 // pred_region
    _
  $region9: #{rosettafold_forward.41} parent=0 // pred_fallthru
    _
  // Predicated region
  $region10: #{rosettafold_forward.41} parent=0 // pred_check
    _
  $region11: #{rosettafold_forward.41} parent=0 // pred_check_branch
    %13 = sbr.rel (0) target = $region13
  $region12: #{rosettafold_forward.41} parent=0 // pred_region
    _
  $region13: #{rosettafold_forward.41} parent=0 // pred_fallthru
    _
  %v15 = vld [vmem:[%s0] sm:$0xff]
  %v16 = vld [vmem:[%s0 + $0x8] sm:$0xff]
  %v17 = vld [vmem:[%s0 + $0x10] sm:$0xff]
  %v18 = vld [vmem:[%s0 + $0x18] sm:$0xff]
  %v19 = vpack.c.bf16 %v16, %v15
  %v20 = vpack.c.bf16 %v18, %v17
  %v21 = vld [vmem:[%s1] sm:$0xf]
  %v22 = vld [vmem:[%s1 + $0x4] sm:$0xf]
  %v23 = vld [vmem:[%s1 + $0x8] sm:$0xf]
  %v24 = vld [vmem:[%s1 + $0xc] sm:$0x1]
  %v25 = vld [vmem:[%s2] sm:$0x1]
  %v27 = vlaneseq
  %v28 = vshrl.u32 %v27, 7
  %v29 = vsub.s32 0, %v28
  %v30 = vrot.slane %v25, %v29
  %v36 = vunpack.c.l.b16 %v21
  %v37 = vunpack.c.l.b16 %v22
  %v38 = vunpack.c.l.b16 %v23
  %v39 = vunpack.c.l.b16 %v24
  %v40 = vpack.c.b16 %v37, %v36
  %v41 = vpack.c.b16 %v39, %v38
  %vm43 = vcmask 203776
  %v45 = vsel %vm43, %v19, 0
  %v48 = vsel %vm43, %v20, 0
  %vm50 = vcmask 1043456
  %vm51 = vcmask 1044480
  %v52 = vsel %vm50, 4294967295, 65535
  %v53 = vsel %vm51, %v52, 0
  %v55 = vand.u32 %v41, %v53
  %57 = vmatprep.subr.bf16.mxu0 0
  %58 = vmatpush1.bf16.msra.mxu0 %v40
  %59 = vmatprep.subr.bf16.mxu0 0
  %60 = vmatpush1.bf16.msra.mxu0 %v55
  %61 = vmatprep.subr.bf16.mxu0 0
  %62 = vmatpush1.bf16.msra.mxu0 0
  %63 = vmatprep.subr.bf16.mxu0 0
  %64 = vmatpush1.bf16.msra.mxu0 0
  %65 = vmatprep.subr.bf16.mxu0 0
  %66 = vmatpush1.bf16.msra.mxu0 0
  %67 = vmatprep.subr.bf16.mxu0 0
  %68 = vmatpush1.bf16.msra.mxu0 0
  %69 = vmatprep.subr.bf16.mxu0 0
  %70 = vmatpush1.bf16.msra.mxu0 0
  %71 = vmatprep.subr.bf16.mxu0 0
  %72 = vmatpush1.bf16.msra.mxu0 0
  %73 = vmatprep.subr.bf16.mxu0 0
  %74 = vmatpush1.bf16.msra.mxu0 0
  %75 = vmatprep.subr.bf16.mxu0 0
  %76 = vmatpush1.bf16.msra.mxu0 0
  %77 = vmatprep.subr.bf16.mxu0 0
  %78 = vmatpush1.bf16.msra.mxu0 0
  %79 = vmatprep.subr.bf16.mxu0 0
  %80 = vmatpush1.bf16.msra.mxu0 0
  %81 = vmatprep.subr.bf16.mxu0 0
  %82 = vmatpush1.bf16.msra.mxu0 0
  %83 = vmatprep.subr.bf16.mxu0 0
  %84 = vmatpush1.bf16.msra.mxu0 0
  %85 = vmatprep.subr.bf16.mxu0 0
  %86 = vmatpush1.bf16.msra.mxu0 0
  %87 = vmatprep.subr.bf16.mxu0 0
  %88 = vmatpush1.bf16.msra.mxu0 0
  %89 = vmatprep.mubr.bf16.mxu0 0
  %90 = vmatmul.mubr.bf16.gmra.mrb[0].mxu0 %v45
  %v91 = vpop.f32.mrb[0].mxu0
  %v92 = vadd.f32 %v30, %v91
  %v93 = vpop.f32.mrb[0].mxu0
  %v94 = vpop.f32.mrb[0].mxu0
  %v95 = vadd.f32 %v30, %v94
  %v96 = vpop.f32.mrb[0].mxu0
  %97 = vmatprep.mubr.bf16.mxu0 0
  %98 = vmatmul.mubr.bf16.gmra.mrb[0].mxu0 %v48
  %v99 = vpop.f32.mrb[0].mxu0
  %v100 = vadd.f32 %v30, %v99
  %v101 = vpop.f32.mrb[0].mxu0
  %v102 = vpop.f32.mrb[0].mxu0
  %v103 = vadd.f32 %v30, %v102
  %v104 = vpop.f32.mrb[0].mxu0
  %105 = vdwg.mxu0
  %v106 = vpack.c.bf16 %v95, %v92
  %v107 = vpack.c.bf16 %v103, %v100
  %v110 = vunpack.c.l.b16 %v106
  %v111 = vunpack.c.h.b16 %v106
  %v112 = vunpack.c.l.b16 %v107
  %v113 = vunpack.c.h.b16 %v107
  %v114 = vpack.c.b16 %v110, %v110
  %v115 = vpack.c.b16 %v111, %v111
  %v116 = vpack.c.b16 %v112, %v112
  %v117 = vpack.c.b16 %v113, %v113
  %122 = vst [vmem:[%s3] sm:$0xf] %v114
  %123 = vst [vmem:[%s3 + $0x4] sm:$0xf] %v115
  %124 = vst [vmem:[%s3 + $0x8] sm:$0xf] %v116
  %125 = vst [vmem:[%s3 + $0xc] sm:$0xf] %v117
  // Predicated region
  $region14: #{rosettafold_forward.41} parent=0 // pred_check
    _
  $region15: #{rosettafold_forward.41} parent=0 // pred_check_branch
    %127 = sbr.rel (0) target = $region17
  $region16: #{rosettafold_forward.41} parent=0 // pred_region
    _
  $region17: #{rosettafold_forward.41} parent=0 // pred_fallthru
    _
  // Predicated region
  $region18: #{rosettafold_forward.41} parent=0 // pred_check
    _
  $region19: #{rosettafold_forward.41} parent=0 // pred_check_branch
    %129 = sbr.rel (0) target = $region21
  $region20: #{rosettafold_forward.41} parent=0 // pred_region
    _
  $region21: #{rosettafold_forward.41} parent=0 // pred_fallthru
    _

// kernel: rosettafold_forward.64
$region0: #{rosettafold_forward.64}
  #allocation0 [shape = 'u32[]', space=smem, size = 0x4, offset = 0x4, fixed_abs, tag = 'smem constant byte address 0x4 - core index']
  #allocation1 [shape = 'u32[144,128]{1,0:T(1,128)}', space=vmem, size = 0x12000, scoped, tag = 'internal scratch']
  %s0 = inlined_call_operand.vmem [shape: bf16[8,128], index: 0, kind: input, shape index: {}]
  %s1 = inlined_call_operand.vmem [shape: bf16[128,128], index: 1, kind: input, shape index: {}]
  %s2 = inlined_call_operand.vmem [shape: f32[1,128], index: 2, kind: input, shape index: {}]
  %s3 = inlined_call_operand.vmem [shape: bf16[8,128], index: 3, kind: output, shape index: {}]
  %s4 = sld [smem:[#allocation0]]
  $region22: #{rosettafold_forward.64} parent=0
    _
  %s6 = ssub.s32 1, %s4
  %s7 = scalar_select 0, %s6, %s4
  // Predicated region
  $region2: #{rosettafold_forward.64} parent=0 // pred_check
    _
  $region3: #{rosettafold_forward.64} parent=0 // pred_check_branch
    %9 = sbr.rel (0) target = $region5
  $region4: #{rosettafold_forward.64} parent=0 // pred_region
    _
  $region5: #{rosettafold_forward.64} parent=0 // pred_fallthru
    _
  // Predicated region
  $region6: #{rosettafold_forward.64} parent=0 // pred_check
    _
  $region7: #{rosettafold_forward.64} parent=0 // pred_check_branch
    %11 = sbr.rel (0) target = $region9
  $region8: #{rosettafold_forward.64} parent=0 // pred_region
    _
  $region9: #{rosettafold_forward.64} parent=0 // pred_fallthru
    _
  // Predicated region
  $region10: #{rosettafold_forward.64} parent=0 // pred_check
    _
  $region11: #{rosettafold_forward.64} parent=0 // pred_check_branch
    %13 = sbr.rel (0) target = $region13
  $region12: #{rosettafold_forward.64} parent=0 // pred_region
    _
  $region13: #{rosettafold_forward.64} parent=0 // pred_fallthru
    _
  %v15 = vld [vmem:[%s0] sm:$0xf]
  %v16 = vld [vmem:[%s1] sm:$0xf]
  %v17 = vld [vmem:[%s1 + $0x4] sm:$0xf]
  %v18 = vld [vmem:[%s1 + $0x8] sm:$0xf]
  %v19 = vld [vmem:[%s1 + $0xc] sm:$0xf]
  %v20 = vld [vmem:[%s1 + $0x10] sm:$0xf]
  %v21 = vld [vmem:[%s1 + $0x14] sm:$0xf]
  %v22 = vld [vmem:[%s1 + $0x18] sm:$0xf]
  %v23 = vld [vmem:[%s1 + $0x1c] sm:$0xf]
  %v24 = vld [vmem:[%s1 + $0x20] sm:$0xf]
  %v25 = vld [vmem:[%s1 + $0x24] sm:$0xf]
  %v26 = vld [vmem:[%s1 + $0x28] sm:$0xf]
  %v27 = vld [vmem:[%s1 + $0x2c] sm:$0xf]
  %v28 = vld [vmem:[%s1 + $0x30] sm:$0xf]
  %v29 = vld [vmem:[%s1 + $0x34] sm:$0xf]
  %v30 = vld [vmem:[%s1 + $0x38] sm:$0xf]
  %v31 = vld [vmem:[%s1 + $0x3c] sm:$0xf]
  %v32 = vld [vmem:[%s2] sm:$0x1]
  %v34 = vlaneseq
  %v35 = vshrl.u32 %v34, 7
  %v36 = vsub.s32 0, %v35
  %v37 = vrot.slane %v32, %v36
  %v55 = vunpack.c.l.b16 %v16
  %v56 = vunpack.c.l.b16 %v17
  %v57 = vunpack.c.l.b16 %v18
  %v58 = vunpack.c.l.b16 %v19
  %v59 = vunpack.c.l.b16 %v20
  %v60 = vunpack.c.l.b16 %v21
  %v61 = vunpack.c.l.b16 %v22
  %v62 = vunpack.c.l.b16 %v23
  %v63 = vunpack.c.l.b16 %v24
  %v64 = vunpack.c.l.b16 %v25
  %v65 = vunpack.c.l.b16 %v26
  %v66 = vunpack.c.l.b16 %v27
  %v67 = vunpack.c.l.b16 %v28
  %v68 = vunpack.c.l.b16 %v29
  %v69 = vunpack.c.l.b16 %v30
  %v70 = vunpack.c.l.b16 %v31
  %v71 = vpack.c.b16 %v56, %v55
  %v72 = vpack.c.b16 %v58, %v57
  %v73 = vpack.c.b16 %v60, %v59
  %v74 = vpack.c.b16 %v62, %v61
  %v75 = vpack.c.b16 %v64, %v63
  %v76 = vpack.c.b16 %v66, %v65
  %v77 = vpack.c.b16 %v68, %v67
  %v78 = vpack.c.b16 %v70, %v69
  %87 = vmatprep.subr.bf16.mxu0 0
  %88 = vmatpush1.bf16.msra.mxu0 %v71
  %89 = vmatprep.subr.bf16.mxu0 0
  %90 = vmatpush1.bf16.msra.mxu0 %v72
  %91 = vmatprep.subr.bf16.mxu0 0
  %92 = vmatpush1.bf16.msra.mxu0 %v73
  %93 = vmatprep.subr.bf16.mxu0 0
  %94 = vmatpush1.bf16.msra.mxu0 %v74
  %95 = vmatprep.subr.bf16.mxu0 0
  %96 = vmatpush1.bf16.msra.mxu0 %v75
  %97 = vmatprep.subr.bf16.mxu0 0
  %98 = vmatpush1.bf16.msra.mxu0 %v76
  %99 = vmatprep.subr.bf16.mxu0 0
  %100 = vmatpush1.bf16.msra.mxu0 %v77
  %101 = vmatprep.subr.bf16.mxu0 0
  %102 = vmatpush1.bf16.msra.mxu0 %v78
  %103 = vmatprep.subr.bf16.mxu0 0
  %104 = vmatpush1.bf16.msra.mxu0 0
  %105 = vmatprep.subr.bf16.mxu0 0
  %106 = vmatpush1.bf16.msra.mxu0 0
  %107 = vmatprep.subr.bf16.mxu0 0
  %108 = vmatpush1.bf16.msra.mxu0 0
  %109 = vmatprep.subr.bf16.mxu0 0
  %110 = vmatpush1.bf16.msra.mxu0 0
  %111 = vmatprep.subr.bf16.mxu0 0
  %112 = vmatpush1.bf16.msra.mxu0 0
  %113 = vmatprep.subr.bf16.mxu0 0
  %114 = vmatpush1.bf16.msra.mxu0 0
  %115 = vmatprep.subr.bf16.mxu0 0
  %116 = vmatpush1.bf16.msra.mxu0 0
  %117 = vmatprep.subr.bf16.mxu0 0
  %118 = vmatpush1.bf16.msra.mxu0 0
  %119 = vmatprep.mubr.bf16.mxu0 0
  %120 = vmatmul.mubr.bf16.gmra.mrb[0].mxu0 %v15
  %v121 = vpop.f32.mrb[0].mxu0
  %v122 = vadd.f32 %v37, %v121
  %v123 = vpop.f32.mrb[0].mxu0
  %v124 = vpop.f32.mrb[0].mxu0
  %v125 = vpop.f32.mrb[0].mxu0
  %126 = vdwg.mxu0
  %v127 = vpack.c.bf16 %v122, %v122
  %128 = vst [vmem:[%s3] sm:$0xf] %v127
  // Predicated region
  $region14: #{rosettafold_forward.64} parent=0 // pred_check
    _
  $region15: #{rosettafold_forward.64} parent=0 // pred_check_branch
    %130 = sbr.rel (0) target = $region17
  $region16: #{rosettafold_forward.64} parent=0 // pred_region
    _
  $region17: #{rosettafold_forward.64} parent=0 // pred_fallthru
    _
  // Predicated region
  $region18: #{rosettafold_forward.64} parent=0 // pred_check
    _
  $region19: #{rosettafold_forward.64} parent=0 // pred_check_branch
    %132 = sbr.rel (0) target = $region21
  $region20: #{rosettafold_forward.64} parent=0 // pred_region
    _
  $region21: #{rosettafold_forward.64} parent=0 // pred_fallthru
    _

// kernel: rosettafold_forward.45
$region0: #{rosettafold_forward.45}
  #allocation0 [shape = 'u32[]', space=smem, size = 0x4, offset = 0x4, fixed_abs, tag = 'smem constant byte address 0x4 - core index']
  #allocation1 [shape = 'u32[144,128]{1,0:T(1,128)}', space=vmem, size = 0x12000, scoped, tag = 'internal scratch']
  %s0 = inlined_call_operand.vmem [shape: bf16[32,128], index: 0, kind: input, shape index: {}]
  %s1 = inlined_call_operand.vmem [shape: bf16[128,128], index: 1, kind: input, shape index: {}]
  %s2 = inlined_call_operand.vmem [shape: f32[1,128], index: 2, kind: input, shape index: {}]
  %s3 = inlined_call_operand.vmem [shape: bf16[32,128], index: 3, kind: output, shape index: {}]
  %s4 = sld [smem:[#allocation0]]
  $region22: #{rosettafold_forward.45} parent=0
    _
  %s6 = ssub.s32 1, %s4
  %s7 = scalar_select 0, %s6, %s4
  // Predicated region
  $region2: #{rosettafold_forward.45} parent=0 // pred_check
    _
  $region3: #{rosettafold_forward.45} parent=0 // pred_check_branch
    %9 = sbr.rel (0) target = $region5
  $region4: #{rosettafold_forward.45} parent=0 // pred_region
    _
  $region5: #{rosettafold_forward.45} parent=0 // pred_fallthru
    _
  // Predicated region
  $region6: #{rosettafold_forward.45} parent=0 // pred_check
    _
  $region7: #{rosettafold_forward.45} parent=0 // pred_check_branch
    %11 = sbr.rel (0) target = $region9
  $region8: #{rosettafold_forward.45} parent=0 // pred_region
    _
  $region9: #{rosettafold_forward.45} parent=0 // pred_fallthru
    _
  // Predicated region
  $region10: #{rosettafold_forward.45} parent=0 // pred_check
    _
  $region11: #{rosettafold_forward.45} parent=0 // pred_check_branch
    %13 = sbr.rel (0) target = $region13
  $region12: #{rosettafold_forward.45} parent=0 // pred_region
    _
  $region13: #{rosettafold_forward.45} parent=0 // pred_fallthru
    _
  %v15 = vld [vmem:[%s0] sm:$0xf]
  %v16 = vld [vmem:[%s0 + $0x4] sm:$0xf]
  %v17 = vld [vmem:[%s0 + $0x8] sm:$0xf]
  %v18 = vld [vmem:[%s0 + $0xc] sm:$0xf]
  %v19 = vld [vmem:[%s1] sm:$0xf]
  %v20 = vld [vmem:[%s1 + $0x4] sm:$0xf]
  %v21 = vld [vmem:[%s1 + $0x8] sm:$0xf]
  %v22 = vld [vmem:[%s1 + $0xc] sm:$0xf]
  %v23 = vld [vmem:[%s1 + $0x10] sm:$0xf]
  %v24 = vld [vmem:[%s1 + $0x14] sm:$0xf]
  %v25 = vld [vmem:[%s1 + $0x18] sm:$0xf]
  %v26 = vld [vmem:[%s1 + $0x1c] sm:$0xf]
  %v27 = vld [vmem:[%s1 + $0x20] sm:$0xf]
  %v28 = vld [vmem:[%s1 + $0x24] sm:$0xf]
  %v29 = vld [vmem:[%s1 + $0x28] sm:$0xf]
  %v30 = vld [vmem:[%s1 + $0x2c] sm:$0xf]
  %v31 = vld [vmem:[%s1 + $0x30] sm:$0xf]
  %v32 = vld [vmem:[%s1 + $0x34] sm:$0xf]
  %v33 = vld [vmem:[%s1 + $0x38] sm:$0xf]
  %v34 = vld [vmem:[%s1 + $0x3c] sm:$0xf]
  %v35 = vld [vmem:[%s2] sm:$0x1]
  %v37 = vlaneseq
  %v38 = vshrl.u32 %v37, 7
  %v39 = vsub.s32 0, %v38
  %v40 = vrot.slane %v35, %v39
  %v46 = vunpack.c.l.b16 %v15
  %v47 = vunpack.c.l.b16 %v16
  %v48 = vunpack.c.l.b16 %v17
  %v49 = vunpack.c.l.b16 %v18
  %v50 = vpack.c.b16 %v47, %v46
  %v51 = vpack.c.b16 %v49, %v48
  %v70 = vunpack.c.l.b16 %v19
  %v71 = vunpack.c.l.b16 %v20
  %v72 = vunpack.c.l.b16 %v21
  %v73 = vunpack.c.l.b16 %v22
  %v74 = vunpack.c.l.b16 %v23
  %v75 = vunpack.c.l.b16 %v24
  %v76 = vunpack.c.l.b16 %v25
  %v77 = vunpack.c.l.b16 %v26
  %v78 = vunpack.c.l.b16 %v27
  %v79 = vunpack.c.l.b16 %v28
  %v80 = vunpack.c.l.b16 %v29
  %v81 = vunpack.c.l.b16 %v30
  %v82 = vunpack.c.l.b16 %v31
  %v83 = vunpack.c.l.b16 %v32
  %v84 = vunpack.c.l.b16 %v33
  %v85 = vunpack.c.l.b16 %v34
  %v86 = vpack.c.b16 %v71, %v70
  %v87 = vpack.c.b16 %v73, %v72
  %v88 = vpack.c.b16 %v75, %v74
  %v89 = vpack.c.b16 %v77, %v76
  %v90 = vpack.c.b16 %v79, %v78
  %v91 = vpack.c.b16 %v81, %v80
  %v92 = vpack.c.b16 %v83, %v82
  %v93 = vpack.c.b16 %v85, %v84
  %102 = vmatprep.subr.bf16.mxu0 0
  %103 = vmatpush1.bf16.msra.mxu0 %v86
  %104 = vmatprep.subr.bf16.mxu0 0
  %105 = vmatpush1.bf16.msra.mxu0 %v87
  %106 = vmatprep.subr.bf16.mxu0 0
  %107 = vmatpush1.bf16.msra.mxu0 %v88
  %108 = vmatprep.subr.bf16.mxu0 0
  %109 = vmatpush1.bf16.msra.mxu0 %v89
  %110 = vmatprep.subr.bf16.mxu0 0
  %111 = vmatpush1.bf16.msra.mxu0 %v90
  %112 = vmatprep.subr.bf16.mxu0 0
  %113 = vmatpush1.bf16.msra.mxu0 %v91
  %114 = vmatprep.subr.bf16.mxu0 0
  %115 = vmatpush1.bf16.msra.mxu0 %v92
  %116 = vmatprep.subr.bf16.mxu0 0
  %117 = vmatpush1.bf16.msra.mxu0 %v93
  %118 = vmatprep.subr.bf16.mxu0 0
  %119 = vmatpush1.bf16.msra.mxu0 0
  %120 = vmatprep.subr.bf16.mxu0 0
  %121 = vmatpush1.bf16.msra.mxu0 0
  %122 = vmatprep.subr.bf16.mxu0 0
  %123 = vmatpush1.bf16.msra.mxu0 0
  %124 = vmatprep.subr.bf16.mxu0 0
  %125 = vmatpush1.bf16.msra.mxu0 0
  %126 = vmatprep.subr.bf16.mxu0 0
  %127 = vmatpush1.bf16.msra.mxu0 0
  %128 = vmatprep.subr.bf16.mxu0 0
  %129 = vmatpush1.bf16.msra.mxu0 0
  %130 = vmatprep.subr.bf16.mxu0 0
  %131 = vmatpush1.bf16.msra.mxu0 0
  %132 = vmatprep.subr.bf16.mxu0 0
  %133 = vmatpush1.bf16.msra.mxu0 0
  %134 = vmatprep.mubr.bf16.mxu0 0
  %135 = vmatmul.mubr.bf16.gmra.mrb[0].mxu0 %v50
  %v136 = vpop.f32.mrb[0].mxu0
  %v137 = vadd.f32 %v40, %v136
  %v138 = vpop.f32.mrb[0].mxu0
  %v139 = vpop.f32.mrb[0].mxu0
  %v140 = vadd.f32 %v40, %v139
  %v141 = vpop.f32.mrb[0].mxu0
  %142 = vmatprep.mubr.bf16.mxu0 0
  %143 = vmatmul.mubr.bf16.gmra.mrb[0].mxu0 %v51
  %v144 = vpop.f32.mrb[0].mxu0
  %v145 = vadd.f32 %v40, %v144
  %v146 = vpop.f32.mrb[0].mxu0
  %v147 = vpop.f32.mrb[0].mxu0
  %v148 = vadd.f32 %v40, %v147
  %v149 = vpop.f32.mrb[0].mxu0
  %150 = vdwg.mxu0
  %v151 = vmul.f32 %v137, %v137
  %v152 = vmul.f32 %v140, %v140
  %v153 = vmul.f32 %v145, %v145
  %v154 = vmul.f32 %v148, %v148
  %v155 = vmul.f32 %v137, %v151
  %v156 = vmul.f32 %v140, %v152
  %v157 = vmul.f32 %v145, %v153
  %v158 = vmul.f32 %v148, %v154
  %v159 = vmul.f32 %v155, 0.044715
  %v160 = vmul.f32 %v156, 0.044715
  %v161 = vmul.f32 %v157, 0.044715
  %v162 = vmul.f32 %v158, 0.044715
  %v163 = vadd.f32 %v137, %v159
  %v164 = vadd.f32 %v140, %v160
  %v165 = vadd.f32 %v145, %v161
  %v166 = vadd.f32 %v148, %v162
  %v167 = vmul.f32 %v163, 0.7978846
  %v168 = vmul.f32 %v164, 0.7978846
  %v169 = vmul.f32 %v165, 0.7978846
  %v170 = vmul.f32 %v166, 0.7978846
  %v171 = vtanh.pop %v167
  %v172 = vtanh.pop %v168
  %v173 = vtanh.pop %v169
  %v174 = vtanh.pop %v170
  %v175 = vadd.f32 %v171, 1.0
  %v176 = vadd.f32 %v172, 1.0
  %v177 = vadd.f32 %v173, 1.0
  %v178 = vadd.f32 %v174, 1.0
  %v179 = vmul.f32 %v175, 0.5
  %v180 = vmul.f32 %v176, 0.5
  %v181 = vmul.f32 %v177, 0.5
  %v182 = vmul.f32 %v178, 0.5
  %v183 = vmul.f32 %v137, %v179
  %v184 = vmul.f32 %v140, %v180
  %v185 = vmul.f32 %v145, %v181
  %v186 = vmul.f32 %v148, %v182
  %v187 = vunpack.c.l.bf16 %v15
  %v188 = vunpack.c.l.bf16 %v16
  %v189 = vunpack.c.l.bf16 %v17
  %v190 = vunpack.c.l.bf16 %v18
  %v191 = vadd.f32 %v187, %v183
  %v192 = vadd.f32 %v188, %v184
  %v193 = vadd.f32 %v189, %v185
  %v194 = vadd.f32 %v190, %v186
  %v195 = vpack.c.bf16 %v192, %v191
  %v196 = vpack.c.bf16 %v194, %v193
  %v199 = vunpack.c.l.b16 %v195
  %v200 = vunpack.c.h.b16 %v195
  %v201 = vunpack.c.l.b16 %v196
  %v202 = vunpack.c.h.b16 %v196
  %v203 = vpack.c.b16 %v199, %v199
  %v204 = vpack.c.b16 %v200, %v200
  %v205 = vpack.c.b16 %v201, %v201
  %v206 = vpack.c.b16 %v202, %v202
  %211 = vst [vmem:[%s3] sm:$0xf] %v203
  %212 = vst [vmem:[%s3 + $0x4] sm:$0xf] %v204
  %213 = vst [vmem:[%s3 + $0x8] sm:$0xf] %v205
  %214 = vst [vmem:[%s3 + $0xc] sm:$0xf] %v206
  // Predicated region
  $region14: #{rosettafold_forward.45} parent=0 // pred_check
    _
  $region15: #{rosettafold_forward.45} parent=0 // pred_check_branch
    %216 = sbr.rel (0) target = $region17
  $region16: #{rosettafold_forward.45} parent=0 // pred_region
    _
  $region17: #{rosettafold_forward.45} parent=0 // pred_fallthru
    _
  // Predicated region
  $region18: #{rosettafold_forward.45} parent=0 // pred_check
    _
  $region19: #{rosettafold_forward.45} parent=0 // pred_check_branch
    %218 = sbr.rel (0) target = $region21
  $region20: #{rosettafold_forward.45} parent=0 // pred_region
    _
  $region21: #{rosettafold_forward.45} parent=0 // pred_fallthru
    _

// kernel: rosettafold_forward.44
$region0: #{rosettafold_forward.44}
  #allocation0 [shape = 'u32[]', space=smem, size = 0x4, offset = 0x4, fixed_abs, tag = 'smem constant byte address 0x4 - core index']
  #allocation1 [shape = 'u32[144,128]{1,0:T(1,128)}', space=vmem, size = 0x12000, scoped, tag = 'internal scratch']
  %s0 = inlined_call_operand.vmem [shape: f32[16,52], index: 0, kind: input, shape index: {}]
  %s1 = inlined_call_operand.vmem [shape: bf16[52,128], index: 1, kind: input, shape index: {}]
  %s2 = inlined_call_operand.vmem [shape: f32[1,128], index: 2, kind: input, shape index: {}]
  %s3 = inlined_call_operand.vmem [shape: f32[16,128], index: 3, kind: output, shape index: {}]
  %s4 = sld [smem:[#allocation0]]
  $region22: #{rosettafold_forward.44} parent=0
    _
  %s6 = ssub.s32 1, %s4
  %s7 = scalar_select 0, %s6, %s4
  // Predicated region
  $region2: #{rosettafold_forward.44} parent=0 // pred_check
    _
  $region3: #{rosettafold_forward.44} parent=0 // pred_check_branch
    %9 = sbr.rel (0) target = $region5
  $region4: #{rosettafold_forward.44} parent=0 // pred_region
    _
  $region5: #{rosettafold_forward.44} parent=0 // pred_fallthru
    _
  // Predicated region
  $region6: #{rosettafold_forward.44} parent=0 // pred_check
    _
  $region7: #{rosettafold_forward.44} parent=0 // pred_check_branch
    %11 = sbr.rel (0) target = $region9
  $region8: #{rosettafold_forward.44} parent=0 // pred_region
    _
  $region9: #{rosettafold_forward.44} parent=0 // pred_fallthru
    _
  // Predicated region
  $region10: #{rosettafold_forward.44} parent=0 // pred_check
    _
  $region11: #{rosettafold_forward.44} parent=0 // pred_check_branch
    %13 = sbr.rel (0) target = $region13
  $region12: #{rosettafold_forward.44} parent=0 // pred_region
    _
  $region13: #{rosettafold_forward.44} parent=0 // pred_fallthru
    _
  %v15 = vld [vmem:[%s0] sm:$0xff]
  %v16 = vld [vmem:[%s0 + $0x8] sm:$0xff]
  %v17 = vpack.c.bf16 %v16, %v15
  %v18 = vld [vmem:[%s1] sm:$0xf]
  %v19 = vld [vmem:[%s1 + $0x4] sm:$0xf]
  %v20 = vld [vmem:[%s1 + $0x8] sm:$0xf]
  %v21 = vld [vmem:[%s1 + $0xc] sm:$0xf]
  %v22 = vld [vmem:[%s1 + $0x10] sm:$0xf]
  %v23 = vld [vmem:[%s1 + $0x14] sm:$0xf]
  %v24 = vld [vmem:[%s1 + $0x18] sm:$0x3]
  %v25 = vld [vmem:[%s2] sm:$0x1]
  %v27 = vlaneseq
  %v28 = vshrl.u32 %v27, 7
  %v29 = vsub.s32 0, %v28
  %v30 = vrot.slane %v25, %v29
  %v39 = vunpack.c.l.b16 %v18
  %v40 = vunpack.c.l.b16 %v19
  %v41 = vunpack.c.l.b16 %v20
  %v42 = vunpack.c.l.b16 %v21
  %v43 = vunpack.c.l.b16 %v22
  %v44 = vunpack.c.l.b16 %v23
  %v45 = vunpack.c.l.b16 %v24
  %v46 = vpack.c.b16 %v40, %v39
  %v47 = vpack.c.b16 %v42, %v41
  %v48 = vpack.c.b16 %v44, %v43
  %v49 = vpack.c.b16 %v45, %v45
  %vm53 = vcmask 424960
  %v55 = vsel %vm53, %v17, 0
  %vm57 = vcmask 1041408
  %v59 = vsel %vm57, %v49, 0
  %61 = vmatprep.subr.bf16.mxu0 0
  %62 = vmatpush1.bf16.msra.mxu0 %v46
  %63 = vmatprep.subr.bf16.mxu0 0
  %64 = vmatpush1.bf16.msra.mxu0 %v47
  %65 = vmatprep.subr.bf16.mxu0 0
  %66 = vmatpush1.bf16.msra.mxu0 %v48
  %67 = vmatprep.subr.bf16.mxu0 0
  %68 = vmatpush1.bf16.msra.mxu0 %v59
  %69 = vmatprep.subr.bf16.mxu0 0
  %70 = vmatpush1.bf16.msra.mxu0 0
  %71 = vmatprep.subr.bf16.mxu0 0
  %72 = vmatpush1.bf16.msra.mxu0 0
  %73 = vmatprep.subr.bf16.mxu0 0
  %74 = vmatpush1.bf16.msra.mxu0 0
  %75 = vmatprep.subr.bf16.mxu0 0
  %76 = vmatpush1.bf16.msra.mxu0 0
  %77 = vmatprep.subr.bf16.mxu0 0
  %78 = vmatpush1.bf16.msra.mxu0 0
  %79 = vmatprep.subr.bf16.mxu0 0
  %80 = vmatpush1.bf16.msra.mxu0 0
  %81 = vmatprep.subr.bf16.mxu0 0
  %82 = vmatpush1.bf16.msra.mxu0 0
  %83 = vmatprep.subr.bf16.mxu0 0
  %84 = vmatpush1.bf16.msra.mxu0 0
  %85 = vmatprep.subr.bf16.mxu0 0
  %86 = vmatpush1.bf16.msra.mxu0 0
  %87 = vmatprep.subr.bf16.mxu0 0
  %88 = vmatpush1.bf16.msra.mxu0 0
  %89 = vmatprep.subr.bf16.mxu0 0
  %90 = vmatpush1.bf16.msra.mxu0 0
  %91 = vmatprep.subr.bf16.mxu0 0
  %92 = vmatpush1.bf16.msra.mxu0 0
  %93 = vmatprep.mubr.bf16.mxu0 0
  %94 = vmatmul.mubr.bf16.gmra.mrb[0].mxu0 %v55
  %v95 = vpop.f32.mrb[0].mxu0
  %v96 = vadd.f32 %v30, %v95
  %v97 = vpop.f32.mrb[0].mxu0
  %v98 = vpop.f32.mrb[0].mxu0
  %v99 = vadd.f32 %v30, %v98
  %v100 = vpop.f32.mrb[0].mxu0
  %101 = vdwg.mxu0
  %102 = vst [vmem:[%s3] sm:$0xff] %v96
  %103 = vst [vmem:[%s3 + $0x8] sm:$0xff] %v99
  // Predicated region
  $region14: #{rosettafold_forward.44} parent=0 // pred_check
    _
  $region15: #{rosettafold_forward.44} parent=0 // pred_check_branch
    %105 = sbr.rel (0) target = $region17
  $region16: #{rosettafold_forward.44} parent=0 // pred_region
    _
  $region17: #{rosettafold_forward.44} parent=0 // pred_fallthru
    _
  // Predicated region
  $region18: #{rosettafold_forward.44} parent=0 // pred_check
    _
  $region19: #{rosettafold_forward.44} parent=0 // pred_check_branch
    %107 = sbr.rel (0) target = $region21
  $region20: #{rosettafold_forward.44} parent=0 // pred_region
    _
  $region21: #{rosettafold_forward.44} parent=0 // pred_fallthru
    _

// kernel: rosettafold_forward.49
$region0: #{rosettafold_forward.49}
  #allocation0 [shape = 'u32[]', space=smem, size = 0x4, offset = 0x4, fixed_abs, tag = 'smem constant byte address 0x4 - core index']
  #allocation1 [shape = 'u32[144,128]{1,0:T(1,128)}', space=vmem, size = 0x12000, scoped, tag = 'internal scratch']
  %s0 = inlined_call_operand.vmem [shape: bf16[8,128], index: 0, kind: input, shape index: {}]
  %s1 = inlined_call_operand.vmem [shape: bf16[8,128], index: 1, kind: input, shape index: {}]
  %s2 = inlined_call_operand.vmem [shape: bf16[128,128], index: 2, kind: input, shape index: {}]
  %s3 = inlined_call_operand.vmem [shape: bf16[128,128], index: 3, kind: input, shape index: {}]
  %s4 = inlined_call_operand.vmem [shape: f32[1,128], index: 4, kind: input, shape index: {}]
  %s5 = inlined_call_operand.vmem [shape: bf16[8,128], index: 5, kind: output, shape index: {}]
  %s6 = sld [smem:[#allocation0]]
  $region30: #{rosettafold_forward.49} parent=0
    _
  %s8 = ssub.s32 1, %s6
  %s9 = scalar_select 0, %s8, %s6
  // Predicated region
  $region2: #{rosettafold_forward.49} parent=0 // pred_check
    _
  $region3: #{rosettafold_forward.49} parent=0 // pred_check_branch
    %11 = sbr.rel (0) target = $region5
  $region4: #{rosettafold_forward.49} parent=0 // pred_region
    _
  $region5: #{rosettafold_forward.49} parent=0 // pred_fallthru
    _
  // Predicated region
  $region6: #{rosettafold_forward.49} parent=0 // pred_check
    _
  $region7: #{rosettafold_forward.49} parent=0 // pred_check_branch
    %13 = sbr.rel (0) target = $region9
  $region8: #{rosettafold_forward.49} parent=0 // pred_region
    _
  $region9: #{rosettafold_forward.49} parent=0 // pred_fallthru
    _
  // Predicated region
  $region10: #{rosettafold_forward.49} parent=0 // pred_check
    _
  $region11: #{rosettafold_forward.49} parent=0 // pred_check_branch
    %15 = sbr.rel (0) target = $region13
  $region12: #{rosettafold_forward.49} parent=0 // pred_region
    _
  $region13: #{rosettafold_forward.49} parent=0 // pred_fallthru
    _
  // Predicated region
  $region14: #{rosettafold_forward.49} parent=0 // pred_check
    _
  $region15: #{rosettafold_forward.49} parent=0 // pred_check_branch
    %17 = sbr.rel (0) target = $region17
  $region16: #{rosettafold_forward.49} parent=0 // pred_region
    _
  $region17: #{rosettafold_forward.49} parent=0 // pred_fallthru
    _
  // Predicated region
  $region18: #{rosettafold_forward.49} parent=0 // pred_check
    _
  $region19: #{rosettafold_forward.49} parent=0 // pred_check_branch
    %19 = sbr.rel (0) target = $region21
  $region20: #{rosettafold_forward.49} parent=0 // pred_region
    _
  $region21: #{rosettafold_forward.49} parent=0 // pred_fallthru
    _
  %v21 = vld [vmem:[%s0] sm:$0xf]
  %v22 = vld [vmem:[%s2] sm:$0xf]
  %v23 = vld [vmem:[%s2 + $0x4] sm:$0xf]
  %v24 = vld [vmem:[%s2 + $0x8] sm:$0xf]
  %v25 = vld [vmem:[%s2 + $0xc] sm:$0xf]
  %v26 = vld [vmem:[%s2 + $0x10] sm:$0xf]
  %v27 = vld [vmem:[%s2 + $0x14] sm:$0xf]
  %v28 = vld [vmem:[%s2 + $0x18] sm:$0xf]
  %v29 = vld [vmem:[%s2 + $0x1c] sm:$0xf]
  %v30 = vld [vmem:[%s2 + $0x20] sm:$0xf]
  %v31 = vld [vmem:[%s2 + $0x24] sm:$0xf]
  %v32 = vld [vmem:[%s2 + $0x28] sm:$0xf]
  %v33 = vld [vmem:[%s2 + $0x2c] sm:$0xf]
  %v34 = vld [vmem:[%s2 + $0x30] sm:$0xf]
  %v35 = vld [vmem:[%s2 + $0x34] sm:$0xf]
  %v36 = vld [vmem:[%s2 + $0x38] sm:$0xf]
  %v37 = vld [vmem:[%s2 + $0x3c] sm:$0xf]
  %v38 = vld [vmem:[%s1] sm:$0xf]
  %v39 = vld [vmem:[%s3] sm:$0xf]
  %v40 = vld [vmem:[%s3 + $0x4] sm:$0xf]
  %v41 = vld [vmem:[%s3 + $0x8] sm:$0xf]
  %v42 = vld [vmem:[%s3 + $0xc] sm:$0xf]
  %v43 = vld [vmem:[%s3 + $0x10] sm:$0xf]
  %v44 = vld [vmem:[%s3 + $0x14] sm:$0xf]
  %v45 = vld [vmem:[%s3 + $0x18] sm:$0xf]
  %v46 = vld [vmem:[%s3 + $0x1c] sm:$0xf]
  %v47 = vld [vmem:[%s3 + $0x20] sm:$0xf]
  %v48 = vld [vmem:[%s3 + $0x24] sm:$0xf]
  %v49 = vld [vmem:[%s3 + $0x28] sm:$0xf]
  %v50 = vld [vmem:[%s3 + $0x2c] sm:$0xf]
  %v51 = vld [vmem:[%s3 + $0x30] sm:$0xf]
  %v52 = vld [vmem:[%s3 + $0x34] sm:$0xf]
  %v53 = vld [vmem:[%s3 + $0x38] sm:$0xf]
  %v54 = vld [vmem:[%s3 + $0x3c] sm:$0xf]
  %v71 = vunpack.c.l.b16 %v39
  %v72 = vunpack.c.l.b16 %v40
  %v73 = vunpack.c.l.b16 %v41
  %v74 = vunpack.c.l.b16 %v42
  %v75 = vunpack.c.l.b16 %v43
  %v76 = vunpack.c.l.b16 %v44
  %v77 = vunpack.c.l.b16 %v45
  %v78 = vunpack.c.l.b16 %v46
  %v79 = vunpack.c.l.b16 %v47
  %v80 = vunpack.c.l.b16 %v48
  %v81 = vunpack.c.l.b16 %v49
  %v82 = vunpack.c.l.b16 %v50
  %v83 = vunpack.c.l.b16 %v51
  %v84 = vunpack.c.l.b16 %v52
  %v85 = vunpack.c.l.b16 %v53
  %v86 = vunpack.c.l.b16 %v54
  %v87 = vpack.c.b16 %v72, %v71
  %v88 = vpack.c.b16 %v74, %v73
  %v89 = vpack.c.b16 %v76, %v75
  %v90 = vpack.c.b16 %v78, %v77
  %v91 = vpack.c.b16 %v80, %v79
  %v92 = vpack.c.b16 %v82, %v81
  %v93 = vpack.c.b16 %v84, %v83
  %v94 = vpack.c.b16 %v86, %v85
  %103 = vmatprep.subr.bf16.mxu0 0
  %104 = vmatpush1.bf16.msra.mxu0 %v87
  %105 = vmatprep.subr.bf16.mxu0 0
  %106 = vmatpush1.bf16.msra.mxu0 %v88
  %107 = vmatprep.subr.bf16.mxu0 0
  %108 = vmatpush1.bf16.msra.mxu0 %v89
  %109 = vmatprep.subr.bf16.mxu0 0
  %110 = vmatpush1.bf16.msra.mxu0 %v90
  %111 = vmatprep.subr.bf16.mxu0 0
  %112 = vmatpush1.bf16.msra.mxu0 %v91
  %113 = vmatprep.subr.bf16.mxu0 0
  %114 = vmatpush1.bf16.msra.mxu0 %v92
  %115 = vmatprep.subr.bf16.mxu0 0
  %116 = vmatpush1.bf16.msra.mxu0 %v93
  %117 = vmatprep.subr.bf16.mxu0 0
  %118 = vmatpush1.bf16.msra.mxu0 %v94
  %119 = vmatprep.subr.bf16.mxu0 0
  %120 = vmatpush1.bf16.msra.mxu0 0
  %121 = vmatprep.subr.bf16.mxu0 0
  %122 = vmatpush1.bf16.msra.mxu0 0
  %123 = vmatprep.subr.bf16.mxu0 0
  %124 = vmatpush1.bf16.msra.mxu0 0
  %125 = vmatprep.subr.bf16.mxu0 0
  %126 = vmatpush1.bf16.msra.mxu0 0
  %127 = vmatprep.subr.bf16.mxu0 0
  %128 = vmatpush1.bf16.msra.mxu0 0
  %129 = vmatprep.subr.bf16.mxu0 0
  %130 = vmatpush1.bf16.msra.mxu0 0
  %131 = vmatprep.subr.bf16.mxu0 0
  %132 = vmatpush1.bf16.msra.mxu0 0
  %133 = vmatprep.subr.bf16.mxu0 0
  %134 = vmatpush1.bf16.msra.mxu0 0
  %135 = vmatprep.mubr.bf16.mxu0 0
  %136 = vmatmul.mubr.bf16.gmra.mrb[0].mxu0 %v38
  %v137 = vpop.f32.mrb[0].mxu0
  %v138 = vadd.f32 0.0, %v137
  %v139 = vpop.f32.mrb[0].mxu0
  %v140 = vpop.f32.mrb[0].mxu0
  %v141 = vpop.f32.mrb[0].mxu0
  %142 = vdwg.mxu0
  %v159 = vunpack.c.l.b16 %v22
  %v160 = vunpack.c.l.b16 %v23
  %v161 = vunpack.c.l.b16 %v24
  %v162 = vunpack.c.l.b16 %v25
  %v163 = vunpack.c.l.b16 %v26
  %v164 = vunpack.c.l.b16 %v27
  %v165 = vunpack.c.l.b16 %v28
  %v166 = vunpack.c.l.b16 %v29
  %v167 = vunpack.c.l.b16 %v30
  %v168 = vunpack.c.l.b16 %v31
  %v169 = vunpack.c.l.b16 %v32
  %v170 = vunpack.c.l.b16 %v33
  %v171 = vunpack.c.l.b16 %v34
  %v172 = vunpack.c.l.b16 %v35
  %v173 = vunpack.c.l.b16 %v36
  %v174 = vunpack.c.l.b16 %v37
  %v175 = vpack.c.b16 %v160, %v159
  %v176 = vpack.c.b16 %v162, %v161
  %v177 = vpack.c.b16 %v164, %v163
  %v178 = vpack.c.b16 %v166, %v165
  %v179 = vpack.c.b16 %v168, %v167
  %v180 = vpack.c.b16 %v170, %v169
  %v181 = vpack.c.b16 %v172, %v171
  %v182 = vpack.c.b16 %v174, %v173
  %191 = vmatprep.subr.bf16.mxu0 0
  %192 = vmatpush1.bf16.msra.mxu0 %v175
  %193 = vmatprep.subr.bf16.mxu0 0
  %194 = vmatpush1.bf16.msra.mxu0 %v176
  %195 = vmatprep.subr.bf16.mxu0 0
  %196 = vmatpush1.bf16.msra.mxu0 %v177
  %197 = vmatprep.subr.bf16.mxu0 0
  %198 = vmatpush1.bf16.msra.mxu0 %v178
  %199 = vmatprep.subr.bf16.mxu0 0
  %200 = vmatpush1.bf16.msra.mxu0 %v179
  %201 = vmatprep.subr.bf16.mxu0 0
  %202 = vmatpush1.bf16.msra.mxu0 %v180
  %203 = vmatprep.subr.bf16.mxu0 0
  %204 = vmatpush1.bf16.msra.mxu0 %v181
  %205 = vmatprep.subr.bf16.mxu0 0
  %206 = vmatpush1.bf16.msra.mxu0 %v182
  %207 = vmatprep.subr.bf16.mxu0 0
  %208 = vmatpush1.bf16.msra.mxu0 0
  %209 = vmatprep.subr.bf16.mxu0 0
  %210 = vmatpush1.bf16.msra.mxu0 0
  %211 = vmatprep.subr.bf16.mxu0 0
  %212 = vmatpush1.bf16.msra.mxu0 0
  %213 = vmatprep.subr.bf16.mxu0 0
  %214 = vmatpush1.bf16.msra.mxu0 0
  %215 = vmatprep.subr.bf16.mxu0 0
  %216 = vmatpush1.bf16.msra.mxu0 0
  %217 = vmatprep.subr.bf16.mxu0 0
  %218 = vmatpush1.bf16.msra.mxu0 0
  %219 = vmatprep.subr.bf16.mxu0 0
  %220 = vmatpush1.bf16.msra.mxu0 0
  %221 = vmatprep.subr.bf16.mxu0 0
  %222 = vmatpush1.bf16.msra.mxu0 0
  %223 = vmatprep.mubr.bf16.mxu0 0
  %224 = vmatmul.mubr.bf16.gmra.mrb[0].mxu0 %v21
  %v225 = vpop.f32.mrb[0].mxu0
  %v226 = vadd.f32 %v138, %v225
  %v227 = vpop.f32.mrb[0].mxu0
  %v228 = vpop.f32.mrb[0].mxu0
  %v229 = vpop.f32.mrb[0].mxu0
  %230 = vdwg.mxu0
  %v231 = vld [vmem:[%s4] sm:$0x1]
  %v233 = vlaneseq
  %v234 = vshrl.u32 %v233, 7
  %v235 = vsub.s32 0, %v234
  %v236 = vrot.slane %v231, %v235
  %v238 = vadd.f32 %v226, %v236
  %v239 = vtanh.pop %v238
  %v240 = vunpack.c.l.bf16 %v21
  %v241 = vadd.f32 %v240, %v239
  %v242 = vpack.c.bf16 %v241, %v241
  %243 = vst [vmem:[%s5] sm:$0xf] %v242
  // Predicated region
  $region22: #{rosettafold_forward.49} parent=0 // pred_check
    _
  $region23: #{rosettafold_forward.49} parent=0 // pred_check_branch
    %245 = sbr.rel (0) target = $region25
  $region24: #{rosettafold_forward.49} parent=0 // pred_region
    _
  $region25: #{rosettafold_forward.49} parent=0 // pred_fallthru
    _
  // Predicated region
  $region26: #{rosettafold_forward.49} parent=0 // pred_check
    _
  $region27: #{rosettafold_forward.49} parent=0 // pred_check_branch
    %247 = sbr.rel (0) target = $region29
  $region28: #{rosettafold_forward.49} parent=0 // pred_region
    _
  $region29: #{rosettafold_forward.49} parent=0 // pred_fallthru
    _

// kernel: rosettafold_forward.39
$region0: #{rosettafold_forward.39}
  #allocation0 [shape = 'u32[]', space=smem, size = 0x4, offset = 0x4, fixed_abs, tag = 'smem constant byte address 0x4 - core index']
  #allocation1 [shape = 'u32[144,128]{1,0:T(1,128)}', space=vmem, size = 0x12000, scoped, tag = 'internal scratch']
  %s0 = inlined_call_operand.vmem [shape: f32[64,36], index: 0, kind: input, shape index: {}]
  %s1 = inlined_call_operand.vmem [shape: bf16[36,128], index: 1, kind: input, shape index: {}]
  %s2 = inlined_call_operand.vmem [shape: f32[1,128], index: 2, kind: input, shape index: {}]
  %s3 = inlined_call_operand.vmem [shape: f32[64,128], index: 3, kind: output, shape index: {}]
  %s4 = sld [smem:[#allocation0]]
  $region45: #{rosettafold_forward.39} parent=0
    _
  %s6 = ssub.s32 1, %s4
  %s7 = scalar_select 0, %s6, %s4
  loop: start=0, step=1, limit=4
  $region2: #{rosettafold_forward.39} parent=0 // loop_pre_header
    _
  $region3: #{rosettafold_forward.39} parent=0 // loop_header
    %s9 = sphi 0, %s13
    %p10 = scmp.ge.s32.totalorder %s9, 4
    %s19 = sphi 0, %s21
    %s22 = sphi 0, %s19
    %s23 = sphi 0, %s22
    %s39 = sphi 0, %s23
    %s43 = sphi 0, %s43
    %s45 = sphi 0, %s43
    %s46 = sphi 0, %s45
    %s60 = sphi 0, %s46
    %s64 = sphi 0, %s64
    %s66 = sphi 0, %s64
    %s67 = sphi 0, %s66
    %s81 = sphi 0, %s67
    %s87 = sphi 0, %s89
    %s90 = sphi 0, %s87
    %s91 = sphi 0, %s90
    %s107 = sphi 0, %s91
  $region4: #{rosettafold_forward.39} parent=0 // loop_header_branch
    %12 = sbr.rel (%p10) target = $region8
  $region5: #{rosettafold_forward.39} parent=0 // loop_body
    %s14 = ssub.s32 %s9, 1
    %s15 = ssub.s32 %s9, 2
    %s16 = sadd.s32 %s9, 1
    %s17 = ssub.s32 %s9, %s16
    %p18 = scmp.eq.s32.totalorder %s17, 0
    %s20 = sadd.s32 %s19, 1
    %s21 = scalar_select %p18, %s19, %s20
    %p24 = pneg %p18
    %p25 = scmp.eq.s32.totalorder %s9, 1
    %p26 = por %p24, %p25
    %p27 = scmp.ne.s32.totalorder %s19, %s22
    %p28 = scmp.eq.s32.totalorder %s9, 0
    %p29 = por %p27, %p28
    %p30 = scmp.ne.s32.totalorder %s19, %s22
    %p31 = scmp.eq.s32.totalorder %s14, 1
    %p32 = por %p30, %p31
    %p33 = scmp.ne.s32.totalorder %s22, %s23
    %p34 = scmp.eq.s32.totalorder %s14, 0
    %p35 = por %p33, %p34
    %p36 = scmp.ne.s32.totalorder %s22, %s23
    %p37 = scmp.eq.s32.totalorder %s15, 1
    %p38 = por %p36, %p37
    %p40 = scmp.ne.s32.totalorder %s23, %s39
    %p41 = scmp.eq.s32.totalorder %s15, 0
    %p42 = por %p40, %p41
    %s44 = sadd.s32 %s43, 1
    %p47 = scmp.eq.s32.totalorder %s9, 1
    %p48 = scmp.ne.s32.totalorder %s43, %s45
    %p49 = scmp.eq.s32.totalorder %s9, 0
    %p50 = por %p48, %p49
    %p51 = scmp.ne.s32.totalorder %s43, %s45
    %p52 = scmp.eq.s32.totalorder %s14, 1
    %p53 = por %p51, %p52
    %p54 = scmp.ne.s32.totalorder %s45, %s46
    %p55 = scmp.eq.s32.totalorder %s14, 0
    %p56 = por %p54, %p55
    %p57 = scmp.ne.s32.totalorder %s45, %s46
    %p58 = scmp.eq.s32.totalorder %s15, 1
    %p59 = por %p57, %p58
    %p61 = scmp.ne.s32.totalorder %s46, %s60
    %p62 = scmp.eq.s32.totalorder %s15, 0
    %p63 = por %p61, %p62
    %s65 = sadd.s32 %s64, 1
    %p68 = scmp.eq.s32.totalorder %s9, 1
    %p69 = scmp.ne.s32.totalorder %s64, %s66
    %p70 = scmp.eq.s32.totalorder %s9, 0
    %p71 = por %p69, %p70
    %p72 = scmp.ne.s32.totalorder %s64, %s66
    %p73 = scmp.eq.s32.totalorder %s14, 1
    %p74 = por %p72, %p73
    %p75 = scmp.ne.s32.totalorder %s66, %s67
    %p76 = scmp.eq.s32.totalorder %s14, 0
    %p77 = por %p75, %p76
    %p78 = scmp.ne.s32.totalorder %s66, %s67
    %p79 = scmp.eq.s32.totalorder %s15, 1
    %p80 = por %p78, %p79
    %p82 = scmp.ne.s32.totalorder %s67, %s81
    %p83 = scmp.eq.s32.totalorder %s15, 0
    %p84 = por %p82, %p83
    %s85 = ssub.s32 %s9, %s16
    %p86 = scmp.eq.s32.totalorder %s85, 0
    %s88 = sadd.s32 %s87, 1
    %s89 = scalar_select %p86, %s87, %s88
    %p92 = pneg %p86
    %p93 = scmp.eq.s32.totalorder %s9, 1
    %p94 = por %p92, %p93
    %p95 = scmp.ne.s32.totalorder %s87, %s90
    %p96 = scmp.eq.s32.totalorder %s9, 0
    %p97 = por %p95, %p96
    %p98 = scmp.ne.s32.totalorder %s87, %s90
    %p99 = scmp.eq.s32.totalorder %s14, 1
    %p100 = por %p98, %p99
    %p101 = scmp.ne.s32.totalorder %s90, %s91
    %p102 = scmp.eq.s32.totalorder %s14, 0
    %p103 = por %p101, %p102
    %p104 = scmp.ne.s32.totalorder %s90, %s91
    %p105 = scmp.eq.s32.totalorder %s15, 1
    %p106 = por %p104, %p105
    %p108 = scmp.ne.s32.totalorder %s91, %s107
    %p109 = scmp.eq.s32.totalorder %s15, 0
    %p110 = por %p108, %p109
    %p111 = scmp.le.s32.totalorder 1, %s9
    %p112 = scmp.lt.s32.totalorder %s9, 3
    %p113 = pnand %p111, %p112
    %p114 = pneg %p113
    // Predicated region
    $region9: #{rosettafold_forward.39} parent=5 // pred_check
      _
    $region10: #{rosettafold_forward.39} parent=5 // pred_check_branch
      %116 = sbr.rel (%p113) target = $region12
    $region11: #{rosettafold_forward.39} parent=5 // pred_region
      %s117 = ssub.s32 %s9, 1
      // Predicated region
      $region13: #{rosettafold_forward.39} parent=11 // pred_check
        %p118 = pneg %p56
      $region14: #{rosettafold_forward.39} parent=11 // pred_check_branch
        %120 = sbr.rel (%p118) target = $region16
      $region15: #{rosettafold_forward.39} parent=11 // pred_region
        _
      $region16: #{rosettafold_forward.39} parent=11 // pred_fallthru
        _
      // Predicated region
      $region17: #{rosettafold_forward.39} parent=11 // pred_check
        %p121 = pneg %p77
      $region18: #{rosettafold_forward.39} parent=11 // pred_check_branch
        %123 = sbr.rel (%p121) target = $region20
      $region19: #{rosettafold_forward.39} parent=11 // pred_region
        _
      $region20: #{rosettafold_forward.39} parent=11 // pred_fallthru
        _
    $region12: #{rosettafold_forward.39} parent=5 // pred_fallthru
      _
    %p124 = scmp.lt.s32.totalorder %s9, 2
    // Predicated region
    $region21: #{rosettafold_forward.39} parent=5 // pred_check
      %p125 = pneg %p124
    $region22: #{rosettafold_forward.39} parent=5 // pred_check_branch
      %127 = sbr.rel (%p125) target = $region24
    $region23: #{rosettafold_forward.39} parent=5 // pred_region
      // Predicated region
      $region25: #{rosettafold_forward.39} parent=23 // pred_check
        %p128 = pneg %p29
      $region26: #{rosettafold_forward.39} parent=23 // pred_check_branch
        %130 = sbr.rel (%p128) target = $region28
      $region27: #{rosettafold_forward.39} parent=23 // pred_region
        %s131 = smul.u32 4, %s9
        %p132 = scmp.lt.s32.totalorder %s131, 7
        %s133 = scalar_select %p132, %s131, 7
        %s134 = smul.addr %s133, 8
        %s135 = scalar_lea.vmem %s0, %s134
        %s136 = smul.u32 4, %s9
      $region28: #{rosettafold_forward.39} parent=23 // pred_fallthru
        _
    $region24: #{rosettafold_forward.39} parent=5 // pred_fallthru
      _
    %p137 = scmp.le.s32.totalorder 1, %s9
    %p138 = scmp.lt.s32.totalorder %s9, 3
    %p139 = pnand %p137, %p138
    %p140 = pneg %p139
    // Predicated region
    $region29: #{rosettafold_forward.39} parent=5 // pred_check
      _
    $region30: #{rosettafold_forward.39} parent=5 // pred_check_branch
      %142 = sbr.rel (%p139) target = $region32
    $region31: #{rosettafold_forward.39} parent=5 // pred_region
      %s143 = ssub.s32 %s9, 1
      %s144 = smul.u32 4, %s14
      %p145 = scmp.lt.s32.totalorder %s144, 7
      %s146 = scalar_select %p145, %s144, 7
      %s147 = smul.addr %s146, 8
      %s148 = scalar_lea.vmem %s0, %s147
      %p149 = pneg %p35
      %p150 = pneg %p32
      %p151 = pneg %p56
      %p152 = pneg %p53
      %p153 = pneg %p77
      %p154 = pneg %p74
      %p155 = pneg %p103
      %p156 = pneg %p100
      %s157 = smul.u32 4, %s14
      %p158 = scmp.lt.s32.totalorder %s157, 7
      %s159 = scalar_select %p158, %s157, 7
      %s160 = smul.addr %s159, 8
      %s161 = scalar_lea.vmem %s3, %s160
      %s162 = smul.u32 4, %s14
      %p163 = scmp.lt.s32.totalorder %s162, 7
      %s164 = scalar_select %p163, %s162, 7
      %s165 = smul.addr %s164, 8
      %s166 = scalar_lea.vmem %s0, %s165
      %s167 = smul.u32 4, %s14
      %s168 = smul.u32 4, %s14
      %p169 = scmp.lt.s32.totalorder %s168, 7
      %s170 = scalar_select %p169, %s168, 7
      %s171 = smul.addr %s170, 8
      %s172 = scalar_lea.vmem %s3, %s171
      %s173 = smul.u32 4, %s14
      %v175 = vld [vmem:[%s166] sm:$0xff]
      %v176 = vld [vmem:[%s166 + $0x8] sm:$0xff]
      %v177 = vld [vmem:[%s166 + $0x10] sm:$0xff]
      %v178 = vld [vmem:[%s166 + $0x18] sm:$0xff]
      %v179 = vpack.c.bf16 %v176, %v175
      %v180 = vpack.c.bf16 %v178, %v177
      %v181 = vld [vmem:[%s1] sm:$0xf]
      %v182 = vld [vmem:[%s1 + $0x4] sm:$0xf]
      %v183 = vld [vmem:[%s1 + $0x8] sm:$0xf]
      %v184 = vld [vmem:[%s1 + $0xc] sm:$0xf]
      %v185 = vld [vmem:[%s1 + $0x10] sm:$0x3]
      %v186 = vld [vmem:[%s2] sm:$0x1]
      %v188 = vlaneseq
      %v189 = vshrl.u32 %v188, 7
      %v190 = vsub.s32 0, %v189
      %v191 = vrot.slane %v186, %v190
      %v198 = vunpack.c.l.b16 %v181
      %v199 = vunpack.c.l.b16 %v182
      %v200 = vunpack.c.l.b16 %v183
      %v201 = vunpack.c.l.b16 %v184
      %v202 = vunpack.c.l.b16 %v185
      %v203 = vpack.c.b16 %v199, %v198
      %v204 = vpack.c.b16 %v201, %v200
      %v205 = vpack.c.b16 %v202, %v202
      %vm208 = vcmask 293888
      %v210 = vsel %vm208, %v179, 0
      %v213 = vsel %vm208, %v180, 0
      %vm215 = vcmask 1041408
      %v217 = vsel %vm215, %v205, 0
      %219 = vmatprep.subr.bf16.mxu0 0
      %220 = vmatpush1.bf16.msra.mxu0 %v203
      %221 = vmatprep.subr.bf16.mxu0 0
      %222 = vmatpush1.bf16.msra.mxu0 %v204
      %223 = vmatprep.subr.bf16.mxu0 0
      %224 = vmatpush1.bf16.msra.mxu0 %v217
      %225 = vmatprep.subr.bf16.mxu0 0
      %226 = vmatpush1.bf16.msra.mxu0 0
      %227 = vmatprep.subr.bf16.mxu0 0
      %228 = vmatpush1.bf16.msra.mxu0 0
      %229 = vmatprep.subr.bf16.mxu0 0
      %230 = vmatpush1.bf16.msra.mxu0 0
      %231 = vmatprep.subr.bf16.mxu0 0
      %232 = vmatpush1.bf16.msra.mxu0 0
      %233 = vmatprep.subr.bf16.mxu0 0
      %234 = vmatpush1.bf16.msra.mxu0 0
      %235 = vmatprep.subr.bf16.mxu0 0
      %236 = vmatpush1.bf16.msra.mxu0 0
      %237 = vmatprep.subr.bf16.mxu0 0
      %238 = vmatpush1.bf16.msra.mxu0 0
      %239 = vmatprep.subr.bf16.mxu0 0
      %240 = vmatpush1.bf16.msra.mxu0 0
      %241 = vmatprep.subr.bf16.mxu0 0
      %242 = vmatpush1.bf16.msra.mxu0 0
      %243 = vmatprep.subr.bf16.mxu0 0
      %244 = vmatpush1.bf16.msra.mxu0 0
      %245 = vmatprep.subr.bf16.mxu0 0
      %246 = vmatpush1.bf16.msra.mxu0 0
      %247 = vmatprep.subr.bf16.mxu0 0
      %248 = vmatpush1.bf16.msra.mxu0 0
      %249 = vmatprep.subr.bf16.mxu0 0
      %250 = vmatpush1.bf16.msra.mxu0 0
      %251 = vmatprep.mubr.bf16.mxu0 0
      %252 = vmatmul.mubr.bf16.gmra.mrb[0].mxu0 %v210
      %v253 = vpop.f32.mrb[0].mxu0
      %v254 = vadd.f32 %v191, %v253
      %v255 = vpop.f32.mrb[0].mxu0
      %v256 = vpop.f32.mrb[0].mxu0
      %v257 = vadd.f32 %v191, %v256
      %v258 = vpop.f32.mrb[0].mxu0
      %259 = vmatprep.mubr.bf16.mxu0 0
      %260 = vmatmul.mubr.bf16.gmra.mrb[0].mxu0 %v213
      %v261 = vpop.f32.mrb[0].mxu0
      %v262 = vadd.f32 %v191, %v261
      %v263 = vpop.f32.mrb[0].mxu0
      %v264 = vpop.f32.mrb[0].mxu0
      %v265 = vadd.f32 %v191, %v264
      %v266 = vpop.f32.mrb[0].mxu0
      %267 = vdwg.mxu0
      %268 = vst [vmem:[%s172] sm:$0xff] %v254
      %269 = vst [vmem:[%s172 + $0x8] sm:$0xff] %v257
      %270 = vst [vmem:[%s172 + $0x10] sm:$0xff] %v262
      %271 = vst [vmem:[%s172 + $0x18] sm:$0xff] %v265
      %s272 = smul.u32 4, %s14
      %p273 = scmp.lt.s32.totalorder %s272, 7
      %s274 = scalar_select %p273, %s272, 7
      %s275 = smul.addr %s274, 8
      %s276 = scalar_lea.vmem %s3, %s275
      // Predicated region
      $region33: #{rosettafold_forward.39} parent=31 // pred_check
        %p277 = pneg %p100
      $region34: #{rosettafold_forward.39} parent=31 // pred_check_branch
        %279 = sbr.rel (%p277) target = $region36
      $region35: #{rosettafold_forward.39} parent=31 // pred_region
        %s280 = smul.u32 4, %s14
      $region36: #{rosettafold_forward.39} parent=31 // pred_fallthru
        _
    $region32: #{rosettafold_forward.39} parent=5 // pred_fallthru
      _
    %p281 = scmp.le.s32.totalorder 2, %s9
    // Predicated region
    $region37: #{rosettafold_forward.39} parent=5 // pred_check
      %p282 = pneg %p281
    $region38: #{rosettafold_forward.39} parent=5 // pred_check_branch
      %284 = sbr.rel (%p282) target = $region40
    $region39: #{rosettafold_forward.39} parent=5 // pred_region
      %s285 = ssub.s32 %s9, 2
      // Predicated region
      $region41: #{rosettafold_forward.39} parent=39 // pred_check
        %p286 = pneg %p106
      $region42: #{rosettafold_forward.39} parent=39 // pred_check_branch
        %288 = sbr.rel (%p286) target = $region44
      $region43: #{rosettafold_forward.39} parent=39 // pred_region
        %s289 = smul.u32 4, %s15
        %p290 = scmp.lt.s32.totalorder %s289, 7
        %s291 = scalar_select %p290, %s289, 7
        %s292 = smul.addr %s291, 8
        %s293 = scalar_lea.vmem %s3, %s292
      $region44: #{rosettafold_forward.39} parent=39 // pred_fallthru
        _
    $region40: #{rosettafold_forward.39} parent=5 // pred_fallthru
      _
  $region6: #{rosettafold_forward.39} parent=0 // loop_footer
    %s13 = sadd.s32 1, %s9
  $region7: #{rosettafold_forward.39} parent=0 // loop_footer_branch
    %8 = sbr.rel target = $region3
  $region8: #{rosettafold_forward.39} parent=0 // loop_exit
    _

// kernel: rosettafold_forward.69
$region0: #{rosettafold_forward.69}
  #allocation0 [shape = 'u32[]', space=smem, size = 0x4, offset = 0x4, fixed_abs, tag = 'smem constant byte address 0x4 - core index']
  #allocation1 [shape = 'u32[144,128]{1,0:T(1,128)}', space=vmem, size = 0x12000, scoped, tag = 'internal scratch']
  %s0 = inlined_call_operand.vmem [shape: bf16[32,128], index: 0, kind: input, shape index: {}]
  %s1 = inlined_call_operand.vmem [shape: bf16[128,21], index: 1, kind: input, shape index: {}]
  %s2 = inlined_call_operand.vmem [shape: f32[1,21], index: 2, kind: input, shape index: {}]
  %s3 = inlined_call_operand.vmem [shape: f32[32,21], index: 3, kind: output, shape index: {}]
  %s4 = sld [smem:[#allocation0]]
  $region22: #{rosettafold_forward.69} parent=0
    _
  %s6 = ssub.s32 1, %s4
  %s7 = scalar_select 0, %s6, %s4
  // Predicated region
  $region2: #{rosettafold_forward.69} parent=0 // pred_check
    _
  $region3: #{rosettafold_forward.69} parent=0 // pred_check_branch
    %9 = sbr.rel (0) target = $region5
  $region4: #{rosettafold_forward.69} parent=0 // pred_region
    _
  $region5: #{rosettafold_forward.69} parent=0 // pred_fallthru
    _
  // Predicated region
  $region6: #{rosettafold_forward.69} parent=0 // pred_check
    _
  $region7: #{rosettafold_forward.69} parent=0 // pred_check_branch
    %11 = sbr.rel (0) target = $region9
  $region8: #{rosettafold_forward.69} parent=0 // pred_region
    _
  $region9: #{rosettafold_forward.69} parent=0 // pred_fallthru
    _
  // Predicated region
  $region10: #{rosettafold_forward.69} parent=0 // pred_check
    _
  $region11: #{rosettafold_forward.69} parent=0 // pred_check_branch
    %13 = sbr.rel (0) target = $region13
  $region12: #{rosettafold_forward.69} parent=0 // pred_region
    _
  $region13: #{rosettafold_forward.69} parent=0 // pred_fallthru
    _
  %v15 = vld [vmem:[%s0] sm:$0xf]
  %v16 = vld [vmem:[%s0 + $0x4] sm:$0xf]
  %v17 = vld [vmem:[%s0 + $0x8] sm:$0xf]
  %v18 = vld [vmem:[%s0 + $0xc] sm:$0xf]
  %v19 = vld [vmem:[%s1] sm:$0xf]
  %v20 = vld [vmem:[%s1 + $0x4] sm:$0xf]
  %v21 = vld [vmem:[%s1 + $0x8] sm:$0xf]
  %v22 = vld [vmem:[%s1 + $0xc] sm:$0xf]
  %v23 = vld [vmem:[%s1 + $0x10] sm:$0xf]
  %v24 = vld [vmem:[%s1 + $0x14] sm:$0xf]
  %v25 = vld [vmem:[%s1 + $0x18] sm:$0xf]
  %v26 = vld [vmem:[%s1 + $0x1c] sm:$0xf]
  %v27 = vld [vmem:[%s1 + $0x20] sm:$0xf]
  %v28 = vld [vmem:[%s1 + $0x24] sm:$0xf]
  %v29 = vld [vmem:[%s1 + $0x28] sm:$0xf]
  %v30 = vld [vmem:[%s1 + $0x2c] sm:$0xf]
  %v31 = vld [vmem:[%s1 + $0x30] sm:$0xf]
  %v32 = vld [vmem:[%s1 + $0x34] sm:$0xf]
  %v33 = vld [vmem:[%s1 + $0x38] sm:$0xf]
  %v34 = vld [vmem:[%s1 + $0x3c] sm:$0xf]
  %v35 = vld [vmem:[%s2] sm:$0x1]
  %v37 = vlaneseq
  %v38 = vshrl.u32 %v37, 7
  %v39 = vsub.s32 0, %v38
  %v40 = vrot.slane %v35, %v39
  %v46 = vunpack.c.l.b16 %v15
  %v47 = vunpack.c.l.b16 %v16
  %v48 = vunpack.c.l.b16 %v17
  %v49 = vunpack.c.l.b16 %v18
  %v50 = vpack.c.b16 %v47, %v46
  %v51 = vpack.c.b16 %v49, %v48
  %v70 = vunpack.c.l.b16 %v19
  %v71 = vunpack.c.l.b16 %v20
  %v72 = vunpack.c.l.b16 %v21
  %v73 = vunpack.c.l.b16 %v22
  %v74 = vunpack.c.l.b16 %v23
  %v75 = vunpack.c.l.b16 %v24
  %v76 = vunpack.c.l.b16 %v25
  %v77 = vunpack.c.l.b16 %v26
  %v78 = vunpack.c.l.b16 %v27
  %v79 = vunpack.c.l.b16 %v28
  %v80 = vunpack.c.l.b16 %v29
  %v81 = vunpack.c.l.b16 %v30
  %v82 = vunpack.c.l.b16 %v31
  %v83 = vunpack.c.l.b16 %v32
  %v84 = vunpack.c.l.b16 %v33
  %v85 = vunpack.c.l.b16 %v34
  %v86 = vpack.c.b16 %v71, %v70
  %v87 = vpack.c.b16 %v73, %v72
  %v88 = vpack.c.b16 %v75, %v74
  %v89 = vpack.c.b16 %v77, %v76
  %v90 = vpack.c.b16 %v79, %v78
  %v91 = vpack.c.b16 %v81, %v80
  %v92 = vpack.c.b16 %v83, %v82
  %v93 = vpack.c.b16 %v85, %v84
  %102 = vmatprep.subr.bf16.mxu0 0
  %103 = vmatpush1.bf16.msra.mxu0 %v86
  %104 = vmatprep.subr.bf16.mxu0 0
  %105 = vmatpush1.bf16.msra.mxu0 %v87
  %106 = vmatprep.subr.bf16.mxu0 0
  %107 = vmatpush1.bf16.msra.mxu0 %v88
  %108 = vmatprep.subr.bf16.mxu0 0
  %109 = vmatpush1.bf16.msra.mxu0 %v89
  %110 = vmatprep.subr.bf16.mxu0 0
  %111 = vmatpush1.bf16.msra.mxu0 %v90
  %112 = vmatprep.subr.bf16.mxu0 0
  %113 = vmatpush1.bf16.msra.mxu0 %v91
  %114 = vmatprep.subr.bf16.mxu0 0
  %115 = vmatpush1.bf16.msra.mxu0 %v92
  %116 = vmatprep.subr.bf16.mxu0 0
  %117 = vmatpush1.bf16.msra.mxu0 %v93
  %118 = vmatprep.subr.bf16.mxu0 0
  %119 = vmatpush1.bf16.msra.mxu0 0
  %120 = vmatprep.subr.bf16.mxu0 0
  %121 = vmatpush1.bf16.msra.mxu0 0
  %122 = vmatprep.subr.bf16.mxu0 0
  %123 = vmatpush1.bf16.msra.mxu0 0
  %124 = vmatprep.subr.bf16.mxu0 0
  %125 = vmatpush1.bf16.msra.mxu0 0
  %126 = vmatprep.subr.bf16.mxu0 0
  %127 = vmatpush1.bf16.msra.mxu0 0
  %128 = vmatprep.subr.bf16.mxu0 0
  %129 = vmatpush1.bf16.msra.mxu0 0
  %130 = vmatprep.subr.bf16.mxu0 0
  %131 = vmatpush1.bf16.msra.mxu0 0
  %132 = vmatprep.subr.bf16.mxu0 0
  %133 = vmatpush1.bf16.msra.mxu0 0
  %134 = vmatprep.mubr.bf16.mxu0 0
  %135 = vmatmul.mubr.bf16.gmra.mrb[0].mxu0 %v50
  %v136 = vpop.f32.mrb[0].mxu0
  %v137 = vadd.f32 %v40, %v136
  %v138 = vpop.f32.mrb[0].mxu0
  %v139 = vpop.f32.mrb[0].mxu0
  %v140 = vadd.f32 %v40, %v139
  %v141 = vpop.f32.mrb[0].mxu0
  %142 = vmatprep.mubr.bf16.mxu0 0
  %143 = vmatmul.mubr.bf16.gmra.mrb[0].mxu0 %v51
  %v144 = vpop.f32.mrb[0].mxu0
  %v145 = vadd.f32 %v40, %v144
  %v146 = vpop.f32.mrb[0].mxu0
  %v147 = vpop.f32.mrb[0].mxu0
  %v148 = vadd.f32 %v40, %v147
  %v149 = vpop.f32.mrb[0].mxu0
  %150 = vdwg.mxu0
  %vm151 = vcmask 171008
  %152 = vst.msk [vmem:[%s3] sm:$0xff] %vm151, %v137
  %153 = vst.msk [vmem:[%s3 + $0x8] sm:$0xff] %vm151, %v140
  %154 = vst.msk [vmem:[%s3 + $0x10] sm:$0xff] %vm151, %v145
  %155 = vst.msk [vmem:[%s3 + $0x18] sm:$0xff] %vm151, %v148
  // Predicated region
  $region14: #{rosettafold_forward.69} parent=0 // pred_check
    _
  $region15: #{rosettafold_forward.69} parent=0 // pred_check_branch
    %157 = sbr.rel (0) target = $region17
  $region16: #{rosettafold_forward.69} parent=0 // pred_region
    _
  $region17: #{rosettafold_forward.69} parent=0 // pred_fallthru
    _
  // Predicated region
  $region18: #{rosettafold_forward.69} parent=0 // pred_check
    _
  $region19: #{rosettafold_forward.69} parent=0 // pred_check_branch
    %159 = sbr.rel (0) target = $region21
  $region20: #{rosettafold_forward.69} parent=0 // pred_region
    _
  $region21: #{rosettafold_forward.69} parent=0 // pred_fallthru
    _

// kernel: rosettafold_forward.71
$region0: #{rosettafold_forward.71}
  #allocation0 [shape = 'u32[]', space=smem, size = 0x4, offset = 0x4, fixed_abs, tag = 'smem constant byte address 0x4 - core index']
  #allocation1 [shape = 'u32[144,128]{1,0:T(1,128)}', space=vmem, size = 0x12000, scoped, tag = 'internal scratch']
  %s0 = inlined_call_operand.vmem [shape: bf16[8,128], index: 0, kind: input, shape index: {}]
  %s1 = inlined_call_operand.vmem [shape: bf16[128,50], index: 1, kind: input, shape index: {}]
  %s2 = inlined_call_operand.vmem [shape: f32[1,50], index: 2, kind: input, shape index: {}]
  %s3 = inlined_call_operand.hbm [shape: f32[8,50], index: 3, kind: output, shape index: {}]
  %s4 = sld [smem:[#allocation0]]
  $region22: #{rosettafold_forward.71} parent=0
    _
  %s6 = ssub.s32 1, %s4
  %s7 = scalar_select 0, %s6, %s4
  $region1: #{rosettafold_forward.71} parent=0
    #allocation2 [shape = 'u8[4096]{0}', space=vmem, size = 0x1000, scoped, tag = 'output window, operand 0, single buffered']
    #allocation3 [shape = 's32[1]{0}', space=sflag, size = 0x4, scoped, tag = 'scoped memory for rosettafold_forward.71']
    %8 = vsyncpa [#allocation3], 0
    // Predicated region
    $region2: #{rosettafold_forward.71} parent=1 // pred_check
      _
    $region3: #{rosettafold_forward.71} parent=1 // pred_check_branch
      %10 = sbr.rel (0) target = $region5
    $region4: #{rosettafold_forward.71} parent=1 // pred_region
      _
    $region5: #{rosettafold_forward.71} parent=1 // pred_fallthru
      _
    // Predicated region
    $region6: #{rosettafold_forward.71} parent=1 // pred_check
      _
    $region7: #{rosettafold_forward.71} parent=1 // pred_check_branch
      %12 = sbr.rel (0) target = $region9
    $region8: #{rosettafold_forward.71} parent=1 // pred_region
      _
    $region9: #{rosettafold_forward.71} parent=1 // pred_fallthru
      _
    // Predicated region
    $region10: #{rosettafold_forward.71} parent=1 // pred_check
      _
    $region11: #{rosettafold_forward.71} parent=1 // pred_check_branch
      %14 = sbr.rel (0) target = $region13
    $region12: #{rosettafold_forward.71} parent=1 // pred_region
      _
    $region13: #{rosettafold_forward.71} parent=1 // pred_fallthru
      _
    %v16 = vld [vmem:[%s0] sm:$0xf]
    %v17 = vld [vmem:[%s1] sm:$0xf]
    %v18 = vld [vmem:[%s1 + $0x4] sm:$0xf]
    %v19 = vld [vmem:[%s1 + $0x8] sm:$0xf]
    %v20 = vld [vmem:[%s1 + $0xc] sm:$0xf]
    %v21 = vld [vmem:[%s1 + $0x10] sm:$0xf]
    %v22 = vld [vmem:[%s1 + $0x14] sm:$0xf]
    %v23 = vld [vmem:[%s1 + $0x18] sm:$0xf]
    %v24 = vld [vmem:[%s1 + $0x1c] sm:$0xf]
    %v25 = vld [vmem:[%s1 + $0x20] sm:$0xf]
    %v26 = vld [vmem:[%s1 + $0x24] sm:$0xf]
    %v27 = vld [vmem:[%s1 + $0x28] sm:$0xf]
    %v28 = vld [vmem:[%s1 + $0x2c] sm:$0xf]
    %v29 = vld [vmem:[%s1 + $0x30] sm:$0xf]
    %v30 = vld [vmem:[%s1 + $0x34] sm:$0xf]
    %v31 = vld [vmem:[%s1 + $0x38] sm:$0xf]
    %v32 = vld [vmem:[%s1 + $0x3c] sm:$0xf]
    %v33 = vld [vmem:[%s2] sm:$0x1]
    %v35 = vlaneseq
    %v36 = vshrl.u32 %v35, 7
    %v37 = vsub.s32 0, %v36
    %v38 = vrot.slane %v33, %v37
    %v56 = vunpack.c.l.b16 %v17
    %v57 = vunpack.c.l.b16 %v18
    %v58 = vunpack.c.l.b16 %v19
    %v59 = vunpack.c.l.b16 %v20
    %v60 = vunpack.c.l.b16 %v21
    %v61 = vunpack.c.l.b16 %v22
    %v62 = vunpack.c.l.b16 %v23
    %v63 = vunpack.c.l.b16 %v24
    %v64 = vunpack.c.l.b16 %v25
    %v65 = vunpack.c.l.b16 %v26
    %v66 = vunpack.c.l.b16 %v27
    %v67 = vunpack.c.l.b16 %v28
    %v68 = vunpack.c.l.b16 %v29
    %v69 = vunpack.c.l.b16 %v30
    %v70 = vunpack.c.l.b16 %v31
    %v71 = vunpack.c.l.b16 %v32
    %v72 = vpack.c.b16 %v57, %v56
    %v73 = vpack.c.b16 %v59, %v58
    %v74 = vpack.c.b16 %v61, %v60
    %v75 = vpack.c.b16 %v63, %v62
    %v76 = vpack.c.b16 %v65, %v64
    %v77 = vpack.c.b16 %v67, %v66
    %v78 = vpack.c.b16 %v69, %v68
    %v79 = vpack.c.b16 %v71, %v70
    %88 = vmatprep.subr.bf16.mxu0 0
    %89 = vmatpush1.bf16.msra.mxu0 %v72
    %90 = vmatprep.subr.bf16.mxu0 0
    %91 = vmatpush1.bf16.msra.mxu0 %v73
    %92 = vmatprep.subr.bf16.mxu0 0
    %93 = vmatpush1.bf16.msra.mxu0 %v74
    %94 = vmatprep.subr.bf16.mxu0 0
    %95 = vmatpush1.bf16.msra.mxu0 %v75
    %96 = vmatprep.subr.bf16.mxu0 0
    %97 = vmatpush1.bf16.msra.mxu0 %v76
    %98 = vmatprep.subr.bf16.mxu0 0
    %99 = vmatpush1.bf16.msra.mxu0 %v77
    %100 = vmatprep.subr.bf16.mxu0 0
    %101 = vmatpush1.bf16.msra.mxu0 %v78
    %102 = vmatprep.subr.bf16.mxu0 0
    %103 = vmatpush1.bf16.msra.mxu0 %v79
    %104 = vmatprep.subr.bf16.mxu0 0
    %105 = vmatpush1.bf16.msra.mxu0 0
    %106 = vmatprep.subr.bf16.mxu0 0
    %107 = vmatpush1.bf16.msra.mxu0 0
    %108 = vmatprep.subr.bf16.mxu0 0
    %109 = vmatpush1.bf16.msra.mxu0 0
    %110 = vmatprep.subr.bf16.mxu0 0
    %111 = vmatpush1.bf16.msra.mxu0 0
    %112 = vmatprep.subr.bf16.mxu0 0
    %113 = vmatpush1.bf16.msra.mxu0 0
    %114 = vmatprep.subr.bf16.mxu0 0
    %115 = vmatpush1.bf16.msra.mxu0 0
    %116 = vmatprep.subr.bf16.mxu0 0
    %117 = vmatpush1.bf16.msra.mxu0 0
    %118 = vmatprep.subr.bf16.mxu0 0
    %119 = vmatpush1.bf16.msra.mxu0 0
    %120 = vmatprep.mubr.bf16.mxu0 0
    %121 = vmatmul.mubr.bf16.gmra.mrb[0].mxu0 %v16
    %v122 = vpop.f32.mrb[0].mxu0
    %v123 = vadd.f32 %v38, %v122
    %v124 = vpop.f32.mrb[0].mxu0
    %v125 = vpop.f32.mrb[0].mxu0
    %v126 = vpop.f32.mrb[0].mxu0
    %127 = vdwg.mxu0
    %vm128 = vcmask 408576
    %129 = vst.msk [vmem:[#allocation2] sm:$0xff] %vm128, %v123
    // Predicated region
    $region14: #{rosettafold_forward.71} parent=1 // pred_check
      _
    $region15: #{rosettafold_forward.71} parent=1 // pred_check_branch
      %131 = sbr.rel (0) target = $region17
    $region16: #{rosettafold_forward.71} parent=1 // pred_region
      %s133 = ssub.s32 128, 128
      %134 = vsyncadd [#allocation3], %s133
      %s136 = sshll.u32 [#allocation2], 4
      %s137 = int_to_ptr.vmem [resolvable:$true] %s136
      %139 = dma.vmem_to_hbm [thread:$0]  %s137, 128, %s3, [#allocation3]
    $region17: #{rosettafold_forward.71} parent=1 // pred_fallthru
      _
    // Predicated region
    $region18: #{rosettafold_forward.71} parent=1 // pred_check
      _
    $region19: #{rosettafold_forward.71} parent=1 // pred_check_branch
      %141 = sbr.rel (0) target = $region21
    $region20: #{rosettafold_forward.71} parent=1 // pred_region
      %142 = dma.done [#allocation3], 128
    $region21: #{rosettafold_forward.71} parent=1 // pred_fallthru
      _
    %143 = vsyncpa [#allocation3], 1

// kernel: rosettafold_forward.47
$region0: #{rosettafold_forward.47}
  #allocation0 [shape = 'u32[]', space=smem, size = 0x4, offset = 0x4, fixed_abs, tag = 'smem constant byte address 0x4 - core index']
  #allocation1 [shape = 'u32[144,128]{1,0:T(1,128)}', space=vmem, size = 0x12000, scoped, tag = 'internal scratch']
  %s0 = inlined_call_operand.vmem [shape: bf16[8,128], index: 0, kind: input, shape index: {}]
  %s1 = inlined_call_operand.vmem [shape: bf16[128,64], index: 1, kind: input, shape index: {}]
  %s2 = inlined_call_operand.vmem [shape: f32[1,64], index: 2, kind: input, shape index: {}]
  %s3 = inlined_call_operand.vmem [shape: bf16[8,64], index: 3, kind: output, shape index: {}]
  %s4 = sld [smem:[#allocation0]]
  $region22: #{rosettafold_forward.47} parent=0
    _
  %s6 = ssub.s32 1, %s4
  %s7 = scalar_select 0, %s6, %s4
  // Predicated region
  $region2: #{rosettafold_forward.47} parent=0 // pred_check
    _
  $region3: #{rosettafold_forward.47} parent=0 // pred_check_branch
    %9 = sbr.rel (0) target = $region5
  $region4: #{rosettafold_forward.47} parent=0 // pred_region
    _
  $region5: #{rosettafold_forward.47} parent=0 // pred_fallthru
    _
  // Predicated region
  $region6: #{rosettafold_forward.47} parent=0 // pred_check
    _
  $region7: #{rosettafold_forward.47} parent=0 // pred_check_branch
    %11 = sbr.rel (0) target = $region9
  $region8: #{rosettafold_forward.47} parent=0 // pred_region
    _
  $region9: #{rosettafold_forward.47} parent=0 // pred_fallthru
    _
  // Predicated region
  $region10: #{rosettafold_forward.47} parent=0 // pred_check
    _
  $region11: #{rosettafold_forward.47} parent=0 // pred_check_branch
    %13 = sbr.rel (0) target = $region13
  $region12: #{rosettafold_forward.47} parent=0 // pred_region
    _
  $region13: #{rosettafold_forward.47} parent=0 // pred_fallthru
    _
  %v15 = vld [vmem:[%s0] sm:$0xf]
  %v16 = vld [vmem:[%s1] sm:$0xf]
  %v17 = vld [vmem:[%s1 + $0x4] sm:$0xf]
  %v18 = vld [vmem:[%s1 + $0x8] sm:$0xf]
  %v19 = vld [vmem:[%s1 + $0xc] sm:$0xf]
  %v20 = vld [vmem:[%s1 + $0x10] sm:$0xf]
  %v21 = vld [vmem:[%s1 + $0x14] sm:$0xf]
  %v22 = vld [vmem:[%s1 + $0x18] sm:$0xf]
  %v23 = vld [vmem:[%s1 + $0x1c] sm:$0xf]
  %v24 = vld [vmem:[%s1 + $0x20] sm:$0xf]
  %v25 = vld [vmem:[%s1 + $0x24] sm:$0xf]
  %v26 = vld [vmem:[%s1 + $0x28] sm:$0xf]
  %v27 = vld [vmem:[%s1 + $0x2c] sm:$0xf]
  %v28 = vld [vmem:[%s1 + $0x30] sm:$0xf]
  %v29 = vld [vmem:[%s1 + $0x34] sm:$0xf]
  %v30 = vld [vmem:[%s1 + $0x38] sm:$0xf]
  %v31 = vld [vmem:[%s1 + $0x3c] sm:$0xf]
  %v32 = vld [vmem:[%s2] sm:$0x1]
  %v34 = vlaneseq
  %v35 = vshrl.u32 %v34, 7
  %v36 = vsub.s32 0, %v35
  %v37 = vrot.slane %v32, %v36
  %v55 = vunpack.c.l.b16 %v16
  %v56 = vunpack.c.l.b16 %v17
  %v57 = vunpack.c.l.b16 %v18
  %v58 = vunpack.c.l.b16 %v19
  %v59 = vunpack.c.l.b16 %v20
  %v60 = vunpack.c.l.b16 %v21
  %v61 = vunpack.c.l.b16 %v22
  %v62 = vunpack.c.l.b16 %v23
  %v63 = vunpack.c.l.b16 %v24
  %v64 = vunpack.c.l.b16 %v25
  %v65 = vunpack.c.l.b16 %v26
  %v66 = vunpack.c.l.b16 %v27
  %v67 = vunpack.c.l.b16 %v28
  %v68 = vunpack.c.l.b16 %v29
  %v69 = vunpack.c.l.b16 %v30
  %v70 = vunpack.c.l.b16 %v31
  %v71 = vpack.c.b16 %v56, %v55
  %v72 = vpack.c.b16 %v58, %v57
  %v73 = vpack.c.b16 %v60, %v59
  %v74 = vpack.c.b16 %v62, %v61
  %v75 = vpack.c.b16 %v64, %v63
  %v76 = vpack.c.b16 %v66, %v65
  %v77 = vpack.c.b16 %v68, %v67
  %v78 = vpack.c.b16 %v70, %v69
  %87 = vmatprep.subr.bf16.mxu0 0
  %88 = vmatpush1.bf16.msra.mxu0 %v71
  %89 = vmatprep.subr.bf16.mxu0 0
  %90 = vmatpush1.bf16.msra.mxu0 %v72
  %91 = vmatprep.subr.bf16.mxu0 0
  %92 = vmatpush1.bf16.msra.mxu0 %v73
  %93 = vmatprep.subr.bf16.mxu0 0
  %94 = vmatpush1.bf16.msra.mxu0 %v74
  %95 = vmatprep.subr.bf16.mxu0 0
  %96 = vmatpush1.bf16.msra.mxu0 %v75
  %97 = vmatprep.subr.bf16.mxu0 0
  %98 = vmatpush1.bf16.msra.mxu0 %v76
  %99 = vmatprep.subr.bf16.mxu0 0
  %100 = vmatpush1.bf16.msra.mxu0 %v77
  %101 = vmatprep.subr.bf16.mxu0 0
  %102 = vmatpush1.bf16.msra.mxu0 %v78
  %103 = vmatprep.subr.bf16.mxu0 0
  %104 = vmatpush1.bf16.msra.mxu0 0
  %105 = vmatprep.subr.bf16.mxu0 0
  %106 = vmatpush1.bf16.msra.mxu0 0
  %107 = vmatprep.subr.bf16.mxu0 0
  %108 = vmatpush1.bf16.msra.mxu0 0
  %109 = vmatprep.subr.bf16.mxu0 0
  %110 = vmatpush1.bf16.msra.mxu0 0
  %111 = vmatprep.subr.bf16.mxu0 0
  %112 = vmatpush1.bf16.msra.mxu0 0
  %113 = vmatprep.subr.bf16.mxu0 0
  %114 = vmatpush1.bf16.msra.mxu0 0
  %115 = vmatprep.subr.bf16.mxu0 0
  %116 = vmatpush1.bf16.msra.mxu0 0
  %117 = vmatprep.subr.bf16.mxu0 0
  %118 = vmatpush1.bf16.msra.mxu0 0
  %119 = vmatprep.mubr.bf16.mxu0 0
  %120 = vmatmul.mubr.bf16.gmra.mrb[0].mxu0 %v15
  %v121 = vpop.f32.mrb[0].mxu0
  %v122 = vadd.f32 %v37, %v121
  %v123 = vpop.f32.mrb[0].mxu0
  %v124 = vpop.f32.mrb[0].mxu0
  %v125 = vpop.f32.mrb[0].mxu0
  %126 = vdwg.mxu0
  %v127 = vpack.c.bf16 %v122, %v122
  %vm128 = vcmask 519168
  %129 = vst.msk [vmem:[%s3] sm:$0xf] %vm128, %v127
  // Predicated region
  $region14: #{rosettafold_forward.47} parent=0 // pred_check
    _
  $region15: #{rosettafold_forward.47} parent=0 // pred_check_branch
    %131 = sbr.rel (0) target = $region17
  $region16: #{rosettafold_forward.47} parent=0 // pred_region
    _
  $region17: #{rosettafold_forward.47} parent=0 // pred_fallthru
    _
  // Predicated region
  $region18: #{rosettafold_forward.47} parent=0 // pred_check
    _
  $region19: #{rosettafold_forward.47} parent=0 // pred_check_branch
    %133 = sbr.rel (0) target = $region21
  $region20: #{rosettafold_forward.47} parent=0 // pred_region
    _
  $region21: #{rosettafold_forward.47} parent=0 // pred_fallthru
    _

// kernel: rosettafold_forward.50
$region0: #{rosettafold_forward.50}
  #allocation0 [shape = 'u32[]', space=smem, size = 0x4, offset = 0x4, fixed_abs, tag = 'smem constant byte address 0x4 - core index']
  #allocation1 [shape = 'u32[144,128]{1,0:T(1,128)}', space=vmem, size = 0x12000, scoped, tag = 'internal scratch']
  %s0 = inlined_call_operand.vmem [shape: bf16[8,128], index: 0, kind: input, shape index: {}]
  %s1 = inlined_call_operand.vmem [shape: bf16[128,32], index: 1, kind: input, shape index: {}]
  %s2 = inlined_call_operand.vmem [shape: f32[1,32], index: 2, kind: input, shape index: {}]
  %s3 = inlined_call_operand.vmem [shape: f32[8,32], index: 3, kind: output, shape index: {}]
  %s4 = sld [smem:[#allocation0]]
  $region22: #{rosettafold_forward.50} parent=0
    _
  %s6 = ssub.s32 1, %s4
  %s7 = scalar_select 0, %s6, %s4
  // Predicated region
  $region2: #{rosettafold_forward.50} parent=0 // pred_check
    _
  $region3: #{rosettafold_forward.50} parent=0 // pred_check_branch
    %9 = sbr.rel (0) target = $region5
  $region4: #{rosettafold_forward.50} parent=0 // pred_region
    _
  $region5: #{rosettafold_forward.50} parent=0 // pred_fallthru
    _
  // Predicated region
  $region6: #{rosettafold_forward.50} parent=0 // pred_check
    _
  $region7: #{rosettafold_forward.50} parent=0 // pred_check_branch
    %11 = sbr.rel (0) target = $region9
  $region8: #{rosettafold_forward.50} parent=0 // pred_region
    _
  $region9: #{rosettafold_forward.50} parent=0 // pred_fallthru
    _
  // Predicated region
  $region10: #{rosettafold_forward.50} parent=0 // pred_check
    _
  $region11: #{rosettafold_forward.50} parent=0 // pred_check_branch
    %13 = sbr.rel (0) target = $region13
  $region12: #{rosettafold_forward.50} parent=0 // pred_region
    _
  $region13: #{rosettafold_forward.50} parent=0 // pred_fallthru
    _
  %v15 = vld [vmem:[%s0] sm:$0xf]
  %v16 = vld [vmem:[%s1] sm:$0xf]
  %v17 = vld [vmem:[%s1 + $0x4] sm:$0xf]
  %v18 = vld [vmem:[%s1 + $0x8] sm:$0xf]
  %v19 = vld [vmem:[%s1 + $0xc] sm:$0xf]
  %v20 = vld [vmem:[%s1 + $0x10] sm:$0xf]
  %v21 = vld [vmem:[%s1 + $0x14] sm:$0xf]
  %v22 = vld [vmem:[%s1 + $0x18] sm:$0xf]
  %v23 = vld [vmem:[%s1 + $0x1c] sm:$0xf]
  %v24 = vld [vmem:[%s1 + $0x20] sm:$0xf]
  %v25 = vld [vmem:[%s1 + $0x24] sm:$0xf]
  %v26 = vld [vmem:[%s1 + $0x28] sm:$0xf]
  %v27 = vld [vmem:[%s1 + $0x2c] sm:$0xf]
  %v28 = vld [vmem:[%s1 + $0x30] sm:$0xf]
  %v29 = vld [vmem:[%s1 + $0x34] sm:$0xf]
  %v30 = vld [vmem:[%s1 + $0x38] sm:$0xf]
  %v31 = vld [vmem:[%s1 + $0x3c] sm:$0xf]
  %v32 = vld [vmem:[%s2] sm:$0x1]
  %v34 = vlaneseq
  %v35 = vshrl.u32 %v34, 7
  %v36 = vsub.s32 0, %v35
  %v37 = vrot.slane %v32, %v36
  %v55 = vunpack.c.l.b16 %v16
  %v56 = vunpack.c.l.b16 %v17
  %v57 = vunpack.c.l.b16 %v18
  %v58 = vunpack.c.l.b16 %v19
  %v59 = vunpack.c.l.b16 %v20
  %v60 = vunpack.c.l.b16 %v21
  %v61 = vunpack.c.l.b16 %v22
  %v62 = vunpack.c.l.b16 %v23
  %v63 = vunpack.c.l.b16 %v24
  %v64 = vunpack.c.l.b16 %v25
  %v65 = vunpack.c.l.b16 %v26
  %v66 = vunpack.c.l.b16 %v27
  %v67 = vunpack.c.l.b16 %v28
  %v68 = vunpack.c.l.b16 %v29
  %v69 = vunpack.c.l.b16 %v30
  %v70 = vunpack.c.l.b16 %v31
  %v71 = vpack.c.b16 %v56, %v55
  %v72 = vpack.c.b16 %v58, %v57
  %v73 = vpack.c.b16 %v60, %v59
  %v74 = vpack.c.b16 %v62, %v61
  %v75 = vpack.c.b16 %v64, %v63
  %v76 = vpack.c.b16 %v66, %v65
  %v77 = vpack.c.b16 %v68, %v67
  %v78 = vpack.c.b16 %v70, %v69
  %87 = vmatprep.subr.bf16.mxu0 0
  %88 = vmatpush1.bf16.msra.mxu0 %v71
  %89 = vmatprep.subr.bf16.mxu0 0
  %90 = vmatpush1.bf16.msra.mxu0 %v72
  %91 = vmatprep.subr.bf16.mxu0 0
  %92 = vmatpush1.bf16.msra.mxu0 %v73
  %93 = vmatprep.subr.bf16.mxu0 0
  %94 = vmatpush1.bf16.msra.mxu0 %v74
  %95 = vmatprep.subr.bf16.mxu0 0
  %96 = vmatpush1.bf16.msra.mxu0 %v75
  %97 = vmatprep.subr.bf16.mxu0 0
  %98 = vmatpush1.bf16.msra.mxu0 %v76
  %99 = vmatprep.subr.bf16.mxu0 0
  %100 = vmatpush1.bf16.msra.mxu0 %v77
  %101 = vmatprep.subr.bf16.mxu0 0
  %102 = vmatpush1.bf16.msra.mxu0 %v78
  %103 = vmatprep.subr.bf16.mxu0 0
  %104 = vmatpush1.bf16.msra.mxu0 0
  %105 = vmatprep.subr.bf16.mxu0 0
  %106 = vmatpush1.bf16.msra.mxu0 0
  %107 = vmatprep.subr.bf16.mxu0 0
  %108 = vmatpush1.bf16.msra.mxu0 0
  %109 = vmatprep.subr.bf16.mxu0 0
  %110 = vmatpush1.bf16.msra.mxu0 0
  %111 = vmatprep.subr.bf16.mxu0 0
  %112 = vmatpush1.bf16.msra.mxu0 0
  %113 = vmatprep.subr.bf16.mxu0 0
  %114 = vmatpush1.bf16.msra.mxu0 0
  %115 = vmatprep.subr.bf16.mxu0 0
  %116 = vmatpush1.bf16.msra.mxu0 0
  %117 = vmatprep.subr.bf16.mxu0 0
  %118 = vmatpush1.bf16.msra.mxu0 0
  %119 = vmatprep.mubr.bf16.mxu0 0
  %120 = vmatmul.mubr.bf16.gmra.mrb[0].mxu0 %v15
  %v121 = vpop.f32.mrb[0].mxu0
  %v122 = vadd.f32 %v37, %v121
  %v123 = vpop.f32.mrb[0].mxu0
  %v124 = vpop.f32.mrb[0].mxu0
  %v125 = vpop.f32.mrb[0].mxu0
  %126 = vdwg.mxu0
  %vm127 = vcmask 261120
  %128 = vst.msk [vmem:[%s3] sm:$0xff] %vm127, %v122
  // Predicated region
  $region14: #{rosettafold_forward.50} parent=0 // pred_check
    _
  $region15: #{rosettafold_forward.50} parent=0 // pred_check_branch
    %130 = sbr.rel (0) target = $region17
  $region16: #{rosettafold_forward.50} parent=0 // pred_region
    _
  $region17: #{rosettafold_forward.50} parent=0 // pred_fallthru
    _
  // Predicated region
  $region18: #{rosettafold_forward.50} parent=0 // pred_check
    _
  $region19: #{rosettafold_forward.50} parent=0 // pred_check_branch
    %132 = sbr.rel (0) target = $region21
  $region20: #{rosettafold_forward.50} parent=0 // pred_region
    _
  $region21: #{rosettafold_forward.50} parent=0 // pred_fallthru
    _

// kernel: rosettafold_forward.70
$region0: #{rosettafold_forward.70}
  #allocation0 [shape = 'u32[]', space=smem, size = 0x4, offset = 0x4, fixed_abs, tag = 'smem constant byte address 0x4 - core index']
  #allocation1 [shape = 'u32[144,128]{1,0:T(1,128)}', space=vmem, size = 0x12000, scoped, tag = 'internal scratch']
  %s0 = inlined_call_operand.vmem [shape: bf16[64,128], index: 0, kind: input, shape index: {}]
  %s1 = inlined_call_operand.vmem [shape: bf16[128,256], index: 1, kind: input, shape index: {}]
  %s2 = inlined_call_operand.vmem [shape: f32[1,256], index: 2, kind: input, shape index: {}]
  %s3 = inlined_call_operand.vmem [shape: f32[64,256], index: 3, kind: output, shape index: {}]
  %s4 = sld [smem:[#allocation0]]
  $region45: #{rosettafold_forward.70} parent=0
    _
  %s6 = ssub.s32 1, %s4
  %s7 = scalar_select 0, %s6, %s4
  loop: start=0, step=1, limit=4
  $region2: #{rosettafold_forward.70} parent=0 // loop_pre_header
    _
  $region3: #{rosettafold_forward.70} parent=0 // loop_header
    %s9 = sphi 0, %s13
    %p10 = scmp.ge.s32.totalorder %s9, 4
    %s19 = sphi 0, %s21
    %s22 = sphi 0, %s19
    %s23 = sphi 0, %s22
    %s39 = sphi 0, %s23
    %s43 = sphi 0, %s43
    %s45 = sphi 0, %s43
    %s46 = sphi 0, %s45
    %s60 = sphi 0, %s46
    %s64 = sphi 0, %s64
    %s66 = sphi 0, %s64
    %s67 = sphi 0, %s66
    %s81 = sphi 0, %s67
    %s87 = sphi 0, %s89
    %s90 = sphi 0, %s87
    %s91 = sphi 0, %s90
    %s107 = sphi 0, %s91
  $region4: #{rosettafold_forward.70} parent=0 // loop_header_branch
    %12 = sbr.rel (%p10) target = $region8
  $region5: #{rosettafold_forward.70} parent=0 // loop_body
    %s14 = ssub.s32 %s9, 1
    %s15 = ssub.s32 %s9, 2
    %s16 = sadd.s32 %s9, 1
    %s17 = ssub.s32 %s9, %s16
    %p18 = scmp.eq.s32.totalorder %s17, 0
    %s20 = sadd.s32 %s19, 1
    %s21 = scalar_select %p18, %s19, %s20
    %p24 = pneg %p18
    %p25 = scmp.eq.s32.totalorder %s9, 1
    %p26 = por %p24, %p25
    %p27 = scmp.ne.s32.totalorder %s19, %s22
    %p28 = scmp.eq.s32.totalorder %s9, 0
    %p29 = por %p27, %p28
    %p30 = scmp.ne.s32.totalorder %s19, %s22
    %p31 = scmp.eq.s32.totalorder %s14, 1
    %p32 = por %p30, %p31
    %p33 = scmp.ne.s32.totalorder %s22, %s23
    %p34 = scmp.eq.s32.totalorder %s14, 0
    %p35 = por %p33, %p34
    %p36 = scmp.ne.s32.totalorder %s22, %s23
    %p37 = scmp.eq.s32.totalorder %s15, 1
    %p38 = por %p36, %p37
    %p40 = scmp.ne.s32.totalorder %s23, %s39
    %p41 = scmp.eq.s32.totalorder %s15, 0
    %p42 = por %p40, %p41
    %s44 = sadd.s32 %s43, 1
    %p47 = scmp.eq.s32.totalorder %s9, 1
    %p48 = scmp.ne.s32.totalorder %s43, %s45
    %p49 = scmp.eq.s32.totalorder %s9, 0
    %p50 = por %p48, %p49
    %p51 = scmp.ne.s32.totalorder %s43, %s45
    %p52 = scmp.eq.s32.totalorder %s14, 1
    %p53 = por %p51, %p52
    %p54 = scmp.ne.s32.totalorder %s45, %s46
    %p55 = scmp.eq.s32.totalorder %s14, 0
    %p56 = por %p54, %p55
    %p57 = scmp.ne.s32.totalorder %s45, %s46
    %p58 = scmp.eq.s32.totalorder %s15, 1
    %p59 = por %p57, %p58
    %p61 = scmp.ne.s32.totalorder %s46, %s60
    %p62 = scmp.eq.s32.totalorder %s15, 0
    %p63 = por %p61, %p62
    %s65 = sadd.s32 %s64, 1
    %p68 = scmp.eq.s32.totalorder %s9, 1
    %p69 = scmp.ne.s32.totalorder %s64, %s66
    %p70 = scmp.eq.s32.totalorder %s9, 0
    %p71 = por %p69, %p70
    %p72 = scmp.ne.s32.totalorder %s64, %s66
    %p73 = scmp.eq.s32.totalorder %s14, 1
    %p74 = por %p72, %p73
    %p75 = scmp.ne.s32.totalorder %s66, %s67
    %p76 = scmp.eq.s32.totalorder %s14, 0
    %p77 = por %p75, %p76
    %p78 = scmp.ne.s32.totalorder %s66, %s67
    %p79 = scmp.eq.s32.totalorder %s15, 1
    %p80 = por %p78, %p79
    %p82 = scmp.ne.s32.totalorder %s67, %s81
    %p83 = scmp.eq.s32.totalorder %s15, 0
    %p84 = por %p82, %p83
    %s85 = ssub.s32 %s9, %s16
    %p86 = scmp.eq.s32.totalorder %s85, 0
    %s88 = sadd.s32 %s87, 1
    %s89 = scalar_select %p86, %s87, %s88
    %p92 = pneg %p86
    %p93 = scmp.eq.s32.totalorder %s9, 1
    %p94 = por %p92, %p93
    %p95 = scmp.ne.s32.totalorder %s87, %s90
    %p96 = scmp.eq.s32.totalorder %s9, 0
    %p97 = por %p95, %p96
    %p98 = scmp.ne.s32.totalorder %s87, %s90
    %p99 = scmp.eq.s32.totalorder %s14, 1
    %p100 = por %p98, %p99
    %p101 = scmp.ne.s32.totalorder %s90, %s91
    %p102 = scmp.eq.s32.totalorder %s14, 0
    %p103 = por %p101, %p102
    %p104 = scmp.ne.s32.totalorder %s90, %s91
    %p105 = scmp.eq.s32.totalorder %s15, 1
    %p106 = por %p104, %p105
    %p108 = scmp.ne.s32.totalorder %s91, %s107
    %p109 = scmp.eq.s32.totalorder %s15, 0
    %p110 = por %p108, %p109
    %p111 = scmp.le.s32.totalorder 1, %s9
    %p112 = scmp.lt.s32.totalorder %s9, 3
    %p113 = pnand %p111, %p112
    %p114 = pneg %p113
    // Predicated region
    $region9: #{rosettafold_forward.70} parent=5 // pred_check
      _
    $region10: #{rosettafold_forward.70} parent=5 // pred_check_branch
      %116 = sbr.rel (%p113) target = $region12
    $region11: #{rosettafold_forward.70} parent=5 // pred_region
      %s117 = ssub.s32 %s9, 1
      // Predicated region
      $region13: #{rosettafold_forward.70} parent=11 // pred_check
        %p118 = pneg %p56
      $region14: #{rosettafold_forward.70} parent=11 // pred_check_branch
        %120 = sbr.rel (%p118) target = $region16
      $region15: #{rosettafold_forward.70} parent=11 // pred_region
        _
      $region16: #{rosettafold_forward.70} parent=11 // pred_fallthru
        _
      // Predicated region
      $region17: #{rosettafold_forward.70} parent=11 // pred_check
        %p121 = pneg %p77
      $region18: #{rosettafold_forward.70} parent=11 // pred_check_branch
        %123 = sbr.rel (%p121) target = $region20
      $region19: #{rosettafold_forward.70} parent=11 // pred_region
        _
      $region20: #{rosettafold_forward.70} parent=11 // pred_fallthru
        _
    $region12: #{rosettafold_forward.70} parent=5 // pred_fallthru
      _
    %p124 = scmp.lt.s32.totalorder %s9, 2
    // Predicated region
    $region21: #{rosettafold_forward.70} parent=5 // pred_check
      %p125 = pneg %p124
    $region22: #{rosettafold_forward.70} parent=5 // pred_check_branch
      %127 = sbr.rel (%p125) target = $region24
    $region23: #{rosettafold_forward.70} parent=5 // pred_region
      // Predicated region
      $region25: #{rosettafold_forward.70} parent=23 // pred_check
        %p128 = pneg %p29
      $region26: #{rosettafold_forward.70} parent=23 // pred_check_branch
        %130 = sbr.rel (%p128) target = $region28
      $region27: #{rosettafold_forward.70} parent=23 // pred_region
        %s131 = smul.u32 4, %s9
        %p132 = scmp.lt.s32.totalorder %s131, 7
        %s133 = scalar_select %p132, %s131, 7
        %s134 = smul.addr %s133, 4
        %s135 = scalar_lea.vmem %s0, %s134
        %s136 = smul.u32 4, %s9
      $region28: #{rosettafold_forward.70} parent=23 // pred_fallthru
        _
    $region24: #{rosettafold_forward.70} parent=5 // pred_fallthru
      _
    %p137 = scmp.le.s32.totalorder 1, %s9
    %p138 = scmp.lt.s32.totalorder %s9, 3
    %p139 = pnand %p137, %p138
    %p140 = pneg %p139
    // Predicated region
    $region29: #{rosettafold_forward.70} parent=5 // pred_check
      _
    $region30: #{rosettafold_forward.70} parent=5 // pred_check_branch
      %142 = sbr.rel (%p139) target = $region32
    $region31: #{rosettafold_forward.70} parent=5 // pred_region
      %s143 = ssub.s32 %s9, 1
      %s144 = smul.u32 4, %s14
      %p145 = scmp.lt.s32.totalorder %s144, 7
      %s146 = scalar_select %p145, %s144, 7
      %s147 = smul.addr %s146, 4
      %s148 = scalar_lea.vmem %s0, %s147
      %p149 = pneg %p35
      %p150 = pneg %p32
      %p151 = pneg %p56
      %p152 = pneg %p53
      %p153 = pneg %p77
      %p154 = pneg %p74
      %p155 = pneg %p103
      %p156 = pneg %p100
      %s157 = smul.u32 4, %s14
      %p158 = scmp.lt.s32.totalorder %s157, 7
      %s159 = scalar_select %p158, %s157, 7
      %s160 = smul.addr %s159, 2
      %s161 = smul.addr %s160, 8
      %s162 = scalar_lea.vmem %s3, %s161
      %s163 = smul.u32 4, %s14
      %p164 = scmp.lt.s32.totalorder %s163, 7
      %s165 = scalar_select %p164, %s163, 7
      %s166 = smul.addr %s165, 4
      %s167 = scalar_lea.vmem %s0, %s166
      %s168 = smul.u32 4, %s14
      %s169 = smul.u32 4, %s14
      %p170 = scmp.lt.s32.totalorder %s169, 7
      %s171 = scalar_select %p170, %s169, 7
      %s172 = smul.addr %s171, 2
      %s173 = smul.addr %s172, 8
      %s174 = scalar_lea.vmem %s3, %s173
      %s175 = smul.u32 4, %s14
      %v177 = vld [vmem:[%s167] sm:$0xf]
      %v178 = vld [vmem:[%s167 + $0x4] sm:$0xf]
      %v179 = vld [vmem:[%s167 + $0x8] sm:$0xf]
      %v180 = vld [vmem:[%s167 + $0xc] sm:$0xf]
      %v181 = vld [vmem:[%s1] sm:$0xff]
      %v182 = vld [vmem:[%s1 + $0x8] sm:$0xff]
      %v183 = vld [vmem:[%s1 + $0x10] sm:$0xff]
      %v184 = vld [vmem:[%s1 + $0x18] sm:$0xff]
      %v185 = vld [vmem:[%s1 + $0x20] sm:$0xff]
      %v186 = vld [vmem:[%s1 + $0x28] sm:$0xff]
      %v187 = vld [vmem:[%s1 + $0x30] sm:$0xff]
      %v188 = vld [vmem:[%s1 + $0x38] sm:$0xff]
      %v189 = vld [vmem:[%s1 + $0x40] sm:$0xff]
      %v190 = vld [vmem:[%s1 + $0x48] sm:$0xff]
      %v191 = vld [vmem:[%s1 + $0x50] sm:$0xff]
      %v192 = vld [vmem:[%s1 + $0x58] sm:$0xff]
      %v193 = vld [vmem:[%s1 + $0x60] sm:$0xff]
      %v194 = vld [vmem:[%s1 + $0x68] sm:$0xff]
      %v195 = vld [vmem:[%s1 + $0x70] sm:$0xff]
      %v196 = vld [vmem:[%s1 + $0x78] sm:$0xff]
      %v197 = vld [vmem:[%s2] sm:$0x3]
      %v199 = vlaneseq
      %v200 = vshrl.u32 %v199, 7
      %v201 = vsub.s32 0, %v200
      %v202 = vrot.slane %v197, %v201
      %v203 = vlaneseq
      %v204 = vshrl.u32 %v203, 7
      %v205 = vsub.s32 1, %v204
      %v206 = vrot.slane %v197, %v205
      %v213 = vunpack.c.l.b16 %v177
      %v214 = vunpack.c.l.b16 %v178
      %v215 = vunpack.c.l.b16 %v179
      %v216 = vunpack.c.l.b16 %v180
      %v217 = vpack.c.b16 %v214, %v213
      %v218 = vpack.c.b16 %v216, %v215
      %v237 = vunpack.c.l.b16 %v181
      %v238 = vunpack.c.h.b16 %v181
      %v239 = vunpack.c.l.b16 %v182
      %v240 = vunpack.c.h.b16 %v182
      %v241 = vunpack.c.l.b16 %v183
      %v242 = vunpack.c.h.b16 %v183
      %v243 = vunpack.c.l.b16 %v184
      %v244 = vunpack.c.h.b16 %v184
      %v245 = vunpack.c.l.b16 %v185
      %v246 = vunpack.c.h.b16 %v185
      %v247 = vunpack.c.l.b16 %v186
      %v248 = vunpack.c.h.b16 %v186
      %v249 = vunpack.c.l.b16 %v187
      %v250 = vunpack.c.h.b16 %v187
      %v251 = vunpack.c.l.b16 %v188
      %v252 = vunpack.c.h.b16 %v188
      %v253 = vunpack.c.l.b16 %v189
      %v254 = vunpack.c.h.b16 %v189
      %v255 = vunpack.c.l.b16 %v190
      %v256 = vunpack.c.h.b16 %v190
      %v257 = vunpack.c.l.b16 %v191
      %v258 = vunpack.c.h.b16 %v191
      %v259 = vunpack.c.l.b16 %v192
      %v260 = vunpack.c.h.b16 %v192
      %v261 = vunpack.c.l.b16 %v193
      %v262 = vunpack.c.h.b16 %v193
      %v263 = vunpack.c.l.b16 %v194
      %v264 = vunpack.c.h.b16 %v194
      %v265 = vunpack.c.l.b16 %v195
      %v266 = vunpack.c.h.b16 %v195
      %v267 = vunpack.c.l.b16 %v196
      %v268 = vunpack.c.h.b16 %v196
      %v269 = vpack.c.b16 %v239, %v237
      %v270 = vpack.c.b16 %v240, %v238
      %v271 = vpack.c.b16 %v243, %v241
      %v272 = vpack.c.b16 %v244, %v242
      %v273 = vpack.c.b16 %v247, %v245
      %v274 = vpack.c.b16 %v248, %v246
      %v275 = vpack.c.b16 %v251, %v249
      %v276 = vpack.c.b16 %v252, %v250
      %v277 = vpack.c.b16 %v255, %v253
      %v278 = vpack.c.b16 %v256, %v254
      %v279 = vpack.c.b16 %v259, %v257
      %v280 = vpack.c.b16 %v260, %v258
      %v281 = vpack.c.b16 %v263, %v261
      %v282 = vpack.c.b16 %v264, %v262
      %v283 = vpack.c.b16 %v267, %v265
      %v284 = vpack.c.b16 %v268, %v266
      %301 = vmatprep.subr.bf16.mxu0 %v270
      %302 = vmatpush1.bf16.msra.mxu0 %v269
      %303 = vmatprep.subr.bf16.mxu0 %v272
      %304 = vmatpush1.bf16.msra.mxu0 %v271
      %305 = vmatprep.subr.bf16.mxu0 %v274
      %306 = vmatpush1.bf16.msra.mxu0 %v273
      %307 = vmatprep.subr.bf16.mxu0 %v276
      %308 = vmatpush1.bf16.msra.mxu0 %v275
      %309 = vmatprep.subr.bf16.mxu0 %v278
      %310 = vmatpush1.bf16.msra.mxu0 %v277
      %311 = vmatprep.subr.bf16.mxu0 %v280
      %312 = vmatpush1.bf16.msra.mxu0 %v279
      %313 = vmatprep.subr.bf16.mxu0 %v282
      %314 = vmatpush1.bf16.msra.mxu0 %v281
      %315 = vmatprep.subr.bf16.mxu0 %v284
      %316 = vmatpush1.bf16.msra.mxu0 %v283
      %317 = vmatprep.subr.bf16.mxu0 0
      %318 = vmatpush1.bf16.msra.mxu0 0
      %319 = vmatprep.subr.bf16.mxu0 0
      %320 = vmatpush1.bf16.msra.mxu0 0
      %321 = vmatprep.subr.bf16.mxu0 0
      %322 = vmatpush1.bf16.msra.mxu0 0
      %323 = vmatprep.subr.bf16.mxu0 0
      %324 = vmatpush1.bf16.msra.mxu0 0
      %325 = vmatprep.subr.bf16.mxu0 0
      %326 = vmatpush1.bf16.msra.mxu0 0
      %327 = vmatprep.subr.bf16.mxu0 0
      %328 = vmatpush1.bf16.msra.mxu0 0
      %329 = vmatprep.subr.bf16.mxu0 0
      %330 = vmatpush1.bf16.msra.mxu0 0
      %331 = vmatprep.subr.bf16.mxu0 0
      %332 = vmatpush1.bf16.msra.mxu0 0
      %333 = vmatprep.mubr.bf16.mxu0 0
      %334 = vmatmul.mubr.bf16.gmra.mrb[0].mxu0 %v217
      %v335 = vpop.f32.mrb[0].mxu0
      %v336 = vadd.f32 %v202, %v335
      %v337 = vpop.f32.mrb[0].mxu0
      %v338 = vadd.f32 %v206, %v337
      %v339 = vpop.f32.mrb[0].mxu0
      %v340 = vadd.f32 %v202, %v339
      %v341 = vpop.f32.mrb[0].mxu0
      %v342 = vadd.f32 %v206, %v341
      %343 = vmatprep.mubr.bf16.mxu0 0
      %344 = vmatmul.mubr.bf16.gmra.mrb[0].mxu0 %v218
      %v345 = vpop.f32.mrb[0].mxu0
      %v346 = vadd.f32 %v202, %v345
      %v347 = vpop.f32.mrb[0].mxu0
      %v348 = vadd.f32 %v206, %v347
      %v349 = vpop.f32.mrb[0].mxu0
      %v350 = vadd.f32 %v202, %v349
      %v351 = vpop.f32.mrb[0].mxu0
      %v352 = vadd.f32 %v206, %v351
      %353 = vdwg.mxu0
      %354 = vst [vmem:[%s174] sm:$0xff] %v336
      %355 = vst [vmem:[%s174 + $0x8] sm:$0xff] %v338
      %356 = vst [vmem:[%s174 + $0x10] sm:$0xff] %v340
      %357 = vst [vmem:[%s174 + $0x18] sm:$0xff] %v342
      %358 = vst [vmem:[%s174 + $0x20] sm:$0xff] %v346
      %359 = vst [vmem:[%s174 + $0x28] sm:$0xff] %v348
      %360 = vst [vmem:[%s174 + $0x30] sm:$0xff] %v350
      %361 = vst [vmem:[%s174 + $0x38] sm:$0xff] %v352
      %s362 = smul.u32 4, %s14
      %p363 = scmp.lt.s32.totalorder %s362, 7
      %s364 = scalar_select %p363, %s362, 7
      %s365 = smul.addr %s364, 2
      %s366 = smul.addr %s365, 8
      %s367 = scalar_lea.vmem %s3, %s366
      // Predicated region
      $region33: #{rosettafold_forward.70} parent=31 // pred_check
        %p368 = pneg %p100
      $region34: #{rosettafold_forward.70} parent=31 // pred_check_branch
        %370 = sbr.rel (%p368) target = $region36
      $region35: #{rosettafold_forward.70} parent=31 // pred_region
        %s371 = smul.u32 4, %s14
      $region36: #{rosettafold_forward.70} parent=31 // pred_fallthru
        _
    $region32: #{rosettafold_forward.70} parent=5 // pred_fallthru
      _
    %p372 = scmp.le.s32.totalorder 2, %s9
    // Predicated region
    $region37: #{rosettafold_forward.70} parent=5 // pred_check
      %p373 = pneg %p372
    $region38: #{rosettafold_forward.70} parent=5 // pred_check_branch
      %375 = sbr.rel (%p373) target = $region40
    $region39: #{rosettafold_forward.70} parent=5 // pred_region
      %s376 = ssub.s32 %s9, 2
      // Predicated region
      $region41: #{rosettafold_forward.70} parent=39 // pred_check
        %p377 = pneg %p106
      $region42: #{rosettafold_forward.70} parent=39 // pred_check_branch
        %379 = sbr.rel (%p377) target = $region44
      $region43: #{rosettafold_forward.70} parent=39 // pred_region
        %s380 = smul.u32 4, %s15
        %p381 = scmp.lt.s32.totalorder %s380, 7
        %s382 = scalar_select %p381, %s380, 7
        %s383 = smul.addr %s382, 2
        %s384 = smul.addr %s383, 8
        %s385 = scalar_lea.vmem %s3, %s384
      $region44: #{rosettafold_forward.70} parent=39 // pred_fallthru
        _
    $region40: #{rosettafold_forward.70} parent=5 // pred_fallthru
      _
  $region6: #{rosettafold_forward.70} parent=0 // loop_footer
    %s13 = sadd.s32 1, %s9
  $region7: #{rosettafold_forward.70} parent=0 // loop_footer_branch
    %8 = sbr.rel target = $region3
  $region8: #{rosettafold_forward.70} parent=0 // loop_exit
    _

// kernel: rosettafold_forward.48
$region0: #{rosettafold_forward.48}
  #allocation0 [shape = 'u32[]', space=smem, size = 0x4, offset = 0x4, fixed_abs, tag = 'smem constant byte address 0x4 - core index']
  #allocation1 [shape = 'u32[144,128]{1,0:T(1,128)}', space=vmem, size = 0x12000, scoped, tag = 'internal scratch']
  %s0 = inlined_call_operand.vmem [shape: bf16[1,64,128], index: 0, kind: input, shape index: {}]
  %s1 = inlined_call_operand.vmem [shape: bf16[1,8,32], index: 1, kind: input, shape index: {}]
  %s2 = inlined_call_operand.vmem [shape: bf16[1,8,32], index: 2, kind: input, shape index: {}]
  %s3 = inlined_call_operand.vmem [shape: bf16[32,128], index: 3, kind: input, shape index: {}]
  %s4 = inlined_call_operand.vmem [shape: f32[1,128], index: 4, kind: input, shape index: {}]
  %s5 = inlined_call_operand.vmem [shape: bf16[1,64,128], index: 5, kind: output, shape index: {}]
  %s6 = sld [smem:[#allocation0]]
  $region30: #{rosettafold_forward.48} parent=0
    _
  %s8 = ssub.s32 1, %s6
  %s9 = scalar_select 0, %s8, %s6
  // Predicated region
  $region2: #{rosettafold_forward.48} parent=0 // pred_check
    _
  $region3: #{rosettafold_forward.48} parent=0 // pred_check_branch
    %11 = sbr.rel (0) target = $region5
  $region4: #{rosettafold_forward.48} parent=0 // pred_region
    _
  $region5: #{rosettafold_forward.48} parent=0 // pred_fallthru
    _
  // Predicated region
  $region6: #{rosettafold_forward.48} parent=0 // pred_check
    _
  $region7: #{rosettafold_forward.48} parent=0 // pred_check_branch
    %13 = sbr.rel (0) target = $region9
  $region8: #{rosettafold_forward.48} parent=0 // pred_region
    _
  $region9: #{rosettafold_forward.48} parent=0 // pred_fallthru
    _
  // Predicated region
  $region10: #{rosettafold_forward.48} parent=0 // pred_check
    _
  $region11: #{rosettafold_forward.48} parent=0 // pred_check_branch
    %15 = sbr.rel (0) target = $region13
  $region12: #{rosettafold_forward.48} parent=0 // pred_region
    _
  $region13: #{rosettafold_forward.48} parent=0 // pred_fallthru
    _
  // Predicated region
  $region14: #{rosettafold_forward.48} parent=0 // pred_check
    _
  $region15: #{rosettafold_forward.48} parent=0 // pred_check_branch
    %17 = sbr.rel (0) target = $region17
  $region16: #{rosettafold_forward.48} parent=0 // pred_region
    _
  $region17: #{rosettafold_forward.48} parent=0 // pred_fallthru
    _
  // Predicated region
  $region18: #{rosettafold_forward.48} parent=0 // pred_check
    _
  $region19: #{rosettafold_forward.48} parent=0 // pred_check_branch
    %19 = sbr.rel (0) target = $region21
  $region20: #{rosettafold_forward.48} parent=0 // pred_region
    _
  $region21: #{rosettafold_forward.48} parent=0 // pred_fallthru
    _
  %v21 = vld [vmem:[%s1] sm:$0xf]
  %v22 = vunpack.c.l.bf16 %v21
  %v23 = vld [vmem:[%s2] sm:$0xf]
  %v24 = vunpack.c.l.bf16 %v23
  %v26 = vcombine.high %v22, %v22
  %v28 = vunpack.c.l.s4 1966171168
  %v29 = vunpack.c.0.s8 %v28
  %v30 = vlaneseq
  %v31 = vshrl.u32 %v30, 7
  %v32 = vsub.s32 %v29, %v31
  %v33 = vrot.slane %v22, %v32
  %v35 = vunpack.c.l.s4 1966171168
  %v36 = vunpack.c.0.s8 %v35
  %v37 = vlaneseq
  %v38 = vshrl.u32 %v37, 7
  %v39 = vsub.s32 %v36, %v38
  %v40 = vrot.slane %v26, %v39
  %v41 = vcombine.high %v33, %v33
  %v42 = vcombine.high %v40, %v40
  %v44 = vunpack.c.l.s4 1966171168
  %v45 = vunpack.c.0.s8 %v44
  %v46 = vlaneseq
  %v47 = vshrl.u32 %v46, 7
  %v48 = vsub.s32 %v45, %v47
  %v49 = vrot.slane %v33, %v48
  %v51 = vunpack.c.l.s4 1966171168
  %v52 = vunpack.c.0.s8 %v51
  %v53 = vlaneseq
  %v54 = vshrl.u32 %v53, 7
  %v55 = vsub.s32 %v52, %v54
  %v56 = vrot.slane %v40, %v55
  %v58 = vunpack.c.l.s4 1966171168
  %v59 = vunpack.c.0.s8 %v58
  %v60 = vlaneseq
  %v61 = vshrl.u32 %v60, 7
  %v62 = vsub.s32 %v59, %v61
  %v63 = vrot.slane %v41, %v62
  %v65 = vunpack.c.l.s4 1966171168
  %v66 = vunpack.c.0.s8 %v65
  %v67 = vlaneseq
  %v68 = vshrl.u32 %v67, 7
  %v69 = vsub.s32 %v66, %v68
  %v70 = vrot.slane %v42, %v69
  %v71 = vcombine.high %v49, %v49
  %v72 = vcombine.high %v56, %v56
  %v73 = vcombine.high %v63, %v63
  %v74 = vcombine.high %v70, %v70
  %v75 = vlaneseq
  %v76 = vshrl.u32 %v75, 7
  %v77 = vsub.s32 0, %v76
  %v78 = vrot.slane %v49, %v77
  %v79 = vlaneseq
  %v80 = vshrl.u32 %v79, 7
  %v81 = vsub.s32 0, %v80
  %v82 = vrot.slane %v63, %v81
  %v83 = vlaneseq
  %v84 = vshrl.u32 %v83, 7
  %v85 = vsub.s32 0, %v84
  %v86 = vrot.slane %v71, %v85
  %v87 = vlaneseq
  %v88 = vshrl.u32 %v87, 7
  %v89 = vsub.s32 0, %v88
  %v90 = vrot.slane %v73, %v89
  %v91 = vlaneseq
  %v92 = vshrl.u32 %v91, 7
  %v93 = vsub.s32 0, %v92
  %v94 = vrot.slane %v56, %v93
  %v95 = vlaneseq
  %v96 = vshrl.u32 %v95, 7
  %v97 = vsub.s32 0, %v96
  %v98 = vrot.slane %v70, %v97
  %v99 = vlaneseq
  %v100 = vshrl.u32 %v99, 7
  %v101 = vsub.s32 0, %v100
  %v102 = vrot.slane %v72, %v101
  %v103 = vlaneseq
  %v104 = vshrl.u32 %v103, 7
  %v105 = vsub.s32 0, %v104
  %v106 = vrot.slane %v74, %v105
  %v115 = vmul.f32 %v78, %v24
  %v116 = vmul.f32 %v82, %v24
  %v117 = vmul.f32 %v86, %v24
  %v118 = vmul.f32 %v90, %v24
  %v119 = vmul.f32 %v94, %v24
  %v120 = vmul.f32 %v98, %v24
  %v121 = vmul.f32 %v102, %v24
  %v122 = vmul.f32 %v106, %v24
  %v123 = vpack.c.bf16 %v116, %v115
  %v124 = vpack.c.bf16 %v118, %v117
  %v125 = vpack.c.bf16 %v120, %v119
  %v126 = vpack.c.bf16 %v122, %v121
  %v127 = vld [vmem:[%s3] sm:$0xf]
  %v128 = vld [vmem:[%s3 + $0x4] sm:$0xf]
  %v129 = vld [vmem:[%s3 + $0x8] sm:$0xf]
  %v130 = vld [vmem:[%s3 + $0xc] sm:$0xf]
  %v131 = vld [vmem:[%s4] sm:$0x1]
  %v133 = vlaneseq
  %v134 = vshrl.u32 %v133, 7
  %v135 = vsub.s32 0, %v134
  %v136 = vrot.slane %v131, %v135
  %v142 = vunpack.c.l.b16 %v127
  %v143 = vunpack.c.l.b16 %v128
  %v144 = vunpack.c.l.b16 %v129
  %v145 = vunpack.c.l.b16 %v130
  %v146 = vpack.c.b16 %v143, %v142
  %v147 = vpack.c.b16 %v145, %v144
  %vm150 = vcmask 261120
  %v152 = vsel %vm150, %v123, 0
  %v155 = vsel %vm150, %v124, 0
  %v158 = vsel %vm150, %v125, 0
  %v161 = vsel %vm150, %v126, 0
  %163 = vmatprep.subr.bf16.mxu0 0
  %164 = vmatpush1.bf16.msra.mxu0 %v146
  %165 = vmatprep.subr.bf16.mxu0 0
  %166 = vmatpush1.bf16.msra.mxu0 %v147
  %167 = vmatprep.subr.bf16.mxu0 0
  %168 = vmatpush1.bf16.msra.mxu0 0
  %169 = vmatprep.subr.bf16.mxu0 0
  %170 = vmatpush1.bf16.msra.mxu0 0
  %171 = vmatprep.subr.bf16.mxu0 0
  %172 = vmatpush1.bf16.msra.mxu0 0
  %173 = vmatprep.subr.bf16.mxu0 0
  %174 = vmatpush1.bf16.msra.mxu0 0
  %175 = vmatprep.subr.bf16.mxu0 0
  %176 = vmatpush1.bf16.msra.mxu0 0
  %177 = vmatprep.subr.bf16.mxu0 0
  %178 = vmatpush1.bf16.msra.mxu0 0
  %179 = vmatprep.subr.bf16.mxu0 0
  %180 = vmatpush1.bf16.msra.mxu0 0
  %181 = vmatprep.subr.bf16.mxu0 0
  %182 = vmatpush1.bf16.msra.mxu0 0
  %183 = vmatprep.subr.bf16.mxu0 0
  %184 = vmatpush1.bf16.msra.mxu0 0
  %185 = vmatprep.subr.bf16.mxu0 0
  %186 = vmatpush1.bf16.msra.mxu0 0
  %187 = vmatprep.subr.bf16.mxu0 0
  %188 = vmatpush1.bf16.msra.mxu0 0
  %189 = vmatprep.subr.bf16.mxu0 0
  %190 = vmatpush1.bf16.msra.mxu0 0
  %191 = vmatprep.subr.bf16.mxu0 0
  %192 = vmatpush1.bf16.msra.mxu0 0
  %193 = vmatprep.subr.bf16.mxu0 0
  %194 = vmatpush1.bf16.msra.mxu0 0
  %195 = vmatprep.mubr.bf16.mxu0 0
  %196 = vmatmul.mubr.bf16.gmra.mrb[0].mxu0 %v152
  %v197 = vpop.f32.mrb[0].mxu0
  %v198 = vadd.f32 %v136, %v197
  %v199 = vpop.f32.mrb[0].mxu0
  %v200 = vpop.f32.mrb[0].mxu0
  %v201 = vadd.f32 %v136, %v200
  %v202 = vpop.f32.mrb[0].mxu0
  %203 = vmatprep.mubr.bf16.mxu0 0
  %204 = vmatmul.mubr.bf16.gmra.mrb[0].mxu0 %v155
  %v205 = vpop.f32.mrb[0].mxu0
  %v206 = vadd.f32 %v136, %v205
  %v207 = vpop.f32.mrb[0].mxu0
  %v208 = vpop.f32.mrb[0].mxu0
  %v209 = vadd.f32 %v136, %v208
  %v210 = vpop.f32.mrb[0].mxu0
  %211 = vmatprep.mubr.bf16.mxu0 0
  %212 = vmatmul.mubr.bf16.gmra.mrb[0].mxu0 %v158
  %v213 = vpop.f32.mrb[0].mxu0
  %v214 = vadd.f32 %v136, %v213
  %v215 = vpop.f32.mrb[0].mxu0
  %v216 = vpop.f32.mrb[0].mxu0
  %v217 = vadd.f32 %v136, %v216
  %v218 = vpop.f32.mrb[0].mxu0
  %219 = vmatprep.mubr.bf16.mxu0 0
  %220 = vmatmul.mubr.bf16.gmra.mrb[0].mxu0 %v161
  %v221 = vpop.f32.mrb[0].mxu0
  %v222 = vadd.f32 %v136, %v221
  %v223 = vpop.f32.mrb[0].mxu0
  %v224 = vpop.f32.mrb[0].mxu0
  %v225 = vadd.f32 %v136, %v224
  %v226 = vpop.f32.mrb[0].mxu0
  %227 = vdwg.mxu0
  %v228 = vld [vmem:[%s0] sm:$0xf]
  %v229 = vld [vmem:[%s0 + $0x4] sm:$0xf]
  %v230 = vld [vmem:[%s0 + $0x8] sm:$0xf]
  %v231 = vld [vmem:[%s0 + $0xc] sm:$0xf]
  %v232 = vld [vmem:[%s0 + $0x10] sm:$0xf]
  %v233 = vld [vmem:[%s0 + $0x14] sm:$0xf]
  %v234 = vld [vmem:[%s0 + $0x18] sm:$0xf]
  %v235 = vld [vmem:[%s0 + $0x1c] sm:$0xf]
  %v236 = vunpack.c.l.bf16 %v228
  %v237 = vunpack.c.l.bf16 %v229
  %v238 = vunpack.c.l.bf16 %v230
  %v239 = vunpack.c.l.bf16 %v231
  %v240 = vunpack.c.l.bf16 %v232
  %v241 = vunpack.c.l.bf16 %v233
  %v242 = vunpack.c.l.bf16 %v234
  %v243 = vunpack.c.l.bf16 %v235
  %v244 = vadd.f32 %v236, %v198
  %v245 = vadd.f32 %v237, %v201
  %v246 = vadd.f32 %v238, %v206
  %v247 = vadd.f32 %v239, %v209
  %v248 = vadd.f32 %v240, %v214
  %v249 = vadd.f32 %v241, %v217
  %v250 = vadd.f32 %v242, %v222
  %v251 = vadd.f32 %v243, %v225
  %v252 = vpack.c.bf16 %v245, %v244
  %v253 = vpack.c.bf16 %v247, %v246
  %v254 = vpack.c.bf16 %v249, %v248
  %v255 = vpack.c.bf16 %v251, %v250
  %v260 = vunpack.c.l.b16 %v252
  %v261 = vunpack.c.h.b16 %v252
  %v262 = vunpack.c.l.b16 %v253
  %v263 = vunpack.c.h.b16 %v253
  %v264 = vunpack.c.l.b16 %v254
  %v265 = vunpack.c.h.b16 %v254
  %v266 = vunpack.c.l.b16 %v255
  %v267 = vunpack.c.h.b16 %v255
  %v268 = vpack.c.b16 %v260, %v260
  %v269 = vpack.c.b16 %v261, %v261
  %v270 = vpack.c.b16 %v262, %v262
  %v271 = vpack.c.b16 %v263, %v263
  %v272 = vpack.c.b16 %v264, %v264
  %v273 = vpack.c.b16 %v265, %v265
  %v274 = vpack.c.b16 %v266, %v266
  %v275 = vpack.c.b16 %v267, %v267
  %284 = vst [vmem:[%s5] sm:$0xf] %v268
  %285 = vst [vmem:[%s5 + $0x4] sm:$0xf] %v269
  %286 = vst [vmem:[%s5 + $0x8] sm:$0xf] %v270
  %287 = vst [vmem:[%s5 + $0xc] sm:$0xf] %v271
  %288 = vst [vmem:[%s5 + $0x10] sm:$0xf] %v272
  %289 = vst [vmem:[%s5 + $0x14] sm:$0xf] %v273
  %290 = vst [vmem:[%s5 + $0x18] sm:$0xf] %v274
  %291 = vst [vmem:[%s5 + $0x1c] sm:$0xf] %v275
  // Predicated region
  $region22: #{rosettafold_forward.48} parent=0 // pred_check
    _
  $region23: #{rosettafold_forward.48} parent=0 // pred_check_branch
    %293 = sbr.rel (0) target = $region25
  $region24: #{rosettafold_forward.48} parent=0 // pred_region
    _
  $region25: #{rosettafold_forward.48} parent=0 // pred_fallthru
    _
  // Predicated region
  $region26: #{rosettafold_forward.48} parent=0 // pred_check
    _
  $region27: #{rosettafold_forward.48} parent=0 // pred_check_branch
    %295 = sbr.rel (0) target = $region29
  $region28: #{rosettafold_forward.48} parent=0 // pred_region
    _
  $region29: #{rosettafold_forward.48} parent=0 // pred_fallthru
    _

// kernel: rosettafold_forward.43
$region0: #{rosettafold_forward.43}
  #allocation0 [shape = 'u32[]', space=smem, size = 0x4, offset = 0x4, fixed_abs, tag = 'smem constant byte address 0x4 - core index']
  #allocation1 [shape = 'u32[144,128]{1,0:T(1,128)}', space=vmem, size = 0x12000, scoped, tag = 'internal scratch']
  #allocation2 [shape = 'f32[64,128]{1,0:T(8,128)}', space=vmem, size = 0x8000, scoped, tag = 'scratch operand']
  #allocation3 [shape = 'f32[64,1]{1,0:T(8,128)}', space=vmem, size = 0x8000, scoped, tag = 'scratch operand']
  %s0 = inlined_call_operand.vmem [shape: f32[1,64,128], index: 0, kind: input, shape index: {}]
  %s1 = inlined_call_operand.vmem [shape: f32[1,2,64,44], index: 1, kind: input, shape index: {}]
  %s2 = inlined_call_operand.vmem [shape: f32[1,2,64,1], index: 2, kind: input, shape index: {}]
  %s3 = inlined_call_operand.vmem [shape: bf16[44,128], index: 3, kind: input, shape index: {}]
  %s4 = inlined_call_operand.vmem [shape: f32[1,128], index: 4, kind: input, shape index: {}]
  %s5 = inlined_call_operand.vmem [shape: bf16[1,64,128], index: 5, kind: output, shape index: {}]
  %s6 = sld [smem:[#allocation0]]
  $region61: #{rosettafold_forward.43} parent=0
    _
  %s8 = ssub.s32 1, %s6
  %s9 = scalar_select 0, %s8, %s6
  loop: start=0, step=1, limit=4
  $region2: #{rosettafold_forward.43} parent=0 // loop_pre_header
    _
  $region3: #{rosettafold_forward.43} parent=0 // loop_header
    %s11 = sphi 0, %s15
    %p12 = scmp.ge.s32.totalorder %s11, 4
    %s18 = sphi 0, %s37
    %s19 = sphi 0, %s33
    %s20 = sphi 0, %s29
    %s21 = sphi 0, %s18
    %s22 = sphi 0, %s19
    %s23 = sphi 0, %s20
    %s24 = sphi 0, %s21
    %s25 = sphi 0, %s22
    %s26 = sphi 0, %s23
    %s42 = sphi 0, %s44
    %s45 = sphi 0, %s42
    %s46 = sphi 0, %s45
    %s62 = sphi 0, %s46
    %s72 = sphi 0, %s74
    %s75 = sphi 0, %s72
    %s76 = sphi 0, %s75
    %s92 = sphi 0, %s76
    %s102 = sphi 0, %s104
    %s105 = sphi 0, %s102
    %s106 = sphi 0, %s105
    %s122 = sphi 0, %s106
    %s126 = sphi 0, %s126
    %s128 = sphi 0, %s126
    %s129 = sphi 0, %s128
    %s143 = sphi 0, %s129
    %s147 = sphi 0, %s147
    %s149 = sphi 0, %s147
    %s150 = sphi 0, %s149
    %s164 = sphi 0, %s150
    %s172 = sphi 0, %s174
    %s175 = sphi 0, %s172
    %s176 = sphi 0, %s175
    %s192 = sphi 0, %s176
  $region4: #{rosettafold_forward.43} parent=0 // loop_header_branch
    %14 = sbr.rel (%p12) target = $region8
  $region5: #{rosettafold_forward.43} parent=0 // loop_body
    %s16 = ssub.s32 %s11, 1
    %s17 = ssub.s32 %s11, 2
    %s27 = sadd.s32 1, %s20
    %p28 = scmp.ge.s32.totalorder %s27, 2
    %s29 = scalar_select %p28, 0, %s27
    %s30 = sadd.s32 1, %s19
    %s31 = scalar_select %p28, %s30, %s19
    %p32 = scmp.ge.s32.totalorder %s31, 1
    %s33 = scalar_select %p32, 0, %s31
    %s34 = sadd.s32 1, %s18
    %s35 = scalar_select %p32, %s34, %s18
    %p36 = scmp.ge.s32.totalorder %s35, 1
    %s37 = scalar_select %p36, 0, %s35
    %s38 = ssub.s32 %s18, %s37
    %s39 = ssub.s32 %s19, %s33
    %s40 = sor.u32 %s38, %s39
    %p41 = scmp.eq.s32.totalorder %s40, 0
    %s43 = sadd.s32 %s42, 1
    %s44 = scalar_select %p41, %s42, %s43
    %p47 = pneg %p41
    %p48 = scmp.eq.s32.totalorder %s11, 1
    %p49 = por %p47, %p48
    %p50 = scmp.ne.s32.totalorder %s42, %s45
    %p51 = scmp.eq.s32.totalorder %s11, 0
    %p52 = por %p50, %p51
    %p53 = scmp.ne.s32.totalorder %s42, %s45
    %p54 = scmp.eq.s32.totalorder %s16, 1
    %p55 = por %p53, %p54
    %p56 = scmp.ne.s32.totalorder %s45, %s46
    %p57 = scmp.eq.s32.totalorder %s16, 0
    %p58 = por %p56, %p57
    %p59 = scmp.ne.s32.totalorder %s45, %s46
    %p60 = scmp.eq.s32.totalorder %s17, 1
    %p61 = por %p59, %p60
    %p63 = scmp.ne.s32.totalorder %s46, %s62
    %p64 = scmp.eq.s32.totalorder %s17, 0
    %p65 = por %p63, %p64
    %s66 = ssub.s32 %s18, %s37
    %s67 = ssub.s32 %s20, %s29
    %s68 = sor.u32 %s66, %s67
    %s69 = ssub.s32 %s19, %s33
    %s70 = sor.u32 %s68, %s69
    %p71 = scmp.eq.s32.totalorder %s70, 0
    %s73 = sadd.s32 %s72, 1
    %s74 = scalar_select %p71, %s72, %s73
    %p77 = pneg %p71
    %p78 = scmp.eq.s32.totalorder %s11, 1
    %p79 = por %p77, %p78
    %p80 = scmp.ne.s32.totalorder %s72, %s75
    %p81 = scmp.eq.s32.totalorder %s11, 0
    %p82 = por %p80, %p81
    %p83 = scmp.ne.s32.totalorder %s72, %s75
    %p84 = scmp.eq.s32.totalorder %s16, 1
    %p85 = por %p83, %p84
    %p86 = scmp.ne.s32.totalorder %s75, %s76
    %p87 = scmp.eq.s32.totalorder %s16, 0
    %p88 = por %p86, %p87
    %p89 = scmp.ne.s32.totalorder %s75, %s76
    %p90 = scmp.eq.s32.totalorder %s17, 1
    %p91 = por %p89, %p90
    %p93 = scmp.ne.s32.totalorder %s76, %s92
    %p94 = scmp.eq.s32.totalorder %s17, 0
    %p95 = por %p93, %p94
    %s96 = ssub.s32 %s18, %s37
    %s97 = ssub.s32 %s20, %s29
    %s98 = sor.u32 %s96, %s97
    %s99 = ssub.s32 %s19, %s33
    %s100 = sor.u32 %s98, %s99
    %p101 = scmp.eq.s32.totalorder %s100, 0
    %s103 = sadd.s32 %s102, 1
    %s104 = scalar_select %p101, %s102, %s103
    %p107 = pneg %p101
    %p108 = scmp.eq.s32.totalorder %s11, 1
    %p109 = por %p107, %p108
    %p110 = scmp.ne.s32.totalorder %s102, %s105
    %p111 = scmp.eq.s32.totalorder %s11, 0
    %p112 = por %p110, %p111
    %p113 = scmp.ne.s32.totalorder %s102, %s105
    %p114 = scmp.eq.s32.totalorder %s16, 1
    %p115 = por %p113, %p114
    %p116 = scmp.ne.s32.totalorder %s105, %s106
    %p117 = scmp.eq.s32.totalorder %s16, 0
    %p118 = por %p116, %p117
    %p119 = scmp.ne.s32.totalorder %s105, %s106
    %p120 = scmp.eq.s32.totalorder %s17, 1
    %p121 = por %p119, %p120
    %p123 = scmp.ne.s32.totalorder %s106, %s122
    %p124 = scmp.eq.s32.totalorder %s17, 0
    %p125 = por %p123, %p124
    %s127 = sadd.s32 %s126, 1
    %p130 = scmp.eq.s32.totalorder %s11, 1
    %p131 = scmp.ne.s32.totalorder %s126, %s128
    %p132 = scmp.eq.s32.totalorder %s11, 0
    %p133 = por %p131, %p132
    %p134 = scmp.ne.s32.totalorder %s126, %s128
    %p135 = scmp.eq.s32.totalorder %s16, 1
    %p136 = por %p134, %p135
    %p137 = scmp.ne.s32.totalorder %s128, %s129
    %p138 = scmp.eq.s32.totalorder %s16, 0
    %p139 = por %p137, %p138
    %p140 = scmp.ne.s32.totalorder %s128, %s129
    %p141 = scmp.eq.s32.totalorder %s17, 1
    %p142 = por %p140, %p141
    %p144 = scmp.ne.s32.totalorder %s129, %s143
    %p145 = scmp.eq.s32.totalorder %s17, 0
    %p146 = por %p144, %p145
    %s148 = sadd.s32 %s147, 1
    %p151 = scmp.eq.s32.totalorder %s11, 1
    %p152 = scmp.ne.s32.totalorder %s147, %s149
    %p153 = scmp.eq.s32.totalorder %s11, 0
    %p154 = por %p152, %p153
    %p155 = scmp.ne.s32.totalorder %s147, %s149
    %p156 = scmp.eq.s32.totalorder %s16, 1
    %p157 = por %p155, %p156
    %p158 = scmp.ne.s32.totalorder %s149, %s150
    %p159 = scmp.eq.s32.totalorder %s16, 0
    %p160 = por %p158, %p159
    %p161 = scmp.ne.s32.totalorder %s149, %s150
    %p162 = scmp.eq.s32.totalorder %s17, 1
    %p163 = por %p161, %p162
    %p165 = scmp.ne.s32.totalorder %s150, %s164
    %p166 = scmp.eq.s32.totalorder %s17, 0
    %p167 = por %p165, %p166
    %s168 = ssub.s32 %s18, %s37
    %s169 = ssub.s32 %s19, %s33
    %s170 = sor.u32 %s168, %s169
    %p171 = scmp.eq.s32.totalorder %s170, 0
    %s173 = sadd.s32 %s172, 1
    %s174 = scalar_select %p171, %s172, %s173
    %p177 = pneg %p171
    %p178 = scmp.eq.s32.totalorder %s11, 1
    %p179 = por %p177, %p178
    %p180 = scmp.ne.s32.totalorder %s172, %s175
    %p181 = scmp.eq.s32.totalorder %s11, 0
    %p182 = por %p180, %p181
    %p183 = scmp.ne.s32.totalorder %s172, %s175
    %p184 = scmp.eq.s32.totalorder %s16, 1
    %p185 = por %p183, %p184
    %p186 = scmp.ne.s32.totalorder %s175, %s176
    %p187 = scmp.eq.s32.totalorder %s16, 0
    %p188 = por %p186, %p187
    %p189 = scmp.ne.s32.totalorder %s175, %s176
    %p190 = scmp.eq.s32.totalorder %s17, 1
    %p191 = por %p189, %p190
    %p193 = scmp.ne.s32.totalorder %s176, %s192
    %p194 = scmp.eq.s32.totalorder %s17, 0
    %p195 = por %p193, %p194
    %p196 = scmp.le.s32.totalorder 1, %s11
    %p197 = scmp.lt.s32.totalorder %s11, 3
    %p198 = pnand %p196, %p197
    %p199 = pneg %p198
    // Predicated region
    $region9: #{rosettafold_forward.43} parent=5 // pred_check
      _
    $region10: #{rosettafold_forward.43} parent=5 // pred_check_branch
      %201 = sbr.rel (%p198) target = $region12
    $region11: #{rosettafold_forward.43} parent=5 // pred_region
      %s202 = ssub.s32 %s11, 1
      // Predicated region
      $region13: #{rosettafold_forward.43} parent=11 // pred_check
        %p203 = pneg %p58
      $region14: #{rosettafold_forward.43} parent=11 // pred_check_branch
        %205 = sbr.rel (%p203) target = $region16
      $region15: #{rosettafold_forward.43} parent=11 // pred_region
        %s206 = smul.u32 8, %s22
        %p207 = scmp.lt.s32.totalorder %s21, 0
        %s208 = scalar_select %p207, %s21, 0
        %p209 = scmp.lt.s32.totalorder %s206, 7
        %s210 = scalar_select %p209, %s206, 7
        %s211 = smul.addr %s208, 8
        %s212 = sadd.s32 %s210, %s211
        %s213 = smul.addr %s212, 8
        %s214 = scalar_lea.vmem %s0, %s213
        %s215 = smul.u32 8, %s22
      $region16: #{rosettafold_forward.43} parent=11 // pred_fallthru
        _
      // Predicated region
      $region17: #{rosettafold_forward.43} parent=11 // pred_check
        %p216 = pneg %p139
      $region18: #{rosettafold_forward.43} parent=11 // pred_check_branch
        %218 = sbr.rel (%p216) target = $region20
      $region19: #{rosettafold_forward.43} parent=11 // pred_region
        _
      $region20: #{rosettafold_forward.43} parent=11 // pred_fallthru
        _
      // Predicated region
      $region21: #{rosettafold_forward.43} parent=11 // pred_check
        %p219 = pneg %p160
      $region22: #{rosettafold_forward.43} parent=11 // pred_check_branch
        %221 = sbr.rel (%p219) target = $region24
      $region23: #{rosettafold_forward.43} parent=11 // pred_region
        _
      $region24: #{rosettafold_forward.43} parent=11 // pred_fallthru
        _
    $region12: #{rosettafold_forward.43} parent=5 // pred_fallthru
      _
    %p222 = scmp.lt.s32.totalorder %s11, 2
    // Predicated region
    $region25: #{rosettafold_forward.43} parent=5 // pred_check
      %p223 = pneg %p222
    $region26: #{rosettafold_forward.43} parent=5 // pred_check_branch
      %225 = sbr.rel (%p223) target = $region28
    $region27: #{rosettafold_forward.43} parent=5 // pred_region
      // Predicated region
      $region29: #{rosettafold_forward.43} parent=27 // pred_check
        %p226 = pneg %p82
      $region30: #{rosettafold_forward.43} parent=27 // pred_check_branch
        %228 = sbr.rel (%p226) target = $region32
      $region31: #{rosettafold_forward.43} parent=27 // pred_region
        %s229 = smul.u32 8, %s19
        %p230 = scmp.lt.s32.totalorder %s18, 0
        %s231 = scalar_select %p230, %s18, 0
        %p232 = scmp.lt.s32.totalorder %s20, 1
        %s233 = scalar_select %p232, %s20, 1
        %p234 = scmp.lt.s32.totalorder %s229, 7
        %s235 = scalar_select %p234, %s229, 7
        %s236 = smul.addr %s233, 8
        %s237 = sadd.s32 %s235, %s236
        %s238 = smul.addr %s231, 16
        %s239 = sadd.s32 %s237, %s238
        %s240 = smul.addr %s239, 8
        %s241 = scalar_lea.vmem %s1, %s240
        %s242 = smul.u32 8, %s19
      $region32: #{rosettafold_forward.43} parent=27 // pred_fallthru
        _
      // Predicated region
      $region33: #{rosettafold_forward.43} parent=27 // pred_check
        %p243 = pneg %p112
      $region34: #{rosettafold_forward.43} parent=27 // pred_check_branch
        %245 = sbr.rel (%p243) target = $region36
      $region35: #{rosettafold_forward.43} parent=27 // pred_region
        %s246 = smul.u32 8, %s19
        %p247 = scmp.lt.s32.totalorder %s18, 0
        %s248 = scalar_select %p247, %s18, 0
        %p249 = scmp.lt.s32.totalorder %s20, 1
        %s250 = scalar_select %p249, %s20, 1
        %p251 = scmp.lt.s32.totalorder %s246, 7
        %s252 = scalar_select %p251, %s246, 7
        %s253 = smul.addr %s250, 8
        %s254 = sadd.s32 %s252, %s253
        %s255 = smul.addr %s248, 16
        %s256 = sadd.s32 %s254, %s255
        %s257 = smul.addr %s256, 8
        %s258 = scalar_lea.vmem %s2, %s257
        %s259 = smul.u32 8, %s19
      $region36: #{rosettafold_forward.43} parent=27 // pred_fallthru
        _
    $region28: #{rosettafold_forward.43} parent=5 // pred_fallthru
      _
    %p260 = scmp.le.s32.totalorder 1, %s11
    %p261 = scmp.lt.s32.totalorder %s11, 3
    %p262 = pnand %p260, %p261
    %p263 = pneg %p262
    // Predicated region
    $region37: #{rosettafold_forward.43} parent=5 // pred_check
      _
    $region38: #{rosettafold_forward.43} parent=5 // pred_check_branch
      %265 = sbr.rel (%p262) target = $region40
    $region39: #{rosettafold_forward.43} parent=5 // pred_region
      %s266 = ssub.s32 %s11, 1
      %s267 = smul.u32 8, %s22
      %p268 = scmp.lt.s32.totalorder %s21, 0
      %s269 = scalar_select %p268, %s21, 0
      %p270 = scmp.lt.s32.totalorder %s267, 7
      %s271 = scalar_select %p270, %s267, 7
      %s272 = smul.addr %s269, 8
      %s273 = sadd.s32 %s271, %s272
      %s274 = smul.addr %s273, 8
      %s275 = scalar_lea.vmem %s0, %s274
      %p276 = pneg %p58
      %p277 = pneg %p55
      %s278 = smul.u32 8, %s22
      %p279 = scmp.lt.s32.totalorder %s21, 0
      %s280 = scalar_select %p279, %s21, 0
      %p281 = scmp.lt.s32.totalorder %s23, 1
      %s282 = scalar_select %p281, %s23, 1
      %p283 = scmp.lt.s32.totalorder %s278, 7
      %s284 = scalar_select %p283, %s278, 7
      %s285 = smul.addr %s282, 8
      %s286 = sadd.s32 %s284, %s285
      %s287 = smul.addr %s280, 16
      %s288 = sadd.s32 %s286, %s287
      %s289 = smul.addr %s288, 8
      %s290 = scalar_lea.vmem %s1, %s289
      %p291 = pneg %p88
      %p292 = pneg %p85
      %s293 = smul.u32 8, %s22
      %p294 = scmp.lt.s32.totalorder %s21, 0
      %s295 = scalar_select %p294, %s21, 0
      %p296 = scmp.lt.s32.totalorder %s23, 1
      %s297 = scalar_select %p296, %s23, 1
      %p298 = scmp.lt.s32.totalorder %s293, 7
      %s299 = scalar_select %p298, %s293, 7
      %s300 = smul.addr %s297, 8
      %s301 = sadd.s32 %s299, %s300
      %s302 = smul.addr %s295, 16
      %s303 = sadd.s32 %s301, %s302
      %s304 = smul.addr %s303, 8
      %s305 = scalar_lea.vmem %s2, %s304
      %p306 = pneg %p118
      %p307 = pneg %p115
      %p308 = pneg %p139
      %p309 = pneg %p136
      %p310 = pneg %p160
      %p311 = pneg %p157
      %p312 = pneg %p188
      %p313 = pneg %p185
      %s314 = smul.u32 8, %s22
      %p315 = scmp.lt.s32.totalorder %s21, 0
      %s316 = scalar_select %p315, %s21, 0
      %p317 = scmp.lt.s32.totalorder %s314, 7
      %s318 = scalar_select %p317, %s314, 7
      %s319 = smul.addr %s316, 8
      %s320 = sadd.s32 %s318, %s319
      %s321 = smul.addr %s320, 4
      %s322 = scalar_lea.vmem %s5, %s321
      %s323 = smul.u32 8, %s22
      %p324 = scmp.lt.s32.totalorder %s21, 0
      %s325 = scalar_select %p324, %s21, 0
      %p326 = scmp.lt.s32.totalorder %s323, 7
      %s327 = scalar_select %p326, %s323, 7
      %s328 = smul.addr %s325, 8
      %s329 = sadd.s32 %s327, %s328
      %s330 = smul.addr %s329, 8
      %s331 = scalar_lea.vmem %s0, %s330
      %s332 = smul.u32 8, %s22
      %s333 = smul.u32 8, %s22
      %p334 = scmp.lt.s32.totalorder %s21, 0
      %s335 = scalar_select %p334, %s21, 0
      %p336 = scmp.lt.s32.totalorder %s23, 1
      %s337 = scalar_select %p336, %s23, 1
      %p338 = scmp.lt.s32.totalorder %s333, 7
      %s339 = scalar_select %p338, %s333, 7
      %s340 = smul.addr %s337, 8
      %s341 = sadd.s32 %s339, %s340
      %s342 = smul.addr %s335, 16
      %s343 = sadd.s32 %s341, %s342
      %s344 = smul.addr %s343, 8
      %s345 = scalar_lea.vmem %s1, %s344
      %s346 = smul.u32 8, %s22
      %s347 = smul.u32 8, %s22
      %p348 = scmp.lt.s32.totalorder %s21, 0
      %s349 = scalar_select %p348, %s21, 0
      %p350 = scmp.lt.s32.totalorder %s23, 1
      %s351 = scalar_select %p350, %s23, 1
      %p352 = scmp.lt.s32.totalorder %s347, 7
      %s353 = scalar_select %p352, %s347, 7
      %s354 = smul.addr %s351, 8
      %s355 = sadd.s32 %s353, %s354
      %s356 = smul.addr %s349, 16
      %s357 = sadd.s32 %s355, %s356
      %s358 = smul.addr %s357, 8
      %s359 = scalar_lea.vmem %s2, %s358
      %s360 = smul.u32 8, %s22
      %s361 = smul.u32 8, %s22
      %p362 = scmp.lt.s32.totalorder %s21, 0
      %s363 = scalar_select %p362, %s21, 0
      %p364 = scmp.lt.s32.totalorder %s361, 7
      %s365 = scalar_select %p364, %s361, 7
      %s366 = smul.addr %s363, 8
      %s367 = sadd.s32 %s365, %s366
      %s368 = smul.addr %s367, 4
      %s369 = scalar_lea.vmem %s5, %s368
      %s370 = smul.u32 8, %s22
      %p372 = scmp.eq.s32.totalorder %s23, 0
      // Predicated region
      $region41: #{rosettafold_forward.43} parent=39 // pred_check
        %p373 = pneg %p372
      $region42: #{rosettafold_forward.43} parent=39 // pred_check_branch
        %375 = sbr.rel (%p373) target = $region44
      $region43: #{rosettafold_forward.43} parent=39 // pred_region
        %376 = vst [vmem:[#allocation2] sm:$0xff] 0.0
        %377 = vst [vmem:[#allocation2 + $0x8] sm:$0xff] 0.0
        %378 = vst [vmem:[#allocation2 + $0x10] sm:$0xff] 0.0
        %379 = vst [vmem:[#allocation2 + $0x18] sm:$0xff] 0.0
        %380 = vst [vmem:[#allocation2 + $0x20] sm:$0xff] 0.0
        %381 = vst [vmem:[#allocation2 + $0x28] sm:$0xff] 0.0
        %382 = vst [vmem:[#allocation2 + $0x30] sm:$0xff] 0.0
        %383 = vst [vmem:[#allocation2 + $0x38] sm:$0xff] 0.0
        %vm384 = vcmask 7168
        %385 = vst.msk [vmem:[#allocation3] sm:$0xff] %vm384, 0.0
        %386 = vst.msk [vmem:[#allocation3 + $0x8] sm:$0xff] %vm384, 0.0
        %387 = vst.msk [vmem:[#allocation3 + $0x10] sm:$0xff] %vm384, 0.0
        %388 = vst.msk [vmem:[#allocation3 + $0x18] sm:$0xff] %vm384, 0.0
        %389 = vst.msk [vmem:[#allocation3 + $0x20] sm:$0xff] %vm384, 0.0
        %390 = vst.msk [vmem:[#allocation3 + $0x28] sm:$0xff] %vm384, 0.0
        %391 = vst.msk [vmem:[#allocation3 + $0x30] sm:$0xff] %vm384, 0.0
        %392 = vst.msk [vmem:[#allocation3 + $0x38] sm:$0xff] %vm384, 0.0
      $region44: #{rosettafold_forward.43} parent=39 // pred_fallthru
        _
      %v393 = vld [vmem:[%s345] sm:$0xff]
      %v394 = vld [vmem:[%s345 + $0x8] sm:$0xff]
      %v395 = vld [vmem:[%s345 + $0x10] sm:$0xff]
      %v396 = vld [vmem:[%s345 + $0x18] sm:$0xff]
      %v397 = vld [vmem:[%s345 + $0x20] sm:$0xff]
      %v398 = vld [vmem:[%s345 + $0x28] sm:$0xff]
      %v399 = vld [vmem:[%s345 + $0x30] sm:$0xff]
      %v400 = vld [vmem:[%s345 + $0x38] sm:$0xff]
      %v401 = vpack.c.bf16 %v394, %v393
      %v402 = vpack.c.bf16 %v396, %v395
      %v403 = vpack.c.bf16 %v398, %v397
      %v404 = vpack.c.bf16 %v400, %v399
      %v405 = vld [vmem:[%s3] sm:$0xf]
      %v406 = vld [vmem:[%s3 + $0x4] sm:$0xf]
      %v407 = vld [vmem:[%s3 + $0x8] sm:$0xf]
      %v408 = vld [vmem:[%s3 + $0xc] sm:$0xf]
      %v409 = vld [vmem:[%s3 + $0x10] sm:$0xf]
      %v410 = vld [vmem:[%s3 + $0x14] sm:$0x3]
      %v411 = vld [vmem:[%s4] sm:$0x1]
      %v413 = vlaneseq
      %v414 = vshrl.u32 %v413, 7
      %v415 = vsub.s32 0, %v414
      %v416 = vrot.slane %v411, %v415
      %v424 = vunpack.c.l.b16 %v405
      %v425 = vunpack.c.l.b16 %v406
      %v426 = vunpack.c.l.b16 %v407
      %v427 = vunpack.c.l.b16 %v408
      %v428 = vunpack.c.l.b16 %v409
      %v429 = vunpack.c.l.b16 %v410
      %v430 = vpack.c.b16 %v425, %v424
      %v431 = vpack.c.b16 %v427, %v426
      %v432 = vpack.c.b16 %v429, %v428
      %vm435 = vcmask 359424
      %v437 = vsel %vm435, %v401, 0
      %v440 = vsel %vm435, %v402, 0
      %v443 = vsel %vm435, %v403, 0
      %v446 = vsel %vm435, %v404, 0
      %vm448 = vcmask 1045504
      %v450 = vsel %vm448, %v432, 0
      %452 = vmatprep.subr.bf16.mxu0 0
      %453 = vmatpush1.bf16.msra.mxu0 %v430
      %454 = vmatprep.subr.bf16.mxu0 0
      %455 = vmatpush1.bf16.msra.mxu0 %v431
      %456 = vmatprep.subr.bf16.mxu0 0
      %457 = vmatpush1.bf16.msra.mxu0 %v450
      %458 = vmatprep.subr.bf16.mxu0 0
      %459 = vmatpush1.bf16.msra.mxu0 0
      %460 = vmatprep.subr.bf16.mxu0 0
      %461 = vmatpush1.bf16.msra.mxu0 0
      %462 = vmatprep.subr.bf16.mxu0 0
      %463 = vmatpush1.bf16.msra.mxu0 0
      %464 = vmatprep.subr.bf16.mxu0 0
      %465 = vmatpush1.bf16.msra.mxu0 0
      %466 = vmatprep.subr.bf16.mxu0 0
      %467 = vmatpush1.bf16.msra.mxu0 0
      %468 = vmatprep.subr.bf16.mxu0 0
      %469 = vmatpush1.bf16.msra.mxu0 0
      %470 = vmatprep.subr.bf16.mxu0 0
      %471 = vmatpush1.bf16.msra.mxu0 0
      %472 = vmatprep.subr.bf16.mxu0 0
      %473 = vmatpush1.bf16.msra.mxu0 0
      %474 = vmatprep.subr.bf16.mxu0 0
      %475 = vmatpush1.bf16.msra.mxu0 0
      %476 = vmatprep.subr.bf16.mxu0 0
      %477 = vmatpush1.bf16.msra.mxu0 0
      %478 = vmatprep.subr.bf16.mxu0 0
      %479 = vmatpush1.bf16.msra.mxu0 0
      %480 = vmatprep.subr.bf16.mxu0 0
      %481 = vmatpush1.bf16.msra.mxu0 0
      %482 = vmatprep.subr.bf16.mxu0 0
      %483 = vmatpush1.bf16.msra.mxu0 0
      %484 = vmatprep.mubr.bf16.mxu0 0
      %485 = vmatmul.mubr.bf16.gmra.mrb[0].mxu0 %v437
      %v486 = vpop.f32.mrb[0].mxu0
      %v487 = vadd.f32 %v416, %v486
      %v488 = vpop.f32.mrb[0].mxu0
      %v489 = vpop.f32.mrb[0].mxu0
      %v490 = vadd.f32 %v416, %v489
      %v491 = vpop.f32.mrb[0].mxu0
      %492 = vmatprep.mubr.bf16.mxu0 0
      %493 = vmatmul.mubr.bf16.gmra.mrb[0].mxu0 %v440
      %v494 = vpop.f32.mrb[0].mxu0
      %v495 = vadd.f32 %v416, %v494
      %v496 = vpop.f32.mrb[0].mxu0
      %v497 = vpop.f32.mrb[0].mxu0
      %v498 = vadd.f32 %v416, %v497
      %v499 = vpop.f32.mrb[0].mxu0
      %500 = vmatprep.mubr.bf16.mxu0 0
      %501 = vmatmul.mubr.bf16.gmra.mrb[0].mxu0 %v443
      %v502 = vpop.f32.mrb[0].mxu0
      %v503 = vadd.f32 %v416, %v502
      %v504 = vpop.f32.mrb[0].mxu0
      %v505 = vpop.f32.mrb[0].mxu0
      %v506 = vadd.f32 %v416, %v505
      %v507 = vpop.f32.mrb[0].mxu0
      %508 = vmatprep.mubr.bf16.mxu0 0
      %509 = vmatmul.mubr.bf16.gmra.mrb[0].mxu0 %v446
      %v510 = vpop.f32.mrb[0].mxu0
      %v511 = vadd.f32 %v416, %v510
      %v512 = vpop.f32.mrb[0].mxu0
      %v513 = vpop.f32.mrb[0].mxu0
      %v514 = vadd.f32 %v416, %v513
      %v515 = vpop.f32.mrb[0].mxu0
      %516 = vdwg.mxu0
      %v517 = vld [vmem:[%s359] sm:$0xff]
      %v518 = vld [vmem:[%s359 + $0x8] sm:$0xff]
      %v519 = vld [vmem:[%s359 + $0x10] sm:$0xff]
      %v520 = vld [vmem:[%s359 + $0x18] sm:$0xff]
      %v521 = vld [vmem:[%s359 + $0x20] sm:$0xff]
      %v522 = vld [vmem:[%s359 + $0x28] sm:$0xff]
      %v523 = vld [vmem:[%s359 + $0x30] sm:$0xff]
      %v524 = vld [vmem:[%s359 + $0x38] sm:$0xff]
      %v525 = vld [vmem:[#allocation2] sm:$0xff]
      %v526 = vld [vmem:[#allocation2 + $0x8] sm:$0xff]
      %v527 = vld [vmem:[#allocation2 + $0x10] sm:$0xff]
      %v528 = vld [vmem:[#allocation2 + $0x18] sm:$0xff]
      %v529 = vld [vmem:[#allocation2 + $0x20] sm:$0xff]
      %v530 = vld [vmem:[#allocation2 + $0x28] sm:$0xff]
      %v531 = vld [vmem:[#allocation2 + $0x30] sm:$0xff]
      %v532 = vld [vmem:[#allocation2 + $0x38] sm:$0xff]
      %534 = vset.pattern.permute.xlu0 0
      %535 = vperm.xlu0 %534, %v517
      %v536 = vpop.permute.xlu0 %535
      %539 = vset.pattern.permute.xlu0 0
      %540 = vperm.xlu0 %539, %v518
      %v541 = vpop.permute.xlu0 %540
      %544 = vset.pattern.permute.xlu0 0
      %545 = vperm.xlu0 %544, %v519
      %v546 = vpop.permute.xlu0 %545
      %549 = vset.pattern.permute.xlu0 0
      %550 = vperm.xlu0 %549, %v520
      %v551 = vpop.permute.xlu0 %550
      %554 = vset.pattern.permute.xlu0 0
      %555 = vperm.xlu0 %554, %v521
      %v556 = vpop.permute.xlu0 %555
      %559 = vset.pattern.permute.xlu0 0
      %560 = vperm.xlu0 %559, %v522
      %v561 = vpop.permute.xlu0 %560
      %564 = vset.pattern.permute.xlu0 0
      %565 = vperm.xlu0 %564, %v523
      %v566 = vpop.permute.xlu0 %565
      %569 = vset.pattern.permute.xlu0 0
      %570 = vperm.xlu0 %569, %v524
      %v571 = vpop.permute.xlu0 %570
      %v573 = vmul.f32 %v487, %v536
      %v574 = vmul.f32 %v490, %v541
      %v575 = vmul.f32 %v495, %v546
      %v576 = vmul.f32 %v498, %v551
      %v577 = vmul.f32 %v503, %v556
      %v578 = vmul.f32 %v506, %v561
      %v579 = vmul.f32 %v511, %v566
      %v580 = vmul.f32 %v514, %v571
      %v581 = vadd.f32 %v525, %v573
      %v582 = vadd.f32 %v526, %v574
      %v583 = vadd.f32 %v527, %v575
      %v584 = vadd.f32 %v528, %v576
      %v585 = vadd.f32 %v529, %v577
      %v586 = vadd.f32 %v530, %v578
      %v587 = vadd.f32 %v531, %v579
      %v588 = vadd.f32 %v532, %v580
      %589 = vst [vmem:[#allocation2] sm:$0xff] %v581
      %590 = vst [vmem:[#allocation2 + $0x8] sm:$0xff] %v582
      %591 = vst [vmem:[#allocation2 + $0x10] sm:$0xff] %v583
      %592 = vst [vmem:[#allocation2 + $0x18] sm:$0xff] %v584
      %593 = vst [vmem:[#allocation2 + $0x20] sm:$0xff] %v585
      %594 = vst [vmem:[#allocation2 + $0x28] sm:$0xff] %v586
      %595 = vst [vmem:[#allocation2 + $0x30] sm:$0xff] %v587
      %596 = vst [vmem:[#allocation2 + $0x38] sm:$0xff] %v588
      %v597 = vld [vmem:[#allocation3] sm:$0xff]
      %v598 = vld [vmem:[#allocation3 + $0x8] sm:$0xff]
      %v599 = vld [vmem:[#allocation3 + $0x10] sm:$0xff]
      %v600 = vld [vmem:[#allocation3 + $0x18] sm:$0xff]
      %v601 = vld [vmem:[#allocation3 + $0x20] sm:$0xff]
      %v602 = vld [vmem:[#allocation3 + $0x28] sm:$0xff]
      %v603 = vld [vmem:[#allocation3 + $0x30] sm:$0xff]
      %v604 = vld [vmem:[#allocation3 + $0x38] sm:$0xff]
      %v605 = vadd.f32 %v597, %v517
      %v606 = vadd.f32 %v598, %v518
      %v607 = vadd.f32 %v599, %v519
      %v608 = vadd.f32 %v600, %v520
      %v609 = vadd.f32 %v601, %v521
      %v610 = vadd.f32 %v602, %v522
      %v611 = vadd.f32 %v603, %v523
      %v612 = vadd.f32 %v604, %v524
      %vm613 = vcmask 7168
      %614 = vst.msk [vmem:[#allocation3] sm:$0xff] %vm613, %v605
      %615 = vst.msk [vmem:[#allocation3 + $0x8] sm:$0xff] %vm613, %v606
      %616 = vst.msk [vmem:[#allocation3 + $0x10] sm:$0xff] %vm613, %v607
      %617 = vst.msk [vmem:[#allocation3 + $0x18] sm:$0xff] %vm613, %v608
      %618 = vst.msk [vmem:[#allocation3 + $0x20] sm:$0xff] %vm613, %v609
      %619 = vst.msk [vmem:[#allocation3 + $0x28] sm:$0xff] %vm613, %v610
      %620 = vst.msk [vmem:[#allocation3 + $0x30] sm:$0xff] %vm613, %v611
      %621 = vst.msk [vmem:[#allocation3 + $0x38] sm:$0xff] %vm613, %v612
      %p622 = scmp.eq.s32.totalorder %s23, 1
      // Predicated region
      $region45: #{rosettafold_forward.43} parent=39 // pred_check
        %p623 = pneg %p622
      $region46: #{rosettafold_forward.43} parent=39 // pred_check_branch
        %625 = sbr.rel (%p623) target = $region48
      $region47: #{rosettafold_forward.43} parent=39 // pred_region
        %v626 = vld [vmem:[%s331] sm:$0xff]
        %v627 = vld [vmem:[%s331 + $0x8] sm:$0xff]
        %v628 = vld [vmem:[%s331 + $0x10] sm:$0xff]
        %v629 = vld [vmem:[%s331 + $0x18] sm:$0xff]
        %v630 = vld [vmem:[%s331 + $0x20] sm:$0xff]
        %v631 = vld [vmem:[%s331 + $0x28] sm:$0xff]
        %v632 = vld [vmem:[%s331 + $0x30] sm:$0xff]
        %v633 = vld [vmem:[%s331 + $0x38] sm:$0xff]
        %v634 = vld [vmem:[#allocation2] sm:$0xff]
        %v635 = vld [vmem:[#allocation2 + $0x8] sm:$0xff]
        %v636 = vld [vmem:[#allocation2 + $0x10] sm:$0xff]
        %v637 = vld [vmem:[#allocation2 + $0x18] sm:$0xff]
        %v638 = vld [vmem:[#allocation2 + $0x20] sm:$0xff]
        %v639 = vld [vmem:[#allocation2 + $0x28] sm:$0xff]
        %v640 = vld [vmem:[#allocation2 + $0x30] sm:$0xff]
        %v641 = vld [vmem:[#allocation2 + $0x38] sm:$0xff]
        %v642 = vld [vmem:[#allocation3] sm:$0xff]
        %v643 = vld [vmem:[#allocation3 + $0x8] sm:$0xff]
        %v644 = vld [vmem:[#allocation3 + $0x10] sm:$0xff]
        %v645 = vld [vmem:[#allocation3 + $0x18] sm:$0xff]
        %v646 = vld [vmem:[#allocation3 + $0x20] sm:$0xff]
        %v647 = vld [vmem:[#allocation3 + $0x28] sm:$0xff]
        %v648 = vld [vmem:[#allocation3 + $0x30] sm:$0xff]
        %v649 = vld [vmem:[#allocation3 + $0x38] sm:$0xff]
        %v650 = vadd.f32 %v642, 0.0001
        %v651 = vadd.f32 %v643, 0.0001
        %v652 = vadd.f32 %v644, 0.0001
        %v653 = vadd.f32 %v645, 0.0001
        %v654 = vadd.f32 %v646, 0.0001
        %v655 = vadd.f32 %v647, 0.0001
        %v656 = vadd.f32 %v648, 0.0001
        %v657 = vadd.f32 %v649, 0.0001
        %659 = vset.pattern.permute.xlu0 0
        %660 = vperm.xlu0 %659, %v650
        %v661 = vpop.permute.xlu0 %660
        %664 = vset.pattern.permute.xlu0 0
        %665 = vperm.xlu0 %664, %v651
        %v666 = vpop.permute.xlu0 %665
        %669 = vset.pattern.permute.xlu0 0
        %670 = vperm.xlu0 %669, %v652
        %v671 = vpop.permute.xlu0 %670
        %674 = vset.pattern.permute.xlu0 0
        %675 = vperm.xlu0 %674, %v653
        %v676 = vpop.permute.xlu0 %675
        %679 = vset.pattern.permute.xlu0 0
        %680 = vperm.xlu0 %679, %v654
        %v681 = vpop.permute.xlu0 %680
        %684 = vset.pattern.permute.xlu0 0
        %685 = vperm.xlu0 %684, %v655
        %v686 = vpop.permute.xlu0 %685
        %689 = vset.pattern.permute.xlu0 0
        %690 = vperm.xlu0 %689, %v656
        %v691 = vpop.permute.xlu0 %690
        %694 = vset.pattern.permute.xlu0 0
        %695 = vperm.xlu0 %694, %v657
        %v696 = vpop.permute.xlu0 %695
        %v698 = vrcp.pop %v661
        %v699 = vmul.f32 %v634, %v698
        %v700 = vrcp.pop %v666
        %v701 = vmul.f32 %v635, %v700
        %v702 = vrcp.pop %v671
        %v703 = vmul.f32 %v636, %v702
        %v704 = vrcp.pop %v676
        %v705 = vmul.f32 %v637, %v704
        %v706 = vrcp.pop %v681
        %v707 = vmul.f32 %v638, %v706
        %v708 = vrcp.pop %v686
        %v709 = vmul.f32 %v639, %v708
        %v710 = vrcp.pop %v691
        %v711 = vmul.f32 %v640, %v710
        %v712 = vrcp.pop %v696
        %v713 = vmul.f32 %v641, %v712
        %v714 = vadd.f32 %v626, %v699
        %v715 = vadd.f32 %v627, %v701
        %v716 = vadd.f32 %v628, %v703
        %v717 = vadd.f32 %v629, %v705
        %v718 = vadd.f32 %v630, %v707
        %v719 = vadd.f32 %v631, %v709
        %v720 = vadd.f32 %v632, %v711
        %v721 = vadd.f32 %v633, %v713
        %v722 = vpack.c.bf16 %v715, %v714
        %v723 = vpack.c.bf16 %v717, %v716
        %v724 = vpack.c.bf16 %v719, %v718
        %v725 = vpack.c.bf16 %v721, %v720
        %v730 = vunpack.c.l.b16 %v722
        %v731 = vunpack.c.h.b16 %v722
        %v732 = vunpack.c.l.b16 %v723
        %v733 = vunpack.c.h.b16 %v723
        %v734 = vunpack.c.l.b16 %v724
        %v735 = vunpack.c.h.b16 %v724
        %v736 = vunpack.c.l.b16 %v725
        %v737 = vunpack.c.h.b16 %v725
        %v738 = vpack.c.b16 %v730, %v730
        %v739 = vpack.c.b16 %v731, %v731
        %v740 = vpack.c.b16 %v732, %v732
        %v741 = vpack.c.b16 %v733, %v733
        %v742 = vpack.c.b16 %v734, %v734
        %v743 = vpack.c.b16 %v735, %v735
        %v744 = vpack.c.b16 %v736, %v736
        %v745 = vpack.c.b16 %v737, %v737
        %754 = vst [vmem:[%s369] sm:$0xf] %v738
        %755 = vst [vmem:[%s369 + $0x4] sm:$0xf] %v739
        %756 = vst [vmem:[%s369 + $0x8] sm:$0xf] %v740
        %757 = vst [vmem:[%s369 + $0xc] sm:$0xf] %v741
        %758 = vst [vmem:[%s369 + $0x10] sm:$0xf] %v742
        %759 = vst [vmem:[%s369 + $0x14] sm:$0xf] %v743
        %760 = vst [vmem:[%s369 + $0x18] sm:$0xf] %v744
        %761 = vst [vmem:[%s369 + $0x1c] sm:$0xf] %v745
      $region48: #{rosettafold_forward.43} parent=39 // pred_fallthru
        _
      %s762 = smul.u32 8, %s22
      %p763 = scmp.lt.s32.totalorder %s21, 0
      %s764 = scalar_select %p763, %s21, 0
      %p765 = scmp.lt.s32.totalorder %s762, 7
      %s766 = scalar_select %p765, %s762, 7
      %s767 = smul.addr %s764, 8
      %s768 = sadd.s32 %s766, %s767
      %s769 = smul.addr %s768, 4
      %s770 = scalar_lea.vmem %s5, %s769
      // Predicated region
      $region49: #{rosettafold_forward.43} parent=39 // pred_check
        %p771 = pneg %p185
      $region50: #{rosettafold_forward.43} parent=39 // pred_check_branch
        %773 = sbr.rel (%p771) target = $region52
      $region51: #{rosettafold_forward.43} parent=39 // pred_region
        %s774 = smul.u32 8, %s22
      $region52: #{rosettafold_forward.43} parent=39 // pred_fallthru
        _
      // Predicated region
      $region53: #{rosettafold_forward.43} parent=39 // pred_check
        %p775 = pneg %p185
      $region54: #{rosettafold_forward.43} parent=39 // pred_check_branch
        %777 = sbr.rel (%p775) target = $region56
      $region55: #{rosettafold_forward.43} parent=39 // pred_region
        %s778 = smul.u32 8, %s22
        %p779 = scmp.lt.s32.totalorder %s21, 0
        %s780 = scalar_select %p779, %s21, 0
        %p781 = scmp.lt.s32.totalorder %s778, 7
        %s782 = scalar_select %p781, %s778, 7
        %s783 = smul.addr %s780, 8
        %s784 = sadd.s32 %s782, %s783
        %s785 = smul.addr %s784, 4
        %s786 = scalar_lea.vmem %s5, %s785
      $region56: #{rosettafold_forward.43} parent=39 // pred_fallthru
        _
    $region40: #{rosettafold_forward.43} parent=5 // pred_fallthru
      _
    %p787 = scmp.le.s32.totalorder 2, %s11
    // Predicated region
    $region57: #{rosettafold_forward.43} parent=5 // pred_check
      %p788 = pneg %p787
    $region58: #{rosettafold_forward.43} parent=5 // pred_check_branch
      %790 = sbr.rel (%p788) target = $region60
    $region59: #{rosettafold_forward.43} parent=5 // pred_region
      %s791 = ssub.s32 %s11, 2
    $region60: #{rosettafold_forward.43} parent=5 // pred_fallthru
      _
  $region6: #{rosettafold_forward.43} parent=0 // loop_footer
    %s15 = sadd.s32 1, %s11
  $region7: #{rosettafold_forward.43} parent=0 // loop_footer_branch
    %10 = sbr.rel target = $region3
  $region8: #{rosettafold_forward.43} parent=0 // loop_exit
    _

</llo_original>
